<compile_context>
chip_gen: v6e
topology: v6e:2x2x1
jax: 0.10.0
libtpu: 0.0.40
codegen_flags: <defaults>
</compile_context>

<pallas_src>
import math

import jax
import jax.numpy as jnp
from jax.experimental import pallas as pl
from jax.experimental.pallas import tpu as pltpu

HIDDEN = 32
HEADS = 2
HEAD_DIM = HIDDEN // HEADS
INTERMEDIATE = 64
LAYERS = 4
VOCAB = 64
MAX_POS = 64
EPS = 1e-5
QKV_COLS = 128          # 3*HIDDEN = 96, zero-padded to one full lane tile


# ---------------------------------------------------------------------------
# Fused encoder kernel: one grid step == one sequence, all layers.
# ---------------------------------------------------------------------------
def _encoder_kernel(mask_ref, emb_ref,
                    emb_ln_g_ref, emb_ln_b_ref,
                    qkv_w_ref, qkv_b_ref, o_w_ref, o_b_ref,
                    ln1_g_ref, ln1_b_ref,
                    f1_w_ref, f1_b_ref, f2_w_ref, f2_b_ref,
                    ln2_g_ref, ln2_b_ref,
                    out_ref):
    def layernorm(x, g, b):
        # One-pass LN: the two reductions are independent (shorter XLU chain).
        mu = jnp.mean(x, axis=-1, keepdims=True)
        ms = jnp.mean(x * x, axis=-1, keepdims=True)
        var = ms - mu * mu
        return (x - mu) * jax.lax.rsqrt(var + EPS) * g + b

    def gelu(y):
        # TODO(synk): HF BERT/XLM-R use erf GELU; tanh approximation kept here.
        c = math.sqrt(2.0 / math.pi)
        return 0.5 * y * (1.0 + jnp.tanh(c * (y + 0.044715 * y * y * y)))

    b = pl.program_id(0)
    # Extended attention mask -> additive bias for this sequence, (1, S) f32.
    bias = (1.0 - mask_ref[pl.ds(b, 1), :]) * -10000.0

    # hidden_states[0] = embedding LayerNorm (no pointless zero residual).
    x = layernorm(emb_ref[...], emb_ln_g_ref[...], emb_ln_b_ref[...])      # (S, H)

    # Accumulator for torch.sum(last 4 hidden states).
    acc = x if LAYERS <= 3 else jnp.zeros_like(x)

    for li in range(LAYERS):
        # ---- fused QKV projection: one bf16 (S,H) @ (H,128) MXU matmul ------
        # (1/sqrt(head_dim) already folded into the Q columns of qkv_w.)
        qkv = jnp.dot(x.astype(jnp.bfloat16), qkv_w_ref[li],
                      preferred_element_type=jnp.float32) + qkv_b_ref[li]   # (S,128) f32
        qkv_bf = qkv.astype(jnp.bfloat16)                                   # single cast

        # ---- attention: static unroll over heads --------------------------
        ctx_heads = []
        for h in range(HEADS):
            c0 = h * HEAD_DIM
            q_h = qkv_bf[:, c0:c0 + HEAD_DIM]
            k_h = qkv_bf[:, HIDDEN + c0:HIDDEN + c0 + HEAD_DIM]
            v_h = qkv_bf[:, 2 * HIDDEN + c0:2 * HIDDEN + c0 + HEAD_DIM]

            s = jax.lax.dot_general(q_h, k_h, (((1,), (1,)), ((), ())),
                                    preferred_element_type=jnp.float32)     # (S, S)
            s = s + bias
            m = jnp.max(s, axis=-1, keepdims=True)
            p = jnp.exp(s - m)
            p = p * pl.reciprocal(jnp.sum(p, axis=-1, keepdims=True),
                                  approx=True)                              # EUP recip
            ctx_heads.append(jnp.dot(p.astype(jnp.bfloat16), v_h,
                                     preferred_element_type=jnp.float32))   # (S, D)

        # In-vreg lane concat (16+16 -> 32) + ONE output projection matmul.
        ctx = jnp.concatenate(ctx_heads, axis=1).astype(jnp.bfloat16)       # (S, H)
        attn_out = jnp.dot(ctx, o_w_ref[li],
                           preferred_element_type=jnp.float32) + o_b_ref[li]
        x = layernorm(attn_out + x, ln1_g_ref[li], ln1_b_ref[li])

        # ---- FFN (bf16 MXU, f32 accumulate, f32 GELU) ----------------------
        h1 = jnp.dot(x.astype(jnp.bfloat16), f1_w_ref[li],
                     preferred_element_type=jnp.float32) + f1_b_ref[li]     # (S, I)
        h1 = gelu(h1)
        h2 = jnp.dot(h1.astype(jnp.bfloat16), f2_w_ref[li],
                     preferred_element_type=jnp.float32) + f2_b_ref[li]     # (S, H)
        x = layernorm(h2 + x, ln2_g_ref[li], ln2_b_ref[li])

        if li + 1 >= LAYERS - 3:           # last four hidden states
            acc = acc + x

    # TODO(synk): output last dim is 32 (masked stores); a lane-dense
    # (B*S*H/128, 128) slab would avoid vst.msk but needs an in-kernel
    # lane-reshape -- not worth the lowering risk at this toy size.
    out_ref[...] = acc.astype(out_ref.dtype)


# ---------------------------------------------------------------------------
# Synthetic parameters (deterministic), pre-stacked per layer.
# MXU weights stored bf16; biases / LN params / embeddings f32.
# ---------------------------------------------------------------------------
def init_params(key):
    def norm(k, shape):
        return 0.02 * jax.random.normal(k, shape, dtype=jnp.float32)

    keys = jax.random.split(key, 4 + LAYERS)
    scale = 1.0 / math.sqrt(HEAD_DIM)
    qkv_w, o_w, f1_w, f2_w = [], [], [], []
    for li in range(LAYERS):
        lk = jax.random.split(keys[4 + li], 6)
        q = norm(lk[0], (HIDDEN, HIDDEN)) * scale     # attention scale folded in
        k = norm(lk[1], (HIDDEN, HIDDEN))
        v = norm(lk[2], (HIDDEN, HIDDEN))
        w = jnp.concatenate([q, k, v], axis=1)        # (H, 3H)
        w = jnp.pad(w, ((0, 0), (0, QKV_COLS - 3 * HIDDEN)))   # lane-pad to 128
        qkv_w.append(w)
        o_w.append(norm(lk[3], (HIDDEN, HIDDEN)))
        f1_w.append(norm(lk[4], (HIDDEN, INTERMEDIATE)))
        f2_w.append(norm(lk[5], (INTERMEDIATE, HIDDEN)))

    return {
        "word_emb": norm(keys[0], (VOCAB, HIDDEN)),
        "pos_emb": norm(keys[1], (MAX_POS, HIDDEN)),
        "type_emb": norm(keys[2], (2, HIDDEN)),
        "emb_ln_g": jnp.ones((1, HIDDEN), jnp.float32),
        "emb_ln_b": jnp.zeros((1, HIDDEN), jnp.float32),
        "qkv_w": jnp.stack(qkv_w).astype(jnp.bfloat16),          # (L, H, 128)
        # NOTE: if a nonzero Q bias existed it would need the same *scale.
        "qkv_b": jnp.zeros((LAYERS, 1, QKV_COLS), jnp.float32),
        "o_w": jnp.stack(o_w).astype(jnp.bfloat16),              # (L, H, H)
        "o_b": jnp.zeros((LAYERS, 1, HIDDEN), jnp.float32),
        "ln1_g": jnp.ones((LAYERS, 1, HIDDEN), jnp.float32),
        "ln1_b": jnp.zeros((LAYERS, 1, HIDDEN), jnp.float32),
        "f1_w": jnp.stack(f1_w).astype(jnp.bfloat16),            # (L, H, I)
        "f1_b": jnp.zeros((LAYERS, 1, INTERMEDIATE), jnp.float32),
        "f2_w": jnp.stack(f2_w).astype(jnp.bfloat16),            # (L, I, H)
        "f2_b": jnp.zeros((LAYERS, 1, HIDDEN), jnp.float32),
        "ln2_g": jnp.ones((LAYERS, 1, HIDDEN), jnp.float32),
        "ln2_b": jnp.zeros((LAYERS, 1, HIDDEN), jnp.float32),
    }


# ---------------------------------------------------------------------------
# Forward pass (mirrors BERTWordEncoder.forward): one pallas_call, grid=(B,).
# ---------------------------------------------------------------------------
def bert_word_encoder(params, words, masks):
    B, S = words.shape

    # Embedding lookup is gather glue -> plain JAX.
    # TODO(synk): XLM-R's padding_idx-offset position ids simplified to
    #             arange(S); token_type is hard-wired to index 0.
    tok = jnp.take(params["word_emb"], words, axis=0)                 # (B, S, H)
    pos = jnp.take(params["pos_emb"], jnp.arange(S), axis=0)[None]    # (1, S, H)
    typ = params["type_emb"][0][None, None]                           # (1, 1, H)
    emb = (tok + pos + typ).reshape(B * S, HIDDEN)

    mask_f = masks.astype(jnp.float32)

    weights = (
        params["emb_ln_g"], params["emb_ln_b"],
        params["qkv_w"], params["qkv_b"], params["o_w"], params["o_b"],
        params["ln1_g"], params["ln1_b"],
        params["f1_w"], params["f1_b"], params["f2_w"], params["f2_b"],
        params["ln2_g"], params["ln2_b"],
    )

    # Full-array blocks with constant index_maps -> VMEM-resident across the
    # whole grid (no per-step weight DMA).
    def full(a):
        return pl.BlockSpec(a.shape, lambda b, _nd=a.ndim: (0,) * _nd)

    in_specs = [full(mask_f),
                pl.BlockSpec((S, HIDDEN), lambda b: (b, 0))]
    in_specs += [full(w) for w in weights]

    out = pl.pallas_call(
        _encoder_kernel,
        out_shape=jax.ShapeDtypeStruct((B * S, HIDDEN), jnp.float32),
        grid_spec=pltpu.PrefetchScalarGridSpec(
            num_scalar_prefetch=0,
            grid=(B,),
            in_specs=in_specs,
            out_specs=pl.BlockSpec((S, HIDDEN), lambda b: (b, 0)),
        ),
        compiler_params=pltpu.CompilerParams(
            # "parallel": sequences shard across TensorCores on megacore parts.
            dimension_semantics=("parallel",),
            # Weights + activations << 1 MiB; 32 MiB also fits v7x's 64 MiB VMEM.
            vmem_limit_bytes=32 * 1024 * 1024),
    )(mask_f, emb, *weights)

    # word_embeddings = sum of the last 4 hidden states -> (B, S, H)
    return out.reshape(B, S, HIDDEN)


if __name__ == "__main__":
    key = jax.random.PRNGKey(0)
    pkey, wkey = jax.random.split(key)
    params = init_params(pkey)

    B, S = 2, 8
    words = jax.random.randint(wkey, (B, S), 0, VOCAB, dtype=jnp.int32)
    masks = jnp.array([[1] * S, [1] * (S - 2) + [0, 0]], dtype=jnp.int32)

    fwd = jax.jit(bert_word_encoder)
    out = fwd(params, words, masks)
    jax.block_until_ready(out)
    assert out.shape == (B, S, HIDDEN) and out.dtype == jnp.float32
    print("KERNEL_OK")
</pallas_src>

<mosaic_0001>
module attributes {stable_mosaic.version = 11 : i64} {
  func.func @_encoder_kernel(%arg0: i32, %arg1: memref<2x8xf32, #tpu.memory_space<vmem>>, %arg2: memref<8x32xf32, #tpu.memory_space<vmem>>, %arg3: memref<1x32xf32, #tpu.memory_space<vmem>>, %arg4: memref<1x32xf32, #tpu.memory_space<vmem>>, %arg5: memref<4x32x128xbf16, #tpu.memory_space<vmem>>, %arg6: memref<4x1x128xf32, #tpu.memory_space<vmem>>, %arg7: memref<4x32x32xbf16, #tpu.memory_space<vmem>>, %arg8: memref<4x1x32xf32, #tpu.memory_space<vmem>>, %arg9: memref<4x1x32xf32, #tpu.memory_space<vmem>>, %arg10: memref<4x1x32xf32, #tpu.memory_space<vmem>>, %arg11: memref<4x32x64xbf16, #tpu.memory_space<vmem>>, %arg12: memref<4x1x64xf32, #tpu.memory_space<vmem>>, %arg13: memref<4x64x32xbf16, #tpu.memory_space<vmem>>, %arg14: memref<4x1x32xf32, #tpu.memory_space<vmem>>, %arg15: memref<4x1x32xf32, #tpu.memory_space<vmem>>, %arg16: memref<4x1x32xf32, #tpu.memory_space<vmem>>, %arg17: memref<8x32xf32, #tpu.memory_space<vmem>>) attributes {dimension_semantics = [#tpu.dimension_semantics<parallel>], iteration_bounds = array<i64: 2>, scalar_prefetch = 0 : i64, scratch_operands = 0 : i64, tpu.core_type = #tpu.core_type<tc>, window_params = [{pipeline_mode = #tpu.pipeline_mode<synchronous>, transform_indices = @transform_0, window_bounds = array<i64: 2, 8>}, {transform_indices = @transform_1, window_bounds = array<i64: 8, 32>}, {pipeline_mode = #tpu.pipeline_mode<synchronous>, transform_indices = @transform_2, window_bounds = array<i64: 1, 32>}, {pipeline_mode = #tpu.pipeline_mode<synchronous>, transform_indices = @transform_3, window_bounds = array<i64: 1, 32>}, {pipeline_mode = #tpu.pipeline_mode<synchronous>, transform_indices = @transform_4, window_bounds = array<i64: 4, 32, 128>}, {pipeline_mode = #tpu.pipeline_mode<synchronous>, transform_indices = @transform_5, window_bounds = array<i64: 4, 1, 128>}, {pipeline_mode = #tpu.pipeline_mode<synchronous>, transform_indices = @transform_6, window_bounds = array<i64: 4, 32, 32>}, {pipeline_mode = #tpu.pipeline_mode<synchronous>, transform_indices = @transform_7, window_bounds = array<i64: 4, 1, 32>}, {pipeline_mode = #tpu.pipeline_mode<synchronous>, transform_indices = @transform_8, window_bounds = array<i64: 4, 1, 32>}, {pipeline_mode = #tpu.pipeline_mode<synchronous>, transform_indices = @transform_9, window_bounds = array<i64: 4, 1, 32>}, {pipeline_mode = #tpu.pipeline_mode<synchronous>, transform_indices = @transform_10, window_bounds = array<i64: 4, 32, 64>}, {pipeline_mode = #tpu.pipeline_mode<synchronous>, transform_indices = @transform_11, window_bounds = array<i64: 4, 1, 64>}, {pipeline_mode = #tpu.pipeline_mode<synchronous>, transform_indices = @transform_12, window_bounds = array<i64: 4, 64, 32>}, {pipeline_mode = #tpu.pipeline_mode<synchronous>, transform_indices = @transform_13, window_bounds = array<i64: 4, 1, 32>}, {pipeline_mode = #tpu.pipeline_mode<synchronous>, transform_indices = @transform_14, window_bounds = array<i64: 4, 1, 32>}, {pipeline_mode = #tpu.pipeline_mode<synchronous>, transform_indices = @transform_15, window_bounds = array<i64: 4, 1, 32>}, {transform_indices = @transform_16, window_bounds = array<i64: 8, 32>}]} {
    %0 = arith.index_cast %arg0 : i32 to index
    %c0 = arith.constant 0 : index
    %1 = vector.load %arg1[%0, %c0] : memref<2x8xf32, #tpu.memory_space<vmem>>, vector<1x8xf32>
    %cst = arith.constant 1.000000e+00 : f32
    %2 = vector.broadcast %cst : f32 to vector<1x8xf32>
    %3 = arith.subf %2, %1 : vector<1x8xf32>
    %cst_0 = arith.constant -1.000000e+04 : f32
    %4 = vector.broadcast %cst_0 : f32 to vector<1x8xf32>
    %5 = arith.mulf %3, %4 : vector<1x8xf32>
    %c0_1 = arith.constant 0 : index
    %c0_2 = arith.constant 0 : index
    %6 = vector.load %arg2[%c0_1, %c0_2] : memref<8x32xf32, #tpu.memory_space<vmem>>, vector<8x32xf32>
    %c0_3 = arith.constant 0 : index
    %c0_4 = arith.constant 0 : index
    %7 = vector.load %arg3[%c0_3, %c0_4] : memref<1x32xf32, #tpu.memory_space<vmem>>, vector<1x32xf32>
    %c0_5 = arith.constant 0 : index
    %c0_6 = arith.constant 0 : index
    %8 = vector.load %arg4[%c0_5, %c0_6] : memref<1x32xf32, #tpu.memory_space<vmem>>, vector<1x32xf32>
    %cst_7 = arith.constant dense<0.000000e+00> : vector<8xf32>
    %9 = vector.multi_reduction <add>, %6, %cst_7 [1] : vector<8x32xf32> to vector<8xf32>
    %10 = vector.shape_cast %9 : vector<8xf32> to vector<8x1xf32>
    %cst_8 = arith.constant 3.200000e+01 : f32
    %11 = vector.broadcast %cst_8 : f32 to vector<8x1xf32>
    %12 = arith.divf %10, %11 : vector<8x1xf32>
    %13 = arith.mulf %6, %6 : vector<8x32xf32>
    %cst_9 = arith.constant dense<0.000000e+00> : vector<8xf32>
    %14 = vector.multi_reduction <add>, %13, %cst_9 [1] : vector<8x32xf32> to vector<8xf32>
    %15 = vector.shape_cast %14 : vector<8xf32> to vector<8x1xf32>
    %cst_10 = arith.constant 3.200000e+01 : f32
    %16 = vector.broadcast %cst_10 : f32 to vector<8x1xf32>
    %17 = arith.divf %15, %16 : vector<8x1xf32>
    %18 = arith.mulf %12, %12 : vector<8x1xf32>
    %19 = arith.subf %17, %18 : vector<8x1xf32>
    %20 = vector.broadcast %12 : vector<8x1xf32> to vector<8x32xf32>
    %21 = arith.subf %6, %20 : vector<8x32xf32>
    %cst_11 = arith.constant 9.99999974E-6 : f32
    %22 = vector.broadcast %cst_11 : f32 to vector<8x1xf32>
    %23 = arith.addf %19, %22 : vector<8x1xf32>
    %24 = math.rsqrt %23 : vector<8x1xf32>
    %25 = vector.broadcast %24 : vector<8x1xf32> to vector<8x32xf32>
    %26 = arith.mulf %21, %25 : vector<8x32xf32>
    %27 = vector.broadcast %7 : vector<1x32xf32> to vector<8x32xf32>
    %28 = arith.mulf %26, %27 : vector<8x32xf32>
    %29 = vector.broadcast %8 : vector<1x32xf32> to vector<8x32xf32>
    %30 = arith.addf %28, %29 : vector<8x32xf32>
    %cst_12 = arith.constant 0.000000e+00 : f32
    %31 = vector.broadcast %cst_12 : f32 to vector<8x32xf32>
    %32 = arith.truncf %30 : vector<8x32xf32> to vector<8x32xbf16>
    %c0_13 = arith.constant 0 : index
    %c0_14 = arith.constant 0 : index
    %c0_15 = arith.constant 0 : index
    %33 = vector.load %arg5[%c0_13, %c0_14, %c0_15] : memref<4x32x128xbf16, #tpu.memory_space<vmem>>, vector<1x32x128xbf16>
    %34 = vector.shape_cast %33 : vector<1x32x128xbf16> to vector<32x128xbf16>
    %cst_16 = arith.constant dense<0.000000e+00> : vector<8x128xf32>
    %35 = tpu.matmul %32, %34, %cst_16 {dimension_numbers = #tpu.dot_dimension_numbers<[1], [0], [0], [1], [0, 0, 1, 1], [], []>} : vector<8x32xbf16>, vector<32x128xbf16>, vector<8x128xf32> -> vector<8x128xf32>
    %c0_17 = arith.constant 0 : index
    %c0_18 = arith.constant 0 : index
    %c0_19 = arith.constant 0 : index
    %36 = vector.load %arg6[%c0_17, %c0_18, %c0_19] : memref<4x1x128xf32, #tpu.memory_space<vmem>>, vector<1x1x128xf32>
    %37 = vector.shape_cast %36 : vector<1x1x128xf32> to vector<1x128xf32>
    %38 = vector.broadcast %37 : vector<1x128xf32> to vector<8x128xf32>
    %39 = arith.addf %35, %38 : vector<8x128xf32>
    %40 = arith.truncf %39 : vector<8x128xf32> to vector<8x128xbf16>
    %41 = vector.extract_strided_slice %40 {offsets = [0, 0], sizes = [8, 16], strides = [1, 1]} : vector<8x128xbf16> to vector<8x16xbf16>
    %42 = vector.extract_strided_slice %40 {offsets = [0, 32], sizes = [8, 16], strides = [1, 1]} : vector<8x128xbf16> to vector<8x16xbf16>
    %43 = vector.extract_strided_slice %40 {offsets = [0, 64], sizes = [8, 16], strides = [1, 1]} : vector<8x128xbf16> to vector<8x16xbf16>
    %cst_20 = arith.constant dense<0.000000e+00> : vector<8x8xf32>
    %44 = tpu.matmul %41, %42, %cst_20 {dimension_numbers = #tpu.dot_dimension_numbers<[1], [1], [0], [0], [0, 0, 1, 0], [], []>} : vector<8x16xbf16>, vector<8x16xbf16>, vector<8x8xf32> -> vector<8x8xf32>
    %45 = vector.broadcast %5 : vector<1x8xf32> to vector<8x8xf32>
    %46 = arith.addf %44, %45 : vector<8x8xf32>
    %cst_21 = arith.constant dense<0xFF800000> : vector<8xf32>
    %47 = vector.multi_reduction <maximumf>, %46, %cst_21 [1] : vector<8x8xf32> to vector<8xf32>
    %48 = vector.shape_cast %47 : vector<8xf32> to vector<8x1xf32>
    %49 = vector.broadcast %48 : vector<8x1xf32> to vector<8x8xf32>
    %50 = arith.subf %46, %49 : vector<8x8xf32>
    %51 = math.exp %50 : vector<8x8xf32>
    %cst_22 = arith.constant dense<0.000000e+00> : vector<8xf32>
    %52 = vector.multi_reduction <add>, %51, %cst_22 [1] : vector<8x8xf32> to vector<8xf32>
    %53 = vector.shape_cast %52 : vector<8xf32> to vector<8x1xf32>
    %54 = tpu.reciprocal %53 {approx = true} : vector<8x1xf32> -> vector<8x1xf32>
    %55 = vector.broadcast %54 : vector<8x1xf32> to vector<8x8xf32>
    %56 = arith.mulf %51, %55 : vector<8x8xf32>
    %57 = arith.truncf %56 : vector<8x8xf32> to vector<8x8xbf16>
    %cst_23 = arith.constant dense<0.000000e+00> : vector<8x16xf32>
    %58 = tpu.matmul %57, %43, %cst_23 {dimension_numbers = #tpu.dot_dimension_numbers<[1], [0], [0], [1], [0, 0, 1, 1], [], []>} : vector<8x8xbf16>, vector<8x16xbf16>, vector<8x16xf32> -> vector<8x16xf32>
    %59 = vector.extract_strided_slice %40 {offsets = [0, 16], sizes = [8, 16], strides = [1, 1]} : vector<8x128xbf16> to vector<8x16xbf16>
    %60 = vector.extract_strided_slice %40 {offsets = [0, 48], sizes = [8, 16], strides = [1, 1]} : vector<8x128xbf16> to vector<8x16xbf16>
    %61 = vector.extract_strided_slice %40 {offsets = [0, 80], sizes = [8, 16], strides = [1, 1]} : vector<8x128xbf16> to vector<8x16xbf16>
    %cst_24 = arith.constant dense<0.000000e+00> : vector<8x8xf32>
    %62 = tpu.matmul %59, %60, %cst_24 {dimension_numbers = #tpu.dot_dimension_numbers<[1], [1], [0], [0], [0, 0, 1, 0], [], []>} : vector<8x16xbf16>, vector<8x16xbf16>, vector<8x8xf32> -> vector<8x8xf32>
    %63 = vector.broadcast %5 : vector<1x8xf32> to vector<8x8xf32>
    %64 = arith.addf %62, %63 : vector<8x8xf32>
    %cst_25 = arith.constant dense<0xFF800000> : vector<8xf32>
    %65 = vector.multi_reduction <maximumf>, %64, %cst_25 [1] : vector<8x8xf32> to vector<8xf32>
    %66 = vector.shape_cast %65 : vector<8xf32> to vector<8x1xf32>
    %67 = vector.broadcast %66 : vector<8x1xf32> to vector<8x8xf32>
    %68 = arith.subf %64, %67 : vector<8x8xf32>
    %69 = math.exp %68 : vector<8x8xf32>
    %cst_26 = arith.constant dense<0.000000e+00> : vector<8xf32>
    %70 = vector.multi_reduction <add>, %69, %cst_26 [1] : vector<8x8xf32> to vector<8xf32>
    %71 = vector.shape_cast %70 : vector<8xf32> to vector<8x1xf32>
    %72 = tpu.reciprocal %71 {approx = true} : vector<8x1xf32> -> vector<8x1xf32>
    %73 = vector.broadcast %72 : vector<8x1xf32> to vector<8x8xf32>
    %74 = arith.mulf %69, %73 : vector<8x8xf32>
    %75 = arith.truncf %74 : vector<8x8xf32> to vector<8x8xbf16>
    %cst_27 = arith.constant dense<0.000000e+00> : vector<8x16xf32>
    %76 = tpu.matmul %75, %61, %cst_27 {dimension_numbers = #tpu.dot_dimension_numbers<[1], [0], [0], [1], [0, 0, 1, 1], [], []>} : vector<8x8xbf16>, vector<8x16xbf16>, vector<8x16xf32> -> vector<8x16xf32>
    %77 = tpu.concatenate %58, %76 in 1 : vector<8x16xf32>, vector<8x16xf32> -> vector<8x32xf32>
    %78 = arith.truncf %77 : vector<8x32xf32> to vector<8x32xbf16>
    %c0_28 = arith.constant 0 : index
    %c0_29 = arith.constant 0 : index
    %c0_30 = arith.constant 0 : index
    %79 = vector.load %arg7[%c0_28, %c0_29, %c0_30] : memref<4x32x32xbf16, #tpu.memory_space<vmem>>, vector<1x32x32xbf16>
    %80 = vector.shape_cast %79 : vector<1x32x32xbf16> to vector<32x32xbf16>
    %cst_31 = arith.constant dense<0.000000e+00> : vector<8x32xf32>
    %81 = tpu.matmul %78, %80, %cst_31 {dimension_numbers = #tpu.dot_dimension_numbers<[1], [0], [0], [1], [0, 0, 1, 1], [], []>} : vector<8x32xbf16>, vector<32x32xbf16>, vector<8x32xf32> -> vector<8x32xf32>
    %c0_32 = arith.constant 0 : index
    %c0_33 = arith.constant 0 : index
    %c0_34 = arith.constant 0 : index
    %82 = vector.load %arg8[%c0_32, %c0_33, %c0_34] : memref<4x1x32xf32, #tpu.memory_space<vmem>>, vector<1x1x32xf32>
    %83 = vector.shape_cast %82 : vector<1x1x32xf32> to vector<1x32xf32>
    %84 = vector.broadcast %83 : vector<1x32xf32> to vector<8x32xf32>
    %85 = arith.addf %81, %84 : vector<8x32xf32>
    %86 = arith.addf %85, %30 : vector<8x32xf32>
    %c0_35 = arith.constant 0 : index
    %c0_36 = arith.constant 0 : index
    %c0_37 = arith.constant 0 : index
    %87 = vector.load %arg9[%c0_35, %c0_36, %c0_37] : memref<4x1x32xf32, #tpu.memory_space<vmem>>, vector<1x1x32xf32>
    %88 = vector.shape_cast %87 : vector<1x1x32xf32> to vector<1x32xf32>
    %c0_38 = arith.constant 0 : index
    %c0_39 = arith.constant 0 : index
    %c0_40 = arith.constant 0 : index
    %89 = vector.load %arg10[%c0_38, %c0_39, %c0_40] : memref<4x1x32xf32, #tpu.memory_space<vmem>>, vector<1x1x32xf32>
    %90 = vector.shape_cast %89 : vector<1x1x32xf32> to vector<1x32xf32>
    %cst_41 = arith.constant dense<0.000000e+00> : vector<8xf32>
    %91 = vector.multi_reduction <add>, %86, %cst_41 [1] : vector<8x32xf32> to vector<8xf32>
    %92 = vector.shape_cast %91 : vector<8xf32> to vector<8x1xf32>
    %cst_42 = arith.constant 3.200000e+01 : f32
    %93 = vector.broadcast %cst_42 : f32 to vector<8x1xf32>
    %94 = arith.divf %92, %93 : vector<8x1xf32>
    %95 = arith.mulf %86, %86 : vector<8x32xf32>
    %cst_43 = arith.constant dense<0.000000e+00> : vector<8xf32>
    %96 = vector.multi_reduction <add>, %95, %cst_43 [1] : vector<8x32xf32> to vector<8xf32>
    %97 = vector.shape_cast %96 : vector<8xf32> to vector<8x1xf32>
    %cst_44 = arith.constant 3.200000e+01 : f32
    %98 = vector.broadcast %cst_44 : f32 to vector<8x1xf32>
    %99 = arith.divf %97, %98 : vector<8x1xf32>
    %100 = arith.mulf %94, %94 : vector<8x1xf32>
    %101 = arith.subf %99, %100 : vector<8x1xf32>
    %102 = vector.broadcast %94 : vector<8x1xf32> to vector<8x32xf32>
    %103 = arith.subf %86, %102 : vector<8x32xf32>
    %cst_45 = arith.constant 9.99999974E-6 : f32
    %104 = vector.broadcast %cst_45 : f32 to vector<8x1xf32>
    %105 = arith.addf %101, %104 : vector<8x1xf32>
    %106 = math.rsqrt %105 : vector<8x1xf32>
    %107 = vector.broadcast %106 : vector<8x1xf32> to vector<8x32xf32>
    %108 = arith.mulf %103, %107 : vector<8x32xf32>
    %109 = vector.broadcast %88 : vector<1x32xf32> to vector<8x32xf32>
    %110 = arith.mulf %108, %109 : vector<8x32xf32>
    %111 = vector.broadcast %90 : vector<1x32xf32> to vector<8x32xf32>
    %112 = arith.addf %110, %111 : vector<8x32xf32>
    %113 = arith.truncf %112 : vector<8x32xf32> to vector<8x32xbf16>
    %c0_46 = arith.constant 0 : index
    %c0_47 = arith.constant 0 : index
    %c0_48 = arith.constant 0 : index
    %114 = vector.load %arg11[%c0_46, %c0_47, %c0_48] : memref<4x32x64xbf16, #tpu.memory_space<vmem>>, vector<1x32x64xbf16>
    %115 = vector.shape_cast %114 : vector<1x32x64xbf16> to vector<32x64xbf16>
    %cst_49 = arith.constant dense<0.000000e+00> : vector<8x64xf32>
    %116 = tpu.matmul %113, %115, %cst_49 {dimension_numbers = #tpu.dot_dimension_numbers<[1], [0], [0], [1], [0, 0, 1, 1], [], []>} : vector<8x32xbf16>, vector<32x64xbf16>, vector<8x64xf32> -> vector<8x64xf32>
    %c0_50 = arith.constant 0 : index
    %c0_51 = arith.constant 0 : index
    %c0_52 = arith.constant 0 : index
    %117 = vector.load %arg12[%c0_50, %c0_51, %c0_52] : memref<4x1x64xf32, #tpu.memory_space<vmem>>, vector<1x1x64xf32>
    %118 = vector.shape_cast %117 : vector<1x1x64xf32> to vector<1x64xf32>
    %119 = vector.broadcast %118 : vector<1x64xf32> to vector<8x64xf32>
    %120 = arith.addf %116, %119 : vector<8x64xf32>
    %cst_53 = arith.constant 5.000000e-01 : f32
    %121 = vector.broadcast %cst_53 : f32 to vector<8x64xf32>
    %122 = arith.mulf %121, %120 : vector<8x64xf32>
    %cst_54 = arith.constant 4.471500e-02 : f32
    %123 = vector.broadcast %cst_54 : f32 to vector<8x64xf32>
    %124 = arith.mulf %123, %120 : vector<8x64xf32>
    %125 = arith.mulf %124, %120 : vector<8x64xf32>
    %126 = arith.mulf %125, %120 : vector<8x64xf32>
    %127 = arith.addf %120, %126 : vector<8x64xf32>
    %cst_55 = arith.constant 0.797884583 : f32
    %128 = vector.broadcast %cst_55 : f32 to vector<8x64xf32>
    %129 = arith.mulf %128, %127 : vector<8x64xf32>
    %130 = math.tanh %129 : vector<8x64xf32>
    %cst_56 = arith.constant 1.000000e+00 : f32
    %131 = vector.broadcast %cst_56 : f32 to vector<8x64xf32>
    %132 = arith.addf %131, %130 : vector<8x64xf32>
    %133 = arith.mulf %122, %132 : vector<8x64xf32>
    %134 = arith.truncf %133 : vector<8x64xf32> to vector<8x64xbf16>
    %c0_57 = arith.constant 0 : index
    %c0_58 = arith.constant 0 : index
    %c0_59 = arith.constant 0 : index
    %135 = vector.load %arg13[%c0_57, %c0_58, %c0_59] : memref<4x64x32xbf16, #tpu.memory_space<vmem>>, vector<1x64x32xbf16>
    %136 = vector.shape_cast %135 : vector<1x64x32xbf16> to vector<64x32xbf16>
    %cst_60 = arith.constant dense<0.000000e+00> : vector<8x32xf32>
    %137 = tpu.matmul %134, %136, %cst_60 {dimension_numbers = #tpu.dot_dimension_numbers<[1], [0], [0], [1], [0, 0, 1, 1], [], []>} : vector<8x64xbf16>, vector<64x32xbf16>, vector<8x32xf32> -> vector<8x32xf32>
    %c0_61 = arith.constant 0 : index
    %c0_62 = arith.constant 0 : index
    %c0_63 = arith.constant 0 : index
    %138 = vector.load %arg14[%c0_61, %c0_62, %c0_63] : memref<4x1x32xf32, #tpu.memory_space<vmem>>, vector<1x1x32xf32>
    %139 = vector.shape_cast %138 : vector<1x1x32xf32> to vector<1x32xf32>
    %140 = vector.broadcast %139 : vector<1x32xf32> to vector<8x32xf32>
    %141 = arith.addf %137, %140 : vector<8x32xf32>
    %142 = arith.addf %141, %112 : vector<8x32xf32>
    %c0_64 = arith.constant 0 : index
    %c0_65 = arith.constant 0 : index
    %c0_66 = arith.constant 0 : index
    %143 = vector.load %arg15[%c0_64, %c0_65, %c0_66] : memref<4x1x32xf32, #tpu.memory_space<vmem>>, vector<1x1x32xf32>
    %144 = vector.shape_cast %143 : vector<1x1x32xf32> to vector<1x32xf32>
    %c0_67 = arith.constant 0 : index
    %c0_68 = arith.constant 0 : index
    %c0_69 = arith.constant 0 : index
    %145 = vector.load %arg16[%c0_67, %c0_68, %c0_69] : memref<4x1x32xf32, #tpu.memory_space<vmem>>, vector<1x1x32xf32>
    %146 = vector.shape_cast %145 : vector<1x1x32xf32> to vector<1x32xf32>
    %cst_70 = arith.constant dense<0.000000e+00> : vector<8xf32>
    %147 = vector.multi_reduction <add>, %142, %cst_70 [1] : vector<8x32xf32> to vector<8xf32>
    %148 = vector.shape_cast %147 : vector<8xf32> to vector<8x1xf32>
    %cst_71 = arith.constant 3.200000e+01 : f32
    %149 = vector.broadcast %cst_71 : f32 to vector<8x1xf32>
    %150 = arith.divf %148, %149 : vector<8x1xf32>
    %151 = arith.mulf %142, %142 : vector<8x32xf32>
    %cst_72 = arith.constant dense<0.000000e+00> : vector<8xf32>
    %152 = vector.multi_reduction <add>, %151, %cst_72 [1] : vector<8x32xf32> to vector<8xf32>
    %153 = vector.shape_cast %152 : vector<8xf32> to vector<8x1xf32>
    %cst_73 = arith.constant 3.200000e+01 : f32
    %154 = vector.broadcast %cst_73 : f32 to vector<8x1xf32>
    %155 = arith.divf %153, %154 : vector<8x1xf32>
    %156 = arith.mulf %150, %150 : vector<8x1xf32>
    %157 = arith.subf %155, %156 : vector<8x1xf32>
    %158 = vector.broadcast %150 : vector<8x1xf32> to vector<8x32xf32>
    %159 = arith.subf %142, %158 : vector<8x32xf32>
    %cst_74 = arith.constant 9.99999974E-6 : f32
    %160 = vector.broadcast %cst_74 : f32 to vector<8x1xf32>
    %161 = arith.addf %157, %160 : vector<8x1xf32>
    %162 = math.rsqrt %161 : vector<8x1xf32>
    %163 = vector.broadcast %162 : vector<8x1xf32> to vector<8x32xf32>
    %164 = arith.mulf %159, %163 : vector<8x32xf32>
    %165 = vector.broadcast %144 : vector<1x32xf32> to vector<8x32xf32>
    %166 = arith.mulf %164, %165 : vector<8x32xf32>
    %167 = vector.broadcast %146 : vector<1x32xf32> to vector<8x32xf32>
    %168 = arith.addf %166, %167 : vector<8x32xf32>
    %169 = arith.addf %31, %168 : vector<8x32xf32>
    %170 = arith.truncf %168 : vector<8x32xf32> to vector<8x32xbf16>
    %c1 = arith.constant 1 : index
    %c0_75 = arith.constant 0 : index
    %c0_76 = arith.constant 0 : index
    %171 = vector.load %arg5[%c1, %c0_75, %c0_76] : memref<4x32x128xbf16, #tpu.memory_space<vmem>>, vector<1x32x128xbf16>
    %172 = vector.shape_cast %171 : vector<1x32x128xbf16> to vector<32x128xbf16>
    %cst_77 = arith.constant dense<0.000000e+00> : vector<8x128xf32>
    %173 = tpu.matmul %170, %172, %cst_77 {dimension_numbers = #tpu.dot_dimension_numbers<[1], [0], [0], [1], [0, 0, 1, 1], [], []>} : vector<8x32xbf16>, vector<32x128xbf16>, vector<8x128xf32> -> vector<8x128xf32>
    %c1_78 = arith.constant 1 : index
    %c0_79 = arith.constant 0 : index
    %c0_80 = arith.constant 0 : index
    %174 = vector.load %arg6[%c1_78, %c0_79, %c0_80] : memref<4x1x128xf32, #tpu.memory_space<vmem>>, vector<1x1x128xf32>
    %175 = vector.shape_cast %174 : vector<1x1x128xf32> to vector<1x128xf32>
    %176 = vector.broadcast %175 : vector<1x128xf32> to vector<8x128xf32>
    %177 = arith.addf %173, %176 : vector<8x128xf32>
    %178 = arith.truncf %177 : vector<8x128xf32> to vector<8x128xbf16>
    %179 = vector.extract_strided_slice %178 {offsets = [0, 0], sizes = [8, 16], strides = [1, 1]} : vector<8x128xbf16> to vector<8x16xbf16>
    %180 = vector.extract_strided_slice %178 {offsets = [0, 32], sizes = [8, 16], strides = [1, 1]} : vector<8x128xbf16> to vector<8x16xbf16>
    %181 = vector.extract_strided_slice %178 {offsets = [0, 64], sizes = [8, 16], strides = [1, 1]} : vector<8x128xbf16> to vector<8x16xbf16>
    %cst_81 = arith.constant dense<0.000000e+00> : vector<8x8xf32>
    %182 = tpu.matmul %179, %180, %cst_81 {dimension_numbers = #tpu.dot_dimension_numbers<[1], [1], [0], [0], [0, 0, 1, 0], [], []>} : vector<8x16xbf16>, vector<8x16xbf16>, vector<8x8xf32> -> vector<8x8xf32>
    %183 = vector.broadcast %5 : vector<1x8xf32> to vector<8x8xf32>
    %184 = arith.addf %182, %183 : vector<8x8xf32>
    %cst_82 = arith.constant dense<0xFF800000> : vector<8xf32>
    %185 = vector.multi_reduction <maximumf>, %184, %cst_82 [1] : vector<8x8xf32> to vector<8xf32>
    %186 = vector.shape_cast %185 : vector<8xf32> to vector<8x1xf32>
    %187 = vector.broadcast %186 : vector<8x1xf32> to vector<8x8xf32>
    %188 = arith.subf %184, %187 : vector<8x8xf32>
    %189 = math.exp %188 : vector<8x8xf32>
    %cst_83 = arith.constant dense<0.000000e+00> : vector<8xf32>
    %190 = vector.multi_reduction <add>, %189, %cst_83 [1] : vector<8x8xf32> to vector<8xf32>
    %191 = vector.shape_cast %190 : vector<8xf32> to vector<8x1xf32>
    %192 = tpu.reciprocal %191 {approx = true} : vector<8x1xf32> -> vector<8x1xf32>
    %193 = vector.broadcast %192 : vector<8x1xf32> to vector<8x8xf32>
    %194 = arith.mulf %189, %193 : vector<8x8xf32>
    %195 = arith.truncf %194 : vector<8x8xf32> to vector<8x8xbf16>
    %cst_84 = arith.constant dense<0.000000e+00> : vector<8x16xf32>
    %196 = tpu.matmul %195, %181, %cst_84 {dimension_numbers = #tpu.dot_dimension_numbers<[1], [0], [0], [1], [0, 0, 1, 1], [], []>} : vector<8x8xbf16>, vector<8x16xbf16>, vector<8x16xf32> -> vector<8x16xf32>
    %197 = vector.extract_strided_slice %178 {offsets = [0, 16], sizes = [8, 16], strides = [1, 1]} : vector<8x128xbf16> to vector<8x16xbf16>
    %198 = vector.extract_strided_slice %178 {offsets = [0, 48], sizes = [8, 16], strides = [1, 1]} : vector<8x128xbf16> to vector<8x16xbf16>
    %199 = vector.extract_strided_slice %178 {offsets = [0, 80], sizes = [8, 16], strides = [1, 1]} : vector<8x128xbf16> to vector<8x16xbf16>
    %cst_85 = arith.constant dense<0.000000e+00> : vector<8x8xf32>
    %200 = tpu.matmul %197, %198, %cst_85 {dimension_numbers = #tpu.dot_dimension_numbers<[1], [1], [0], [0], [0, 0, 1, 0], [], []>} : vector<8x16xbf16>, vector<8x16xbf16>, vector<8x8xf32> -> vector<8x8xf32>
    %201 = vector.broadcast %5 : vector<1x8xf32> to vector<8x8xf32>
    %202 = arith.addf %200, %201 : vector<8x8xf32>
    %cst_86 = arith.constant dense<0xFF800000> : vector<8xf32>
    %203 = vector.multi_reduction <maximumf>, %202, %cst_86 [1] : vector<8x8xf32> to vector<8xf32>
    %204 = vector.shape_cast %203 : vector<8xf32> to vector<8x1xf32>
    %205 = vector.broadcast %204 : vector<8x1xf32> to vector<8x8xf32>
    %206 = arith.subf %202, %205 : vector<8x8xf32>
    %207 = math.exp %206 : vector<8x8xf32>
    %cst_87 = arith.constant dense<0.000000e+00> : vector<8xf32>
    %208 = vector.multi_reduction <add>, %207, %cst_87 [1] : vector<8x8xf32> to vector<8xf32>
    %209 = vector.shape_cast %208 : vector<8xf32> to vector<8x1xf32>
    %210 = tpu.reciprocal %209 {approx = true} : vector<8x1xf32> -> vector<8x1xf32>
    %211 = vector.broadcast %210 : vector<8x1xf32> to vector<8x8xf32>
    %212 = arith.mulf %207, %211 : vector<8x8xf32>
    %213 = arith.truncf %212 : vector<8x8xf32> to vector<8x8xbf16>
    %cst_88 = arith.constant dense<0.000000e+00> : vector<8x16xf32>
    %214 = tpu.matmul %213, %199, %cst_88 {dimension_numbers = #tpu.dot_dimension_numbers<[1], [0], [0], [1], [0, 0, 1, 1], [], []>} : vector<8x8xbf16>, vector<8x16xbf16>, vector<8x16xf32> -> vector<8x16xf32>
    %215 = tpu.concatenate %196, %214 in 1 : vector<8x16xf32>, vector<8x16xf32> -> vector<8x32xf32>
    %216 = arith.truncf %215 : vector<8x32xf32> to vector<8x32xbf16>
    %c1_89 = arith.constant 1 : index
    %c0_90 = arith.constant 0 : index
    %c0_91 = arith.constant 0 : index
    %217 = vector.load %arg7[%c1_89, %c0_90, %c0_91] : memref<4x32x32xbf16, #tpu.memory_space<vmem>>, vector<1x32x32xbf16>
    %218 = vector.shape_cast %217 : vector<1x32x32xbf16> to vector<32x32xbf16>
    %cst_92 = arith.constant dense<0.000000e+00> : vector<8x32xf32>
    %219 = tpu.matmul %216, %218, %cst_92 {dimension_numbers = #tpu.dot_dimension_numbers<[1], [0], [0], [1], [0, 0, 1, 1], [], []>} : vector<8x32xbf16>, vector<32x32xbf16>, vector<8x32xf32> -> vector<8x32xf32>
    %c1_93 = arith.constant 1 : index
    %c0_94 = arith.constant 0 : index
    %c0_95 = arith.constant 0 : index
    %220 = vector.load %arg8[%c1_93, %c0_94, %c0_95] : memref<4x1x32xf32, #tpu.memory_space<vmem>>, vector<1x1x32xf32>
    %221 = vector.shape_cast %220 : vector<1x1x32xf32> to vector<1x32xf32>
    %222 = vector.broadcast %221 : vector<1x32xf32> to vector<8x32xf32>
    %223 = arith.addf %219, %222 : vector<8x32xf32>
    %224 = arith.addf %223, %168 : vector<8x32xf32>
    %c1_96 = arith.constant 1 : index
    %c0_97 = arith.constant 0 : index
    %c0_98 = arith.constant 0 : index
    %225 = vector.load %arg9[%c1_96, %c0_97, %c0_98] : memref<4x1x32xf32, #tpu.memory_space<vmem>>, vector<1x1x32xf32>
    %226 = vector.shape_cast %225 : vector<1x1x32xf32> to vector<1x32xf32>
    %c1_99 = arith.constant 1 : index
    %c0_100 = arith.constant 0 : index
    %c0_101 = arith.constant 0 : index
    %227 = vector.load %arg10[%c1_99, %c0_100, %c0_101] : memref<4x1x32xf32, #tpu.memory_space<vmem>>, vector<1x1x32xf32>
    %228 = vector.shape_cast %227 : vector<1x1x32xf32> to vector<1x32xf32>
    %cst_102 = arith.constant dense<0.000000e+00> : vector<8xf32>
    %229 = vector.multi_reduction <add>, %224, %cst_102 [1] : vector<8x32xf32> to vector<8xf32>
    %230 = vector.shape_cast %229 : vector<8xf32> to vector<8x1xf32>
    %cst_103 = arith.constant 3.200000e+01 : f32
    %231 = vector.broadcast %cst_103 : f32 to vector<8x1xf32>
    %232 = arith.divf %230, %231 : vector<8x1xf32>
    %233 = arith.mulf %224, %224 : vector<8x32xf32>
    %cst_104 = arith.constant dense<0.000000e+00> : vector<8xf32>
    %234 = vector.multi_reduction <add>, %233, %cst_104 [1] : vector<8x32xf32> to vector<8xf32>
    %235 = vector.shape_cast %234 : vector<8xf32> to vector<8x1xf32>
    %cst_105 = arith.constant 3.200000e+01 : f32
    %236 = vector.broadcast %cst_105 : f32 to vector<8x1xf32>
    %237 = arith.divf %235, %236 : vector<8x1xf32>
    %238 = arith.mulf %232, %232 : vector<8x1xf32>
    %239 = arith.subf %237, %238 : vector<8x1xf32>
    %240 = vector.broadcast %232 : vector<8x1xf32> to vector<8x32xf32>
    %241 = arith.subf %224, %240 : vector<8x32xf32>
    %cst_106 = arith.constant 9.99999974E-6 : f32
    %242 = vector.broadcast %cst_106 : f32 to vector<8x1xf32>
    %243 = arith.addf %239, %242 : vector<8x1xf32>
    %244 = math.rsqrt %243 : vector<8x1xf32>
    %245 = vector.broadcast %244 : vector<8x1xf32> to vector<8x32xf32>
    %246 = arith.mulf %241, %245 : vector<8x32xf32>
    %247 = vector.broadcast %226 : vector<1x32xf32> to vector<8x32xf32>
    %248 = arith.mulf %246, %247 : vector<8x32xf32>
    %249 = vector.broadcast %228 : vector<1x32xf32> to vector<8x32xf32>
    %250 = arith.addf %248, %249 : vector<8x32xf32>
    %251 = arith.truncf %250 : vector<8x32xf32> to vector<8x32xbf16>
    %c1_107 = arith.constant 1 : index
    %c0_108 = arith.constant 0 : index
    %c0_109 = arith.constant 0 : index
    %252 = vector.load %arg11[%c1_107, %c0_108, %c0_109] : memref<4x32x64xbf16, #tpu.memory_space<vmem>>, vector<1x32x64xbf16>
    %253 = vector.shape_cast %252 : vector<1x32x64xbf16> to vector<32x64xbf16>
    %cst_110 = arith.constant dense<0.000000e+00> : vector<8x64xf32>
    %254 = tpu.matmul %251, %253, %cst_110 {dimension_numbers = #tpu.dot_dimension_numbers<[1], [0], [0], [1], [0, 0, 1, 1], [], []>} : vector<8x32xbf16>, vector<32x64xbf16>, vector<8x64xf32> -> vector<8x64xf32>
    %c1_111 = arith.constant 1 : index
    %c0_112 = arith.constant 0 : index
    %c0_113 = arith.constant 0 : index
    %255 = vector.load %arg12[%c1_111, %c0_112, %c0_113] : memref<4x1x64xf32, #tpu.memory_space<vmem>>, vector<1x1x64xf32>
    %256 = vector.shape_cast %255 : vector<1x1x64xf32> to vector<1x64xf32>
    %257 = vector.broadcast %256 : vector<1x64xf32> to vector<8x64xf32>
    %258 = arith.addf %254, %257 : vector<8x64xf32>
    %cst_114 = arith.constant 5.000000e-01 : f32
    %259 = vector.broadcast %cst_114 : f32 to vector<8x64xf32>
    %260 = arith.mulf %259, %258 : vector<8x64xf32>
    %cst_115 = arith.constant 4.471500e-02 : f32
    %261 = vector.broadcast %cst_115 : f32 to vector<8x64xf32>
    %262 = arith.mulf %261, %258 : vector<8x64xf32>
    %263 = arith.mulf %262, %258 : vector<8x64xf32>
    %264 = arith.mulf %263, %258 : vector<8x64xf32>
    %265 = arith.addf %258, %264 : vector<8x64xf32>
    %cst_116 = arith.constant 0.797884583 : f32
    %266 = vector.broadcast %cst_116 : f32 to vector<8x64xf32>
    %267 = arith.mulf %266, %265 : vector<8x64xf32>
    %268 = math.tanh %267 : vector<8x64xf32>
    %cst_117 = arith.constant 1.000000e+00 : f32
    %269 = vector.broadcast %cst_117 : f32 to vector<8x64xf32>
    %270 = arith.addf %269, %268 : vector<8x64xf32>
    %271 = arith.mulf %260, %270 : vector<8x64xf32>
    %272 = arith.truncf %271 : vector<8x64xf32> to vector<8x64xbf16>
    %c1_118 = arith.constant 1 : index
    %c0_119 = arith.constant 0 : index
    %c0_120 = arith.constant 0 : index
    %273 = vector.load %arg13[%c1_118, %c0_119, %c0_120] : memref<4x64x32xbf16, #tpu.memory_space<vmem>>, vector<1x64x32xbf16>
    %274 = vector.shape_cast %273 : vector<1x64x32xbf16> to vector<64x32xbf16>
    %cst_121 = arith.constant dense<0.000000e+00> : vector<8x32xf32>
    %275 = tpu.matmul %272, %274, %cst_121 {dimension_numbers = #tpu.dot_dimension_numbers<[1], [0], [0], [1], [0, 0, 1, 1], [], []>} : vector<8x64xbf16>, vector<64x32xbf16>, vector<8x32xf32> -> vector<8x32xf32>
    %c1_122 = arith.constant 1 : index
    %c0_123 = arith.constant 0 : index
    %c0_124 = arith.constant 0 : index
    %276 = vector.load %arg14[%c1_122, %c0_123, %c0_124] : memref<4x1x32xf32, #tpu.memory_space<vmem>>, vector<1x1x32xf32>
    %277 = vector.shape_cast %276 : vector<1x1x32xf32> to vector<1x32xf32>
    %278 = vector.broadcast %277 : vector<1x32xf32> to vector<8x32xf32>
    %279 = arith.addf %275, %278 : vector<8x32xf32>
    %280 = arith.addf %279, %250 : vector<8x32xf32>
    %c1_125 = arith.constant 1 : index
    %c0_126 = arith.constant 0 : index
    %c0_127 = arith.constant 0 : index
    %281 = vector.load %arg15[%c1_125, %c0_126, %c0_127] : memref<4x1x32xf32, #tpu.memory_space<vmem>>, vector<1x1x32xf32>
    %282 = vector.shape_cast %281 : vector<1x1x32xf32> to vector<1x32xf32>
    %c1_128 = arith.constant 1 : index
    %c0_129 = arith.constant 0 : index
    %c0_130 = arith.constant 0 : index
    %283 = vector.load %arg16[%c1_128, %c0_129, %c0_130] : memref<4x1x32xf32, #tpu.memory_space<vmem>>, vector<1x1x32xf32>
    %284 = vector.shape_cast %283 : vector<1x1x32xf32> to vector<1x32xf32>
    %cst_131 = arith.constant dense<0.000000e+00> : vector<8xf32>
    %285 = vector.multi_reduction <add>, %280, %cst_131 [1] : vector<8x32xf32> to vector<8xf32>
    %286 = vector.shape_cast %285 : vector<8xf32> to vector<8x1xf32>
    %cst_132 = arith.constant 3.200000e+01 : f32
    %287 = vector.broadcast %cst_132 : f32 to vector<8x1xf32>
    %288 = arith.divf %286, %287 : vector<8x1xf32>
    %289 = arith.mulf %280, %280 : vector<8x32xf32>
    %cst_133 = arith.constant dense<0.000000e+00> : vector<8xf32>
    %290 = vector.multi_reduction <add>, %289, %cst_133 [1] : vector<8x32xf32> to vector<8xf32>
    %291 = vector.shape_cast %290 : vector<8xf32> to vector<8x1xf32>
    %cst_134 = arith.constant 3.200000e+01 : f32
    %292 = vector.broadcast %cst_134 : f32 to vector<8x1xf32>
    %293 = arith.divf %291, %292 : vector<8x1xf32>
    %294 = arith.mulf %288, %288 : vector<8x1xf32>
    %295 = arith.subf %293, %294 : vector<8x1xf32>
    %296 = vector.broadcast %288 : vector<8x1xf32> to vector<8x32xf32>
    %297 = arith.subf %280, %296 : vector<8x32xf32>
    %cst_135 = arith.constant 9.99999974E-6 : f32
    %298 = vector.broadcast %cst_135 : f32 to vector<8x1xf32>
    %299 = arith.addf %295, %298 : vector<8x1xf32>
    %300 = math.rsqrt %299 : vector<8x1xf32>
    %301 = vector.broadcast %300 : vector<8x1xf32> to vector<8x32xf32>
    %302 = arith.mulf %297, %301 : vector<8x32xf32>
    %303 = vector.broadcast %282 : vector<1x32xf32> to vector<8x32xf32>
    %304 = arith.mulf %302, %303 : vector<8x32xf32>
    %305 = vector.broadcast %284 : vector<1x32xf32> to vector<8x32xf32>
    %306 = arith.addf %304, %305 : vector<8x32xf32>
    %307 = arith.addf %169, %306 : vector<8x32xf32>
    %308 = arith.truncf %306 : vector<8x32xf32> to vector<8x32xbf16>
    %c2 = arith.constant 2 : index
    %c0_136 = arith.constant 0 : index
    %c0_137 = arith.constant 0 : index
    %309 = vector.load %arg5[%c2, %c0_136, %c0_137] : memref<4x32x128xbf16, #tpu.memory_space<vmem>>, vector<1x32x128xbf16>
    %310 = vector.shape_cast %309 : vector<1x32x128xbf16> to vector<32x128xbf16>
    %cst_138 = arith.constant dense<0.000000e+00> : vector<8x128xf32>
    %311 = tpu.matmul %308, %310, %cst_138 {dimension_numbers = #tpu.dot_dimension_numbers<[1], [0], [0], [1], [0, 0, 1, 1], [], []>} : vector<8x32xbf16>, vector<32x128xbf16>, vector<8x128xf32> -> vector<8x128xf32>
    %c2_139 = arith.constant 2 : index
    %c0_140 = arith.constant 0 : index
    %c0_141 = arith.constant 0 : index
    %312 = vector.load %arg6[%c2_139, %c0_140, %c0_141] : memref<4x1x128xf32, #tpu.memory_space<vmem>>, vector<1x1x128xf32>
    %313 = vector.shape_cast %312 : vector<1x1x128xf32> to vector<1x128xf32>
    %314 = vector.broadcast %313 : vector<1x128xf32> to vector<8x128xf32>
    %315 = arith.addf %311, %314 : vector<8x128xf32>
    %316 = arith.truncf %315 : vector<8x128xf32> to vector<8x128xbf16>
    %317 = vector.extract_strided_slice %316 {offsets = [0, 0], sizes = [8, 16], strides = [1, 1]} : vector<8x128xbf16> to vector<8x16xbf16>
    %318 = vector.extract_strided_slice %316 {offsets = [0, 32], sizes = [8, 16], strides = [1, 1]} : vector<8x128xbf16> to vector<8x16xbf16>
    %319 = vector.extract_strided_slice %316 {offsets = [0, 64], sizes = [8, 16], strides = [1, 1]} : vector<8x128xbf16> to vector<8x16xbf16>
    %cst_142 = arith.constant dense<0.000000e+00> : vector<8x8xf32>
    %320 = tpu.matmul %317, %318, %cst_142 {dimension_numbers = #tpu.dot_dimension_numbers<[1], [1], [0], [0], [0, 0, 1, 0], [], []>} : vector<8x16xbf16>, vector<8x16xbf16>, vector<8x8xf32> -> vector<8x8xf32>
    %321 = vector.broadcast %5 : vector<1x8xf32> to vector<8x8xf32>
    %322 = arith.addf %320, %321 : vector<8x8xf32>
    %cst_143 = arith.constant dense<0xFF800000> : vector<8xf32>
    %323 = vector.multi_reduction <maximumf>, %322, %cst_143 [1] : vector<8x8xf32> to vector<8xf32>
    %324 = vector.shape_cast %323 : vector<8xf32> to vector<8x1xf32>
    %325 = vector.broadcast %324 : vector<8x1xf32> to vector<8x8xf32>
    %326 = arith.subf %322, %325 : vector<8x8xf32>
    %327 = math.exp %326 : vector<8x8xf32>
    %cst_144 = arith.constant dense<0.000000e+00> : vector<8xf32>
    %328 = vector.multi_reduction <add>, %327, %cst_144 [1] : vector<8x8xf32> to vector<8xf32>
    %329 = vector.shape_cast %328 : vector<8xf32> to vector<8x1xf32>
    %330 = tpu.reciprocal %329 {approx = true} : vector<8x1xf32> -> vector<8x1xf32>
    %331 = vector.broadcast %330 : vector<8x1xf32> to vector<8x8xf32>
    %332 = arith.mulf %327, %331 : vector<8x8xf32>
    %333 = arith.truncf %332 : vector<8x8xf32> to vector<8x8xbf16>
    %cst_145 = arith.constant dense<0.000000e+00> : vector<8x16xf32>
    %334 = tpu.matmul %333, %319, %cst_145 {dimension_numbers = #tpu.dot_dimension_numbers<[1], [0], [0], [1], [0, 0, 1, 1], [], []>} : vector<8x8xbf16>, vector<8x16xbf16>, vector<8x16xf32> -> vector<8x16xf32>
    %335 = vector.extract_strided_slice %316 {offsets = [0, 16], sizes = [8, 16], strides = [1, 1]} : vector<8x128xbf16> to vector<8x16xbf16>
    %336 = vector.extract_strided_slice %316 {offsets = [0, 48], sizes = [8, 16], strides = [1, 1]} : vector<8x128xbf16> to vector<8x16xbf16>
    %337 = vector.extract_strided_slice %316 {offsets = [0, 80], sizes = [8, 16], strides = [1, 1]} : vector<8x128xbf16> to vector<8x16xbf16>
    %cst_146 = arith.constant dense<0.000000e+00> : vector<8x8xf32>
    %338 = tpu.matmul %335, %336, %cst_146 {dimension_numbers = #tpu.dot_dimension_numbers<[1], [1], [0], [0], [0, 0, 1, 0], [], []>} : vector<8x16xbf16>, vector<8x16xbf16>, vector<8x8xf32> -> vector<8x8xf32>
    %339 = vector.broadcast %5 : vector<1x8xf32> to vector<8x8xf32>
    %340 = arith.addf %338, %339 : vector<8x8xf32>
    %cst_147 = arith.constant dense<0xFF800000> : vector<8xf32>
    %341 = vector.multi_reduction <maximumf>, %340, %cst_147 [1] : vector<8x8xf32> to vector<8xf32>
    %342 = vector.shape_cast %341 : vector<8xf32> to vector<8x1xf32>
    %343 = vector.broadcast %342 : vector<8x1xf32> to vector<8x8xf32>
    %344 = arith.subf %340, %343 : vector<8x8xf32>
    %345 = math.exp %344 : vector<8x8xf32>
    %cst_148 = arith.constant dense<0.000000e+00> : vector<8xf32>
    %346 = vector.multi_reduction <add>, %345, %cst_148 [1] : vector<8x8xf32> to vector<8xf32>
    %347 = vector.shape_cast %346 : vector<8xf32> to vector<8x1xf32>
    %348 = tpu.reciprocal %347 {approx = true} : vector<8x1xf32> -> vector<8x1xf32>
    %349 = vector.broadcast %348 : vector<8x1xf32> to vector<8x8xf32>
    %350 = arith.mulf %345, %349 : vector<8x8xf32>
    %351 = arith.truncf %350 : vector<8x8xf32> to vector<8x8xbf16>
    %cst_149 = arith.constant dense<0.000000e+00> : vector<8x16xf32>
    %352 = tpu.matmul %351, %337, %cst_149 {dimension_numbers = #tpu.dot_dimension_numbers<[1], [0], [0], [1], [0, 0, 1, 1], [], []>} : vector<8x8xbf16>, vector<8x16xbf16>, vector<8x16xf32> -> vector<8x16xf32>
    %353 = tpu.concatenate %334, %352 in 1 : vector<8x16xf32>, vector<8x16xf32> -> vector<8x32xf32>
    %354 = arith.truncf %353 : vector<8x32xf32> to vector<8x32xbf16>
    %c2_150 = arith.constant 2 : index
    %c0_151 = arith.constant 0 : index
    %c0_152 = arith.constant 0 : index
    %355 = vector.load %arg7[%c2_150, %c0_151, %c0_152] : memref<4x32x32xbf16, #tpu.memory_space<vmem>>, vector<1x32x32xbf16>
    %356 = vector.shape_cast %355 : vector<1x32x32xbf16> to vector<32x32xbf16>
    %cst_153 = arith.constant dense<0.000000e+00> : vector<8x32xf32>
    %357 = tpu.matmul %354, %356, %cst_153 {dimension_numbers = #tpu.dot_dimension_numbers<[1], [0], [0], [1], [0, 0, 1, 1], [], []>} : vector<8x32xbf16>, vector<32x32xbf16>, vector<8x32xf32> -> vector<8x32xf32>
    %c2_154 = arith.constant 2 : index
    %c0_155 = arith.constant 0 : index
    %c0_156 = arith.constant 0 : index
    %358 = vector.load %arg8[%c2_154, %c0_155, %c0_156] : memref<4x1x32xf32, #tpu.memory_space<vmem>>, vector<1x1x32xf32>
    %359 = vector.shape_cast %358 : vector<1x1x32xf32> to vector<1x32xf32>
    %360 = vector.broadcast %359 : vector<1x32xf32> to vector<8x32xf32>
    %361 = arith.addf %357, %360 : vector<8x32xf32>
    %362 = arith.addf %361, %306 : vector<8x32xf32>
    %c2_157 = arith.constant 2 : index
    %c0_158 = arith.constant 0 : index
    %c0_159 = arith.constant 0 : index
    %363 = vector.load %arg9[%c2_157, %c0_158, %c0_159] : memref<4x1x32xf32, #tpu.memory_space<vmem>>, vector<1x1x32xf32>
    %364 = vector.shape_cast %363 : vector<1x1x32xf32> to vector<1x32xf32>
    %c2_160 = arith.constant 2 : index
    %c0_161 = arith.constant 0 : index
    %c0_162 = arith.constant 0 : index
    %365 = vector.load %arg10[%c2_160, %c0_161, %c0_162] : memref<4x1x32xf32, #tpu.memory_space<vmem>>, vector<1x1x32xf32>
    %366 = vector.shape_cast %365 : vector<1x1x32xf32> to vector<1x32xf32>
    %cst_163 = arith.constant dense<0.000000e+00> : vector<8xf32>
    %367 = vector.multi_reduction <add>, %362, %cst_163 [1] : vector<8x32xf32> to vector<8xf32>
    %368 = vector.shape_cast %367 : vector<8xf32> to vector<8x1xf32>
    %cst_164 = arith.constant 3.200000e+01 : f32
    %369 = vector.broadcast %cst_164 : f32 to vector<8x1xf32>
    %370 = arith.divf %368, %369 : vector<8x1xf32>
    %371 = arith.mulf %362, %362 : vector<8x32xf32>
    %cst_165 = arith.constant dense<0.000000e+00> : vector<8xf32>
    %372 = vector.multi_reduction <add>, %371, %cst_165 [1] : vector<8x32xf32> to vector<8xf32>
    %373 = vector.shape_cast %372 : vector<8xf32> to vector<8x1xf32>
    %cst_166 = arith.constant 3.200000e+01 : f32
    %374 = vector.broadcast %cst_166 : f32 to vector<8x1xf32>
    %375 = arith.divf %373, %374 : vector<8x1xf32>
    %376 = arith.mulf %370, %370 : vector<8x1xf32>
    %377 = arith.subf %375, %376 : vector<8x1xf32>
    %378 = vector.broadcast %370 : vector<8x1xf32> to vector<8x32xf32>
    %379 = arith.subf %362, %378 : vector<8x32xf32>
    %cst_167 = arith.constant 9.99999974E-6 : f32
    %380 = vector.broadcast %cst_167 : f32 to vector<8x1xf32>
    %381 = arith.addf %377, %380 : vector<8x1xf32>
    %382 = math.rsqrt %381 : vector<8x1xf32>
    %383 = vector.broadcast %382 : vector<8x1xf32> to vector<8x32xf32>
    %384 = arith.mulf %379, %383 : vector<8x32xf32>
    %385 = vector.broadcast %364 : vector<1x32xf32> to vector<8x32xf32>
    %386 = arith.mulf %384, %385 : vector<8x32xf32>
    %387 = vector.broadcast %366 : vector<1x32xf32> to vector<8x32xf32>
    %388 = arith.addf %386, %387 : vector<8x32xf32>
    %389 = arith.truncf %388 : vector<8x32xf32> to vector<8x32xbf16>
    %c2_168 = arith.constant 2 : index
    %c0_169 = arith.constant 0 : index
    %c0_170 = arith.constant 0 : index
    %390 = vector.load %arg11[%c2_168, %c0_169, %c0_170] : memref<4x32x64xbf16, #tpu.memory_space<vmem>>, vector<1x32x64xbf16>
    %391 = vector.shape_cast %390 : vector<1x32x64xbf16> to vector<32x64xbf16>
    %cst_171 = arith.constant dense<0.000000e+00> : vector<8x64xf32>
    %392 = tpu.matmul %389, %391, %cst_171 {dimension_numbers = #tpu.dot_dimension_numbers<[1], [0], [0], [1], [0, 0, 1, 1], [], []>} : vector<8x32xbf16>, vector<32x64xbf16>, vector<8x64xf32> -> vector<8x64xf32>
    %c2_172 = arith.constant 2 : index
    %c0_173 = arith.constant 0 : index
    %c0_174 = arith.constant 0 : index
    %393 = vector.load %arg12[%c2_172, %c0_173, %c0_174] : memref<4x1x64xf32, #tpu.memory_space<vmem>>, vector<1x1x64xf32>
    %394 = vector.shape_cast %393 : vector<1x1x64xf32> to vector<1x64xf32>
    %395 = vector.broadcast %394 : vector<1x64xf32> to vector<8x64xf32>
    %396 = arith.addf %392, %395 : vector<8x64xf32>
    %cst_175 = arith.constant 5.000000e-01 : f32
    %397 = vector.broadcast %cst_175 : f32 to vector<8x64xf32>
    %398 = arith.mulf %397, %396 : vector<8x64xf32>
    %cst_176 = arith.constant 4.471500e-02 : f32
    %399 = vector.broadcast %cst_176 : f32 to vector<8x64xf32>
    %400 = arith.mulf %399, %396 : vector<8x64xf32>
    %401 = arith.mulf %400, %396 : vector<8x64xf32>
    %402 = arith.mulf %401, %396 : vector<8x64xf32>
    %403 = arith.addf %396, %402 : vector<8x64xf32>
    %cst_177 = arith.constant 0.797884583 : f32
    %404 = vector.broadcast %cst_177 : f32 to vector<8x64xf32>
    %405 = arith.mulf %404, %403 : vector<8x64xf32>
    %406 = math.tanh %405 : vector<8x64xf32>
    %cst_178 = arith.constant 1.000000e+00 : f32
    %407 = vector.broadcast %cst_178 : f32 to vector<8x64xf32>
    %408 = arith.addf %407, %406 : vector<8x64xf32>
    %409 = arith.mulf %398, %408 : vector<8x64xf32>
    %410 = arith.truncf %409 : vector<8x64xf32> to vector<8x64xbf16>
    %c2_179 = arith.constant 2 : index
    %c0_180 = arith.constant 0 : index
    %c0_181 = arith.constant 0 : index
    %411 = vector.load %arg13[%c2_179, %c0_180, %c0_181] : memref<4x64x32xbf16, #tpu.memory_space<vmem>>, vector<1x64x32xbf16>
    %412 = vector.shape_cast %411 : vector<1x64x32xbf16> to vector<64x32xbf16>
    %cst_182 = arith.constant dense<0.000000e+00> : vector<8x32xf32>
    %413 = tpu.matmul %410, %412, %cst_182 {dimension_numbers = #tpu.dot_dimension_numbers<[1], [0], [0], [1], [0, 0, 1, 1], [], []>} : vector<8x64xbf16>, vector<64x32xbf16>, vector<8x32xf32> -> vector<8x32xf32>
    %c2_183 = arith.constant 2 : index
    %c0_184 = arith.constant 0 : index
    %c0_185 = arith.constant 0 : index
    %414 = vector.load %arg14[%c2_183, %c0_184, %c0_185] : memref<4x1x32xf32, #tpu.memory_space<vmem>>, vector<1x1x32xf32>
    %415 = vector.shape_cast %414 : vector<1x1x32xf32> to vector<1x32xf32>
    %416 = vector.broadcast %415 : vector<1x32xf32> to vector<8x32xf32>
    %417 = arith.addf %413, %416 : vector<8x32xf32>
    %418 = arith.addf %417, %388 : vector<8x32xf32>
    %c2_186 = arith.constant 2 : index
    %c0_187 = arith.constant 0 : index
    %c0_188 = arith.constant 0 : index
    %419 = vector.load %arg15[%c2_186, %c0_187, %c0_188] : memref<4x1x32xf32, #tpu.memory_space<vmem>>, vector<1x1x32xf32>
    %420 = vector.shape_cast %419 : vector<1x1x32xf32> to vector<1x32xf32>
    %c2_189 = arith.constant 2 : index
    %c0_190 = arith.constant 0 : index
    %c0_191 = arith.constant 0 : index
    %421 = vector.load %arg16[%c2_189, %c0_190, %c0_191] : memref<4x1x32xf32, #tpu.memory_space<vmem>>, vector<1x1x32xf32>
    %422 = vector.shape_cast %421 : vector<1x1x32xf32> to vector<1x32xf32>
    %cst_192 = arith.constant dense<0.000000e+00> : vector<8xf32>
    %423 = vector.multi_reduction <add>, %418, %cst_192 [1] : vector<8x32xf32> to vector<8xf32>
    %424 = vector.shape_cast %423 : vector<8xf32> to vector<8x1xf32>
    %cst_193 = arith.constant 3.200000e+01 : f32
    %425 = vector.broadcast %cst_193 : f32 to vector<8x1xf32>
    %426 = arith.divf %424, %425 : vector<8x1xf32>
    %427 = arith.mulf %418, %418 : vector<8x32xf32>
    %cst_194 = arith.constant dense<0.000000e+00> : vector<8xf32>
    %428 = vector.multi_reduction <add>, %427, %cst_194 [1] : vector<8x32xf32> to vector<8xf32>
    %429 = vector.shape_cast %428 : vector<8xf32> to vector<8x1xf32>
    %cst_195 = arith.constant 3.200000e+01 : f32
    %430 = vector.broadcast %cst_195 : f32 to vector<8x1xf32>
    %431 = arith.divf %429, %430 : vector<8x1xf32>
    %432 = arith.mulf %426, %426 : vector<8x1xf32>
    %433 = arith.subf %431, %432 : vector<8x1xf32>
    %434 = vector.broadcast %426 : vector<8x1xf32> to vector<8x32xf32>
    %435 = arith.subf %418, %434 : vector<8x32xf32>
    %cst_196 = arith.constant 9.99999974E-6 : f32
    %436 = vector.broadcast %cst_196 : f32 to vector<8x1xf32>
    %437 = arith.addf %433, %436 : vector<8x1xf32>
    %438 = math.rsqrt %437 : vector<8x1xf32>
    %439 = vector.broadcast %438 : vector<8x1xf32> to vector<8x32xf32>
    %440 = arith.mulf %435, %439 : vector<8x32xf32>
    %441 = vector.broadcast %420 : vector<1x32xf32> to vector<8x32xf32>
    %442 = arith.mulf %440, %441 : vector<8x32xf32>
    %443 = vector.broadcast %422 : vector<1x32xf32> to vector<8x32xf32>
    %444 = arith.addf %442, %443 : vector<8x32xf32>
    %445 = arith.addf %307, %444 : vector<8x32xf32>
    %446 = arith.truncf %444 : vector<8x32xf32> to vector<8x32xbf16>
    %c3 = arith.constant 3 : index
    %c0_197 = arith.constant 0 : index
    %c0_198 = arith.constant 0 : index
    %447 = vector.load %arg5[%c3, %c0_197, %c0_198] : memref<4x32x128xbf16, #tpu.memory_space<vmem>>, vector<1x32x128xbf16>
    %448 = vector.shape_cast %447 : vector<1x32x128xbf16> to vector<32x128xbf16>
    %cst_199 = arith.constant dense<0.000000e+00> : vector<8x128xf32>
    %449 = tpu.matmul %446, %448, %cst_199 {dimension_numbers = #tpu.dot_dimension_numbers<[1], [0], [0], [1], [0, 0, 1, 1], [], []>} : vector<8x32xbf16>, vector<32x128xbf16>, vector<8x128xf32> -> vector<8x128xf32>
    %c3_200 = arith.constant 3 : index
    %c0_201 = arith.constant 0 : index
    %c0_202 = arith.constant 0 : index
    %450 = vector.load %arg6[%c3_200, %c0_201, %c0_202] : memref<4x1x128xf32, #tpu.memory_space<vmem>>, vector<1x1x128xf32>
    %451 = vector.shape_cast %450 : vector<1x1x128xf32> to vector<1x128xf32>
    %452 = vector.broadcast %451 : vector<1x128xf32> to vector<8x128xf32>
    %453 = arith.addf %449, %452 : vector<8x128xf32>
    %454 = arith.truncf %453 : vector<8x128xf32> to vector<8x128xbf16>
    %455 = vector.extract_strided_slice %454 {offsets = [0, 0], sizes = [8, 16], strides = [1, 1]} : vector<8x128xbf16> to vector<8x16xbf16>
    %456 = vector.extract_strided_slice %454 {offsets = [0, 32], sizes = [8, 16], strides = [1, 1]} : vector<8x128xbf16> to vector<8x16xbf16>
    %457 = vector.extract_strided_slice %454 {offsets = [0, 64], sizes = [8, 16], strides = [1, 1]} : vector<8x128xbf16> to vector<8x16xbf16>
    %cst_203 = arith.constant dense<0.000000e+00> : vector<8x8xf32>
    %458 = tpu.matmul %455, %456, %cst_203 {dimension_numbers = #tpu.dot_dimension_numbers<[1], [1], [0], [0], [0, 0, 1, 0], [], []>} : vector<8x16xbf16>, vector<8x16xbf16>, vector<8x8xf32> -> vector<8x8xf32>
    %459 = vector.broadcast %5 : vector<1x8xf32> to vector<8x8xf32>
    %460 = arith.addf %458, %459 : vector<8x8xf32>
    %cst_204 = arith.constant dense<0xFF800000> : vector<8xf32>
    %461 = vector.multi_reduction <maximumf>, %460, %cst_204 [1] : vector<8x8xf32> to vector<8xf32>
    %462 = vector.shape_cast %461 : vector<8xf32> to vector<8x1xf32>
    %463 = vector.broadcast %462 : vector<8x1xf32> to vector<8x8xf32>
    %464 = arith.subf %460, %463 : vector<8x8xf32>
    %465 = math.exp %464 : vector<8x8xf32>
    %cst_205 = arith.constant dense<0.000000e+00> : vector<8xf32>
    %466 = vector.multi_reduction <add>, %465, %cst_205 [1] : vector<8x8xf32> to vector<8xf32>
    %467 = vector.shape_cast %466 : vector<8xf32> to vector<8x1xf32>
    %468 = tpu.reciprocal %467 {approx = true} : vector<8x1xf32> -> vector<8x1xf32>
    %469 = vector.broadcast %468 : vector<8x1xf32> to vector<8x8xf32>
    %470 = arith.mulf %465, %469 : vector<8x8xf32>
    %471 = arith.truncf %470 : vector<8x8xf32> to vector<8x8xbf16>
    %cst_206 = arith.constant dense<0.000000e+00> : vector<8x16xf32>
    %472 = tpu.matmul %471, %457, %cst_206 {dimension_numbers = #tpu.dot_dimension_numbers<[1], [0], [0], [1], [0, 0, 1, 1], [], []>} : vector<8x8xbf16>, vector<8x16xbf16>, vector<8x16xf32> -> vector<8x16xf32>
    %473 = vector.extract_strided_slice %454 {offsets = [0, 16], sizes = [8, 16], strides = [1, 1]} : vector<8x128xbf16> to vector<8x16xbf16>
    %474 = vector.extract_strided_slice %454 {offsets = [0, 48], sizes = [8, 16], strides = [1, 1]} : vector<8x128xbf16> to vector<8x16xbf16>
    %475 = vector.extract_strided_slice %454 {offsets = [0, 80], sizes = [8, 16], strides = [1, 1]} : vector<8x128xbf16> to vector<8x16xbf16>
    %cst_207 = arith.constant dense<0.000000e+00> : vector<8x8xf32>
    %476 = tpu.matmul %473, %474, %cst_207 {dimension_numbers = #tpu.dot_dimension_numbers<[1], [1], [0], [0], [0, 0, 1, 0], [], []>} : vector<8x16xbf16>, vector<8x16xbf16>, vector<8x8xf32> -> vector<8x8xf32>
    %477 = vector.broadcast %5 : vector<1x8xf32> to vector<8x8xf32>
    %478 = arith.addf %476, %477 : vector<8x8xf32>
    %cst_208 = arith.constant dense<0xFF800000> : vector<8xf32>
    %479 = vector.multi_reduction <maximumf>, %478, %cst_208 [1] : vector<8x8xf32> to vector<8xf32>
    %480 = vector.shape_cast %479 : vector<8xf32> to vector<8x1xf32>
    %481 = vector.broadcast %480 : vector<8x1xf32> to vector<8x8xf32>
    %482 = arith.subf %478, %481 : vector<8x8xf32>
    %483 = math.exp %482 : vector<8x8xf32>
    %cst_209 = arith.constant dense<0.000000e+00> : vector<8xf32>
    %484 = vector.multi_reduction <add>, %483, %cst_209 [1] : vector<8x8xf32> to vector<8xf32>
    %485 = vector.shape_cast %484 : vector<8xf32> to vector<8x1xf32>
    %486 = tpu.reciprocal %485 {approx = true} : vector<8x1xf32> -> vector<8x1xf32>
    %487 = vector.broadcast %486 : vector<8x1xf32> to vector<8x8xf32>
    %488 = arith.mulf %483, %487 : vector<8x8xf32>
    %489 = arith.truncf %488 : vector<8x8xf32> to vector<8x8xbf16>
    %cst_210 = arith.constant dense<0.000000e+00> : vector<8x16xf32>
    %490 = tpu.matmul %489, %475, %cst_210 {dimension_numbers = #tpu.dot_dimension_numbers<[1], [0], [0], [1], [0, 0, 1, 1], [], []>} : vector<8x8xbf16>, vector<8x16xbf16>, vector<8x16xf32> -> vector<8x16xf32>
    %491 = tpu.concatenate %472, %490 in 1 : vector<8x16xf32>, vector<8x16xf32> -> vector<8x32xf32>
    %492 = arith.truncf %491 : vector<8x32xf32> to vector<8x32xbf16>
    %c3_211 = arith.constant 3 : index
    %c0_212 = arith.constant 0 : index
    %c0_213 = arith.constant 0 : index
    %493 = vector.load %arg7[%c3_211, %c0_212, %c0_213] : memref<4x32x32xbf16, #tpu.memory_space<vmem>>, vector<1x32x32xbf16>
    %494 = vector.shape_cast %493 : vector<1x32x32xbf16> to vector<32x32xbf16>
    %cst_214 = arith.constant dense<0.000000e+00> : vector<8x32xf32>
    %495 = tpu.matmul %492, %494, %cst_214 {dimension_numbers = #tpu.dot_dimension_numbers<[1], [0], [0], [1], [0, 0, 1, 1], [], []>} : vector<8x32xbf16>, vector<32x32xbf16>, vector<8x32xf32> -> vector<8x32xf32>
    %c3_215 = arith.constant 3 : index
    %c0_216 = arith.constant 0 : index
    %c0_217 = arith.constant 0 : index
    %496 = vector.load %arg8[%c3_215, %c0_216, %c0_217] : memref<4x1x32xf32, #tpu.memory_space<vmem>>, vector<1x1x32xf32>
    %497 = vector.shape_cast %496 : vector<1x1x32xf32> to vector<1x32xf32>
    %498 = vector.broadcast %497 : vector<1x32xf32> to vector<8x32xf32>
    %499 = arith.addf %495, %498 : vector<8x32xf32>
    %500 = arith.addf %499, %444 : vector<8x32xf32>
    %c3_218 = arith.constant 3 : index
    %c0_219 = arith.constant 0 : index
    %c0_220 = arith.constant 0 : index
    %501 = vector.load %arg9[%c3_218, %c0_219, %c0_220] : memref<4x1x32xf32, #tpu.memory_space<vmem>>, vector<1x1x32xf32>
    %502 = vector.shape_cast %501 : vector<1x1x32xf32> to vector<1x32xf32>
    %c3_221 = arith.constant 3 : index
    %c0_222 = arith.constant 0 : index
    %c0_223 = arith.constant 0 : index
    %503 = vector.load %arg10[%c3_221, %c0_222, %c0_223] : memref<4x1x32xf32, #tpu.memory_space<vmem>>, vector<1x1x32xf32>
    %504 = vector.shape_cast %503 : vector<1x1x32xf32> to vector<1x32xf32>
    %cst_224 = arith.constant dense<0.000000e+00> : vector<8xf32>
    %505 = vector.multi_reduction <add>, %500, %cst_224 [1] : vector<8x32xf32> to vector<8xf32>
    %506 = vector.shape_cast %505 : vector<8xf32> to vector<8x1xf32>
    %cst_225 = arith.constant 3.200000e+01 : f32
    %507 = vector.broadcast %cst_225 : f32 to vector<8x1xf32>
    %508 = arith.divf %506, %507 : vector<8x1xf32>
    %509 = arith.mulf %500, %500 : vector<8x32xf32>
    %cst_226 = arith.constant dense<0.000000e+00> : vector<8xf32>
    %510 = vector.multi_reduction <add>, %509, %cst_226 [1] : vector<8x32xf32> to vector<8xf32>
    %511 = vector.shape_cast %510 : vector<8xf32> to vector<8x1xf32>
    %cst_227 = arith.constant 3.200000e+01 : f32
    %512 = vector.broadcast %cst_227 : f32 to vector<8x1xf32>
    %513 = arith.divf %511, %512 : vector<8x1xf32>
    %514 = arith.mulf %508, %508 : vector<8x1xf32>
    %515 = arith.subf %513, %514 : vector<8x1xf32>
    %516 = vector.broadcast %508 : vector<8x1xf32> to vector<8x32xf32>
    %517 = arith.subf %500, %516 : vector<8x32xf32>
    %cst_228 = arith.constant 9.99999974E-6 : f32
    %518 = vector.broadcast %cst_228 : f32 to vector<8x1xf32>
    %519 = arith.addf %515, %518 : vector<8x1xf32>
    %520 = math.rsqrt %519 : vector<8x1xf32>
    %521 = vector.broadcast %520 : vector<8x1xf32> to vector<8x32xf32>
    %522 = arith.mulf %517, %521 : vector<8x32xf32>
    %523 = vector.broadcast %502 : vector<1x32xf32> to vector<8x32xf32>
    %524 = arith.mulf %522, %523 : vector<8x32xf32>
    %525 = vector.broadcast %504 : vector<1x32xf32> to vector<8x32xf32>
    %526 = arith.addf %524, %525 : vector<8x32xf32>
    %527 = arith.truncf %526 : vector<8x32xf32> to vector<8x32xbf16>
    %c3_229 = arith.constant 3 : index
    %c0_230 = arith.constant 0 : index
    %c0_231 = arith.constant 0 : index
    %528 = vector.load %arg11[%c3_229, %c0_230, %c0_231] : memref<4x32x64xbf16, #tpu.memory_space<vmem>>, vector<1x32x64xbf16>
    %529 = vector.shape_cast %528 : vector<1x32x64xbf16> to vector<32x64xbf16>
    %cst_232 = arith.constant dense<0.000000e+00> : vector<8x64xf32>
    %530 = tpu.matmul %527, %529, %cst_232 {dimension_numbers = #tpu.dot_dimension_numbers<[1], [0], [0], [1], [0, 0, 1, 1], [], []>} : vector<8x32xbf16>, vector<32x64xbf16>, vector<8x64xf32> -> vector<8x64xf32>
    %c3_233 = arith.constant 3 : index
    %c0_234 = arith.constant 0 : index
    %c0_235 = arith.constant 0 : index
    %531 = vector.load %arg12[%c3_233, %c0_234, %c0_235] : memref<4x1x64xf32, #tpu.memory_space<vmem>>, vector<1x1x64xf32>
    %532 = vector.shape_cast %531 : vector<1x1x64xf32> to vector<1x64xf32>
    %533 = vector.broadcast %532 : vector<1x64xf32> to vector<8x64xf32>
    %534 = arith.addf %530, %533 : vector<8x64xf32>
    %cst_236 = arith.constant 5.000000e-01 : f32
    %535 = vector.broadcast %cst_236 : f32 to vector<8x64xf32>
    %536 = arith.mulf %535, %534 : vector<8x64xf32>
    %cst_237 = arith.constant 4.471500e-02 : f32
    %537 = vector.broadcast %cst_237 : f32 to vector<8x64xf32>
    %538 = arith.mulf %537, %534 : vector<8x64xf32>
    %539 = arith.mulf %538, %534 : vector<8x64xf32>
    %540 = arith.mulf %539, %534 : vector<8x64xf32>
    %541 = arith.addf %534, %540 : vector<8x64xf32>
    %cst_238 = arith.constant 0.797884583 : f32
    %542 = vector.broadcast %cst_238 : f32 to vector<8x64xf32>
    %543 = arith.mulf %542, %541 : vector<8x64xf32>
    %544 = math.tanh %543 : vector<8x64xf32>
    %cst_239 = arith.constant 1.000000e+00 : f32
    %545 = vector.broadcast %cst_239 : f32 to vector<8x64xf32>
    %546 = arith.addf %545, %544 : vector<8x64xf32>
    %547 = arith.mulf %536, %546 : vector<8x64xf32>
    %548 = arith.truncf %547 : vector<8x64xf32> to vector<8x64xbf16>
    %c3_240 = arith.constant 3 : index
    %c0_241 = arith.constant 0 : index
    %c0_242 = arith.constant 0 : index
    %549 = vector.load %arg13[%c3_240, %c0_241, %c0_242] : memref<4x64x32xbf16, #tpu.memory_space<vmem>>, vector<1x64x32xbf16>
    %550 = vector.shape_cast %549 : vector<1x64x32xbf16> to vector<64x32xbf16>
    %cst_243 = arith.constant dense<0.000000e+00> : vector<8x32xf32>
    %551 = tpu.matmul %548, %550, %cst_243 {dimension_numbers = #tpu.dot_dimension_numbers<[1], [0], [0], [1], [0, 0, 1, 1], [], []>} : vector<8x64xbf16>, vector<64x32xbf16>, vector<8x32xf32> -> vector<8x32xf32>
    %c3_244 = arith.constant 3 : index
    %c0_245 = arith.constant 0 : index
    %c0_246 = arith.constant 0 : index
    %552 = vector.load %arg14[%c3_244, %c0_245, %c0_246] : memref<4x1x32xf32, #tpu.memory_space<vmem>>, vector<1x1x32xf32>
    %553 = vector.shape_cast %552 : vector<1x1x32xf32> to vector<1x32xf32>
    %554 = vector.broadcast %553 : vector<1x32xf32> to vector<8x32xf32>
    %555 = arith.addf %551, %554 : vector<8x32xf32>
    %556 = arith.addf %555, %526 : vector<8x32xf32>
    %c3_247 = arith.constant 3 : index
    %c0_248 = arith.constant 0 : index
    %c0_249 = arith.constant 0 : index
    %557 = vector.load %arg15[%c3_247, %c0_248, %c0_249] : memref<4x1x32xf32, #tpu.memory_space<vmem>>, vector<1x1x32xf32>
    %558 = vector.shape_cast %557 : vector<1x1x32xf32> to vector<1x32xf32>
    %c3_250 = arith.constant 3 : index
    %c0_251 = arith.constant 0 : index
    %c0_252 = arith.constant 0 : index
    %559 = vector.load %arg16[%c3_250, %c0_251, %c0_252] : memref<4x1x32xf32, #tpu.memory_space<vmem>>, vector<1x1x32xf32>
    %560 = vector.shape_cast %559 : vector<1x1x32xf32> to vector<1x32xf32>
    %cst_253 = arith.constant dense<0.000000e+00> : vector<8xf32>
    %561 = vector.multi_reduction <add>, %556, %cst_253 [1] : vector<8x32xf32> to vector<8xf32>
    %562 = vector.shape_cast %561 : vector<8xf32> to vector<8x1xf32>
    %cst_254 = arith.constant 3.200000e+01 : f32
    %563 = vector.broadcast %cst_254 : f32 to vector<8x1xf32>
    %564 = arith.divf %562, %563 : vector<8x1xf32>
    %565 = arith.mulf %556, %556 : vector<8x32xf32>
    %cst_255 = arith.constant dense<0.000000e+00> : vector<8xf32>
    %566 = vector.multi_reduction <add>, %565, %cst_255 [1] : vector<8x32xf32> to vector<8xf32>
    %567 = vector.shape_cast %566 : vector<8xf32> to vector<8x1xf32>
    %cst_256 = arith.constant 3.200000e+01 : f32
    %568 = vector.broadcast %cst_256 : f32 to vector<8x1xf32>
    %569 = arith.divf %567, %568 : vector<8x1xf32>
    %570 = arith.mulf %564, %564 : vector<8x1xf32>
    %571 = arith.subf %569, %570 : vector<8x1xf32>
    %572 = vector.broadcast %564 : vector<8x1xf32> to vector<8x32xf32>
    %573 = arith.subf %556, %572 : vector<8x32xf32>
    %cst_257 = arith.constant 9.99999974E-6 : f32
    %574 = vector.broadcast %cst_257 : f32 to vector<8x1xf32>
    %575 = arith.addf %571, %574 : vector<8x1xf32>
    %576 = math.rsqrt %575 : vector<8x1xf32>
    %577 = vector.broadcast %576 : vector<8x1xf32> to vector<8x32xf32>
    %578 = arith.mulf %573, %577 : vector<8x32xf32>
    %579 = vector.broadcast %558 : vector<1x32xf32> to vector<8x32xf32>
    %580 = arith.mulf %578, %579 : vector<8x32xf32>
    %581 = vector.broadcast %560 : vector<1x32xf32> to vector<8x32xf32>
    %582 = arith.addf %580, %581 : vector<8x32xf32>
    %583 = arith.addf %445, %582 : vector<8x32xf32>
    %c0_258 = arith.constant 0 : index
    %c0_259 = arith.constant 0 : index
    %584 = vector.load %arg17[%c0_258, %c0_259] : memref<8x32xf32, #tpu.memory_space<vmem>>, vector<8x32xf32>
    tpu.vector_store %arg17[%c0_258, %c0_259], %583 {strides = array<i32>} : memref<8x32xf32, #tpu.memory_space<vmem>>, vector<8x32xf32>,
    return
  }
  func.func @transform_0(%arg0: i32) -> (i32, i32) {
    %c0_i32 = arith.constant 0 : i32
    %c0_i32_0 = arith.constant 0 : i32
    %c0_i32_1 = arith.constant 0 : i32
    return %c0_i32, %c0_i32_0 : i32, i32
  }
  func.func @transform_1(%arg0: i32) -> (i32, i32) {
    %c0_i32 = arith.constant 0 : i32
    %c0_i32_0 = arith.constant 0 : i32
    return %arg0, %c0_i32 : i32, i32
  }
  func.func @transform_2(%arg0: i32) -> (i32, i32) {
    %c0_i32 = arith.constant 0 : i32
    %c0_i32_0 = arith.constant 0 : i32
    %c0_i32_1 = arith.constant 0 : i32
    return %c0_i32, %c0_i32_0 : i32, i32
  }
  func.func @transform_3(%arg0: i32) -> (i32, i32) {
    %c0_i32 = arith.constant 0 : i32
    %c0_i32_0 = arith.constant 0 : i32
    %c0_i32_1 = arith.constant 0 : i32
    return %c0_i32, %c0_i32_0 : i32, i32
  }
  func.func @transform_4(%arg0: i32) -> (i32, i32, i32) {
    %c0_i32 = arith.constant 0 : i32
    %c0_i32_0 = arith.constant 0 : i32
    %c0_i32_1 = arith.constant 0 : i32
    %c0_i32_2 = arith.constant 0 : i32
    return %c0_i32, %c0_i32_0, %c0_i32_1 : i32, i32, i32
  }
  func.func @transform_5(%arg0: i32) -> (i32, i32, i32) {
    %c0_i32 = arith.constant 0 : i32
    %c0_i32_0 = arith.constant 0 : i32
    %c0_i32_1 = arith.constant 0 : i32
    %c0_i32_2 = arith.constant 0 : i32
    return %c0_i32, %c0_i32_0, %c0_i32_1 : i32, i32, i32
  }
  func.func @transform_6(%arg0: i32) -> (i32, i32, i32) {
    %c0_i32 = arith.constant 0 : i32
    %c0_i32_0 = arith.constant 0 : i32
    %c0_i32_1 = arith.constant 0 : i32
    %c0_i32_2 = arith.constant 0 : i32
    return %c0_i32, %c0_i32_0, %c0_i32_1 : i32, i32, i32
  }
  func.func @transform_7(%arg0: i32) -> (i32, i32, i32) {
    %c0_i32 = arith.constant 0 : i32
    %c0_i32_0 = arith.constant 0 : i32
    %c0_i32_1 = arith.constant 0 : i32
    %c0_i32_2 = arith.constant 0 : i32
    return %c0_i32, %c0_i32_0, %c0_i32_1 : i32, i32, i32
  }
  func.func @transform_8(%arg0: i32) -> (i32, i32, i32) {
    %c0_i32 = arith.constant 0 : i32
    %c0_i32_0 = arith.constant 0 : i32
    %c0_i32_1 = arith.constant 0 : i32
    %c0_i32_2 = arith.constant 0 : i32
    return %c0_i32, %c0_i32_0, %c0_i32_1 : i32, i32, i32
  }
  func.func @transform_9(%arg0: i32) -> (i32, i32, i32) {
    %c0_i32 = arith.constant 0 : i32
    %c0_i32_0 = arith.constant 0 : i32
    %c0_i32_1 = arith.constant 0 : i32
    %c0_i32_2 = arith.constant 0 : i32
    return %c0_i32, %c0_i32_0, %c0_i32_1 : i32, i32, i32
  }
  func.func @transform_10(%arg0: i32) -> (i32, i32, i32) {
    %c0_i32 = arith.constant 0 : i32
    %c0_i32_0 = arith.constant 0 : i32
    %c0_i32_1 = arith.constant 0 : i32
    %c0_i32_2 = arith.constant 0 : i32
    return %c0_i32, %c0_i32_0, %c0_i32_1 : i32, i32, i32
  }
  func.func @transform_11(%arg0: i32) -> (i32, i32, i32) {
    %c0_i32 = arith.constant 0 : i32
    %c0_i32_0 = arith.constant 0 : i32
    %c0_i32_1 = arith.constant 0 : i32
    %c0_i32_2 = arith.constant 0 : i32
    return %c0_i32, %c0_i32_0, %c0_i32_1 : i32, i32, i32
  }
  func.func @transform_12(%arg0: i32) -> (i32, i32, i32) {
    %c0_i32 = arith.constant 0 : i32
    %c0_i32_0 = arith.constant 0 : i32
    %c0_i32_1 = arith.constant 0 : i32
    %c0_i32_2 = arith.constant 0 : i32
    return %c0_i32, %c0_i32_0, %c0_i32_1 : i32, i32, i32
  }
  func.func @transform_13(%arg0: i32) -> (i32, i32, i32) {
    %c0_i32 = arith.constant 0 : i32
    %c0_i32_0 = arith.constant 0 : i32
    %c0_i32_1 = arith.constant 0 : i32
    %c0_i32_2 = arith.constant 0 : i32
    return %c0_i32, %c0_i32_0, %c0_i32_1 : i32, i32, i32
  }
  func.func @transform_14(%arg0: i32) -> (i32, i32, i32) {
    %c0_i32 = arith.constant 0 : i32
    %c0_i32_0 = arith.constant 0 : i32
    %c0_i32_1 = arith.constant 0 : i32
    %c0_i32_2 = arith.constant 0 : i32
    return %c0_i32, %c0_i32_0, %c0_i32_1 : i32, i32, i32
  }
  func.func @transform_15(%arg0: i32) -> (i32, i32, i32) {
    %c0_i32 = arith.constant 0 : i32
    %c0_i32_0 = arith.constant 0 : i32
    %c0_i32_1 = arith.constant 0 : i32
    %c0_i32_2 = arith.constant 0 : i32
    return %c0_i32, %c0_i32_0, %c0_i32_1 : i32, i32, i32
  }
  func.func @transform_16(%arg0: i32) -> (i32, i32) {
    %c0_i32 = arith.constant 0 : i32
    %c0_i32_0 = arith.constant 0 : i32
    return %arg0, %c0_i32 : i32, i32
  }
}

</mosaic_0001>

<llo_original>
// kernel: bert_word_encoder.1
$region0: #{bert_word_encoder.1}
  #allocation0 [shape = 'u32[]', space=smem, size = 0x4, offset = 0x4, fixed_abs, tag = 'smem constant byte address 0x4 - core index']
  #allocation1 [shape = 'u32[144,128]{1,0:T(1,128)}', space=vmem, size = 0x12000, scoped, tag = 'internal scratch']
  %s0 = inlined_call_operand.vmem [shape: f32[2,8], index: 0, kind: input, shape index: {}]
  %s1 = inlined_call_operand.vmem [shape: f32[16,32], index: 1, kind: input, shape index: {}]
  %s2 = inlined_call_operand.vmem [shape: f32[1,32], index: 2, kind: input, shape index: {}]
  %s3 = inlined_call_operand.vmem [shape: f32[1,32], index: 3, kind: input, shape index: {}]
  %s4 = inlined_call_operand.vmem [shape: bf16[4,32,128], index: 4, kind: input, shape index: {}]
  %s5 = inlined_call_operand.vmem [shape: f32[4,1,128], index: 5, kind: input, shape index: {}]
  %s6 = inlined_call_operand.vmem [shape: bf16[4,32,32], index: 6, kind: input, shape index: {}]
  %s7 = inlined_call_operand.vmem [shape: f32[4,1,32], index: 7, kind: input, shape index: {}]
  %s8 = inlined_call_operand.vmem [shape: f32[4,1,32], index: 8, kind: input, shape index: {}]
  %s9 = inlined_call_operand.vmem [shape: f32[4,1,32], index: 9, kind: input, shape index: {}]
  %s10 = inlined_call_operand.vmem [shape: bf16[4,32,64], index: 10, kind: input, shape index: {}]
  %s11 = inlined_call_operand.vmem [shape: f32[4,1,64], index: 11, kind: input, shape index: {}]
  %s12 = inlined_call_operand.vmem [shape: bf16[4,64,32], index: 12, kind: input, shape index: {}]
  %s13 = inlined_call_operand.vmem [shape: f32[4,1,32], index: 13, kind: input, shape index: {}]
  %s14 = inlined_call_operand.vmem [shape: f32[4,1,32], index: 14, kind: input, shape index: {}]
  %s15 = inlined_call_operand.vmem [shape: f32[4,1,32], index: 15, kind: input, shape index: {}]
  %s16 = inlined_call_operand.hbm [shape: f32[16,32], index: 16, kind: output, shape index: {}]
  %s17 = sld [smem:[#allocation0]]
  $region97: #{bert_word_encoder.1} parent=0
    _
  %s19 = ssub.s32 1, %s17
  %s20 = scalar_select 0, %s19, %s17
  $region1: #{bert_word_encoder.1} parent=0
    #allocation2 [shape = 'u8[8192]{0}', space=vmem, size = 0x2000, scoped, tag = 'output window, operand 0']
    #allocation3 [shape = 's32[2]{0}', space=sflag, size = 0x8, scoped, tag = 'scoped memory for bert_word_encoder.1']
    %21 = vsyncpa [#allocation3], 0
    %s22 = scalar_lea.sflag [#allocation3], 1
    %23 = vsyncpa %s22, 0
    loop: start=0, step=1, limit=4
    $region2: #{bert_word_encoder.1} parent=1 // loop_pre_header
      _
    $region3: #{bert_word_encoder.1} parent=1 // loop_header
      %s25 = sphi 0, %s29
      %p26 = scmp.ge.s32.totalorder %s25, 4
      %s33 = sphi 0, %s33
      %s35 = sphi 0, %s33
      %s36 = sphi 0, %s35
      %s50 = sphi 0, %s36
      %s56 = sphi 0, %s58
      %s59 = sphi 0, %s56
      %s60 = sphi 0, %s59
      %s76 = sphi 0, %s60
      %s80 = sphi 0, %s80
      %s82 = sphi 0, %s80
      %s83 = sphi 0, %s82
      %s97 = sphi 0, %s83
      %s101 = sphi 0, %s101
      %s103 = sphi 0, %s101
      %s104 = sphi 0, %s103
      %s118 = sphi 0, %s104
      %s122 = sphi 0, %s122
      %s124 = sphi 0, %s122
      %s125 = sphi 0, %s124
      %s139 = sphi 0, %s125
      %s143 = sphi 0, %s143
      %s145 = sphi 0, %s143
      %s146 = sphi 0, %s145
      %s160 = sphi 0, %s146
      %s164 = sphi 0, %s164
      %s166 = sphi 0, %s164
      %s167 = sphi 0, %s166
      %s181 = sphi 0, %s167
      %s185 = sphi 0, %s185
      %s187 = sphi 0, %s185
      %s188 = sphi 0, %s187
      %s202 = sphi 0, %s188
      %s206 = sphi 0, %s206
      %s208 = sphi 0, %s206
      %s209 = sphi 0, %s208
      %s223 = sphi 0, %s209
      %s227 = sphi 0, %s227
      %s229 = sphi 0, %s227
      %s230 = sphi 0, %s229
      %s244 = sphi 0, %s230
      %s248 = sphi 0, %s248
      %s250 = sphi 0, %s248
      %s251 = sphi 0, %s250
      %s265 = sphi 0, %s251
      %s269 = sphi 0, %s269
      %s271 = sphi 0, %s269
      %s272 = sphi 0, %s271
      %s286 = sphi 0, %s272
      %s290 = sphi 0, %s290
      %s292 = sphi 0, %s290
      %s293 = sphi 0, %s292
      %s307 = sphi 0, %s293
      %s311 = sphi 0, %s311
      %s313 = sphi 0, %s311
      %s314 = sphi 0, %s313
      %s328 = sphi 0, %s314
      %s332 = sphi 0, %s332
      %s334 = sphi 0, %s332
      %s335 = sphi 0, %s334
      %s349 = sphi 0, %s335
      %s353 = sphi 0, %s353
      %s355 = sphi 0, %s353
      %s356 = sphi 0, %s355
      %s370 = sphi 0, %s356
      %s376 = sphi 0, %s378
      %s379 = sphi 0, %s376
      %s380 = sphi 0, %s379
      %s396 = sphi 0, %s380
    $region4: #{bert_word_encoder.1} parent=1 // loop_header_branch
      %28 = sbr.rel (%p26) target = $region8
    $region5: #{bert_word_encoder.1} parent=1 // loop_body
      %s30 = ssub.s32 %s25, 1
      %s31 = ssub.s32 %s25, 2
      %s32 = sadd.s32 %s25, 1
      %s34 = sadd.s32 %s33, 1
      %p37 = scmp.eq.s32.totalorder %s25, 1
      %p38 = scmp.ne.s32.totalorder %s33, %s35
      %p39 = scmp.eq.s32.totalorder %s25, 0
      %p40 = por %p38, %p39
      %p41 = scmp.ne.s32.totalorder %s33, %s35
      %p42 = scmp.eq.s32.totalorder %s30, 1
      %p43 = por %p41, %p42
      %p44 = scmp.ne.s32.totalorder %s35, %s36
      %p45 = scmp.eq.s32.totalorder %s30, 0
      %p46 = por %p44, %p45
      %p47 = scmp.ne.s32.totalorder %s35, %s36
      %p48 = scmp.eq.s32.totalorder %s31, 1
      %p49 = por %p47, %p48
      %p51 = scmp.ne.s32.totalorder %s36, %s50
      %p52 = scmp.eq.s32.totalorder %s31, 0
      %p53 = por %p51, %p52
      %s54 = ssub.s32 %s25, %s32
      %p55 = scmp.eq.s32.totalorder %s54, 0
      %s57 = sadd.s32 %s56, 1
      %s58 = scalar_select %p55, %s56, %s57
      %p61 = pneg %p55
      %p62 = scmp.eq.s32.totalorder %s25, 1
      %p63 = por %p61, %p62
      %p64 = scmp.ne.s32.totalorder %s56, %s59
      %p65 = scmp.eq.s32.totalorder %s25, 0
      %p66 = por %p64, %p65
      %p67 = scmp.ne.s32.totalorder %s56, %s59
      %p68 = scmp.eq.s32.totalorder %s30, 1
      %p69 = por %p67, %p68
      %p70 = scmp.ne.s32.totalorder %s59, %s60
      %p71 = scmp.eq.s32.totalorder %s30, 0
      %p72 = por %p70, %p71
      %p73 = scmp.ne.s32.totalorder %s59, %s60
      %p74 = scmp.eq.s32.totalorder %s31, 1
      %p75 = por %p73, %p74
      %p77 = scmp.ne.s32.totalorder %s60, %s76
      %p78 = scmp.eq.s32.totalorder %s31, 0
      %p79 = por %p77, %p78
      %s81 = sadd.s32 %s80, 1
      %p84 = scmp.eq.s32.totalorder %s25, 1
      %p85 = scmp.ne.s32.totalorder %s80, %s82
      %p86 = scmp.eq.s32.totalorder %s25, 0
      %p87 = por %p85, %p86
      %p88 = scmp.ne.s32.totalorder %s80, %s82
      %p89 = scmp.eq.s32.totalorder %s30, 1
      %p90 = por %p88, %p89
      %p91 = scmp.ne.s32.totalorder %s82, %s83
      %p92 = scmp.eq.s32.totalorder %s30, 0
      %p93 = por %p91, %p92
      %p94 = scmp.ne.s32.totalorder %s82, %s83
      %p95 = scmp.eq.s32.totalorder %s31, 1
      %p96 = por %p94, %p95
      %p98 = scmp.ne.s32.totalorder %s83, %s97
      %p99 = scmp.eq.s32.totalorder %s31, 0
      %p100 = por %p98, %p99
      %s102 = sadd.s32 %s101, 1
      %p105 = scmp.eq.s32.totalorder %s25, 1
      %p106 = scmp.ne.s32.totalorder %s101, %s103
      %p107 = scmp.eq.s32.totalorder %s25, 0
      %p108 = por %p106, %p107
      %p109 = scmp.ne.s32.totalorder %s101, %s103
      %p110 = scmp.eq.s32.totalorder %s30, 1
      %p111 = por %p109, %p110
      %p112 = scmp.ne.s32.totalorder %s103, %s104
      %p113 = scmp.eq.s32.totalorder %s30, 0
      %p114 = por %p112, %p113
      %p115 = scmp.ne.s32.totalorder %s103, %s104
      %p116 = scmp.eq.s32.totalorder %s31, 1
      %p117 = por %p115, %p116
      %p119 = scmp.ne.s32.totalorder %s104, %s118
      %p120 = scmp.eq.s32.totalorder %s31, 0
      %p121 = por %p119, %p120
      %s123 = sadd.s32 %s122, 1
      %p126 = scmp.eq.s32.totalorder %s25, 1
      %p127 = scmp.ne.s32.totalorder %s122, %s124
      %p128 = scmp.eq.s32.totalorder %s25, 0
      %p129 = por %p127, %p128
      %p130 = scmp.ne.s32.totalorder %s122, %s124
      %p131 = scmp.eq.s32.totalorder %s30, 1
      %p132 = por %p130, %p131
      %p133 = scmp.ne.s32.totalorder %s124, %s125
      %p134 = scmp.eq.s32.totalorder %s30, 0
      %p135 = por %p133, %p134
      %p136 = scmp.ne.s32.totalorder %s124, %s125
      %p137 = scmp.eq.s32.totalorder %s31, 1
      %p138 = por %p136, %p137
      %p140 = scmp.ne.s32.totalorder %s125, %s139
      %p141 = scmp.eq.s32.totalorder %s31, 0
      %p142 = por %p140, %p141
      %s144 = sadd.s32 %s143, 1
      %p147 = scmp.eq.s32.totalorder %s25, 1
      %p148 = scmp.ne.s32.totalorder %s143, %s145
      %p149 = scmp.eq.s32.totalorder %s25, 0
      %p150 = por %p148, %p149
      %p151 = scmp.ne.s32.totalorder %s143, %s145
      %p152 = scmp.eq.s32.totalorder %s30, 1
      %p153 = por %p151, %p152
      %p154 = scmp.ne.s32.totalorder %s145, %s146
      %p155 = scmp.eq.s32.totalorder %s30, 0
      %p156 = por %p154, %p155
      %p157 = scmp.ne.s32.totalorder %s145, %s146
      %p158 = scmp.eq.s32.totalorder %s31, 1
      %p159 = por %p157, %p158
      %p161 = scmp.ne.s32.totalorder %s146, %s160
      %p162 = scmp.eq.s32.totalorder %s31, 0
      %p163 = por %p161, %p162
      %s165 = sadd.s32 %s164, 1
      %p168 = scmp.eq.s32.totalorder %s25, 1
      %p169 = scmp.ne.s32.totalorder %s164, %s166
      %p170 = scmp.eq.s32.totalorder %s25, 0
      %p171 = por %p169, %p170
      %p172 = scmp.ne.s32.totalorder %s164, %s166
      %p173 = scmp.eq.s32.totalorder %s30, 1
      %p174 = por %p172, %p173
      %p175 = scmp.ne.s32.totalorder %s166, %s167
      %p176 = scmp.eq.s32.totalorder %s30, 0
      %p177 = por %p175, %p176
      %p178 = scmp.ne.s32.totalorder %s166, %s167
      %p179 = scmp.eq.s32.totalorder %s31, 1
      %p180 = por %p178, %p179
      %p182 = scmp.ne.s32.totalorder %s167, %s181
      %p183 = scmp.eq.s32.totalorder %s31, 0
      %p184 = por %p182, %p183
      %s186 = sadd.s32 %s185, 1
      %p189 = scmp.eq.s32.totalorder %s25, 1
      %p190 = scmp.ne.s32.totalorder %s185, %s187
      %p191 = scmp.eq.s32.totalorder %s25, 0
      %p192 = por %p190, %p191
      %p193 = scmp.ne.s32.totalorder %s185, %s187
      %p194 = scmp.eq.s32.totalorder %s30, 1
      %p195 = por %p193, %p194
      %p196 = scmp.ne.s32.totalorder %s187, %s188
      %p197 = scmp.eq.s32.totalorder %s30, 0
      %p198 = por %p196, %p197
      %p199 = scmp.ne.s32.totalorder %s187, %s188
      %p200 = scmp.eq.s32.totalorder %s31, 1
      %p201 = por %p199, %p200
      %p203 = scmp.ne.s32.totalorder %s188, %s202
      %p204 = scmp.eq.s32.totalorder %s31, 0
      %p205 = por %p203, %p204
      %s207 = sadd.s32 %s206, 1
      %p210 = scmp.eq.s32.totalorder %s25, 1
      %p211 = scmp.ne.s32.totalorder %s206, %s208
      %p212 = scmp.eq.s32.totalorder %s25, 0
      %p213 = por %p211, %p212
      %p214 = scmp.ne.s32.totalorder %s206, %s208
      %p215 = scmp.eq.s32.totalorder %s30, 1
      %p216 = por %p214, %p215
      %p217 = scmp.ne.s32.totalorder %s208, %s209
      %p218 = scmp.eq.s32.totalorder %s30, 0
      %p219 = por %p217, %p218
      %p220 = scmp.ne.s32.totalorder %s208, %s209
      %p221 = scmp.eq.s32.totalorder %s31, 1
      %p222 = por %p220, %p221
      %p224 = scmp.ne.s32.totalorder %s209, %s223
      %p225 = scmp.eq.s32.totalorder %s31, 0
      %p226 = por %p224, %p225
      %s228 = sadd.s32 %s227, 1
      %p231 = scmp.eq.s32.totalorder %s25, 1
      %p232 = scmp.ne.s32.totalorder %s227, %s229
      %p233 = scmp.eq.s32.totalorder %s25, 0
      %p234 = por %p232, %p233
      %p235 = scmp.ne.s32.totalorder %s227, %s229
      %p236 = scmp.eq.s32.totalorder %s30, 1
      %p237 = por %p235, %p236
      %p238 = scmp.ne.s32.totalorder %s229, %s230
      %p239 = scmp.eq.s32.totalorder %s30, 0
      %p240 = por %p238, %p239
      %p241 = scmp.ne.s32.totalorder %s229, %s230
      %p242 = scmp.eq.s32.totalorder %s31, 1
      %p243 = por %p241, %p242
      %p245 = scmp.ne.s32.totalorder %s230, %s244
      %p246 = scmp.eq.s32.totalorder %s31, 0
      %p247 = por %p245, %p246
      %s249 = sadd.s32 %s248, 1
      %p252 = scmp.eq.s32.totalorder %s25, 1
      %p253 = scmp.ne.s32.totalorder %s248, %s250
      %p254 = scmp.eq.s32.totalorder %s25, 0
      %p255 = por %p253, %p254
      %p256 = scmp.ne.s32.totalorder %s248, %s250
      %p257 = scmp.eq.s32.totalorder %s30, 1
      %p258 = por %p256, %p257
      %p259 = scmp.ne.s32.totalorder %s250, %s251
      %p260 = scmp.eq.s32.totalorder %s30, 0
      %p261 = por %p259, %p260
      %p262 = scmp.ne.s32.totalorder %s250, %s251
      %p263 = scmp.eq.s32.totalorder %s31, 1
      %p264 = por %p262, %p263
      %p266 = scmp.ne.s32.totalorder %s251, %s265
      %p267 = scmp.eq.s32.totalorder %s31, 0
      %p268 = por %p266, %p267
      %s270 = sadd.s32 %s269, 1
      %p273 = scmp.eq.s32.totalorder %s25, 1
      %p274 = scmp.ne.s32.totalorder %s269, %s271
      %p275 = scmp.eq.s32.totalorder %s25, 0
      %p276 = por %p274, %p275
      %p277 = scmp.ne.s32.totalorder %s269, %s271
      %p278 = scmp.eq.s32.totalorder %s30, 1
      %p279 = por %p277, %p278
      %p280 = scmp.ne.s32.totalorder %s271, %s272
      %p281 = scmp.eq.s32.totalorder %s30, 0
      %p282 = por %p280, %p281
      %p283 = scmp.ne.s32.totalorder %s271, %s272
      %p284 = scmp.eq.s32.totalorder %s31, 1
      %p285 = por %p283, %p284
      %p287 = scmp.ne.s32.totalorder %s272, %s286
      %p288 = scmp.eq.s32.totalorder %s31, 0
      %p289 = por %p287, %p288
      %s291 = sadd.s32 %s290, 1
      %p294 = scmp.eq.s32.totalorder %s25, 1
      %p295 = scmp.ne.s32.totalorder %s290, %s292
      %p296 = scmp.eq.s32.totalorder %s25, 0
      %p297 = por %p295, %p296
      %p298 = scmp.ne.s32.totalorder %s290, %s292
      %p299 = scmp.eq.s32.totalorder %s30, 1
      %p300 = por %p298, %p299
      %p301 = scmp.ne.s32.totalorder %s292, %s293
      %p302 = scmp.eq.s32.totalorder %s30, 0
      %p303 = por %p301, %p302
      %p304 = scmp.ne.s32.totalorder %s292, %s293
      %p305 = scmp.eq.s32.totalorder %s31, 1
      %p306 = por %p304, %p305
      %p308 = scmp.ne.s32.totalorder %s293, %s307
      %p309 = scmp.eq.s32.totalorder %s31, 0
      %p310 = por %p308, %p309
      %s312 = sadd.s32 %s311, 1
      %p315 = scmp.eq.s32.totalorder %s25, 1
      %p316 = scmp.ne.s32.totalorder %s311, %s313
      %p317 = scmp.eq.s32.totalorder %s25, 0
      %p318 = por %p316, %p317
      %p319 = scmp.ne.s32.totalorder %s311, %s313
      %p320 = scmp.eq.s32.totalorder %s30, 1
      %p321 = por %p319, %p320
      %p322 = scmp.ne.s32.totalorder %s313, %s314
      %p323 = scmp.eq.s32.totalorder %s30, 0
      %p324 = por %p322, %p323
      %p325 = scmp.ne.s32.totalorder %s313, %s314
      %p326 = scmp.eq.s32.totalorder %s31, 1
      %p327 = por %p325, %p326
      %p329 = scmp.ne.s32.totalorder %s314, %s328
      %p330 = scmp.eq.s32.totalorder %s31, 0
      %p331 = por %p329, %p330
      %s333 = sadd.s32 %s332, 1
      %p336 = scmp.eq.s32.totalorder %s25, 1
      %p337 = scmp.ne.s32.totalorder %s332, %s334
      %p338 = scmp.eq.s32.totalorder %s25, 0
      %p339 = por %p337, %p338
      %p340 = scmp.ne.s32.totalorder %s332, %s334
      %p341 = scmp.eq.s32.totalorder %s30, 1
      %p342 = por %p340, %p341
      %p343 = scmp.ne.s32.totalorder %s334, %s335
      %p344 = scmp.eq.s32.totalorder %s30, 0
      %p345 = por %p343, %p344
      %p346 = scmp.ne.s32.totalorder %s334, %s335
      %p347 = scmp.eq.s32.totalorder %s31, 1
      %p348 = por %p346, %p347
      %p350 = scmp.ne.s32.totalorder %s335, %s349
      %p351 = scmp.eq.s32.totalorder %s31, 0
      %p352 = por %p350, %p351
      %s354 = sadd.s32 %s353, 1
      %p357 = scmp.eq.s32.totalorder %s25, 1
      %p358 = scmp.ne.s32.totalorder %s353, %s355
      %p359 = scmp.eq.s32.totalorder %s25, 0
      %p360 = por %p358, %p359
      %p361 = scmp.ne.s32.totalorder %s353, %s355
      %p362 = scmp.eq.s32.totalorder %s30, 1
      %p363 = por %p361, %p362
      %p364 = scmp.ne.s32.totalorder %s355, %s356
      %p365 = scmp.eq.s32.totalorder %s30, 0
      %p366 = por %p364, %p365
      %p367 = scmp.ne.s32.totalorder %s355, %s356
      %p368 = scmp.eq.s32.totalorder %s31, 1
      %p369 = por %p367, %p368
      %p371 = scmp.ne.s32.totalorder %s356, %s370
      %p372 = scmp.eq.s32.totalorder %s31, 0
      %p373 = por %p371, %p372
      %s374 = ssub.s32 %s25, %s32
      %p375 = scmp.eq.s32.totalorder %s374, 0
      %s377 = sadd.s32 %s376, 1
      %s378 = scalar_select %p375, %s376, %s377
      %p381 = pneg %p375
      %p382 = scmp.eq.s32.totalorder %s25, 1
      %p383 = por %p381, %p382
      %p384 = scmp.ne.s32.totalorder %s376, %s379
      %p385 = scmp.eq.s32.totalorder %s25, 0
      %p386 = por %p384, %p385
      %p387 = scmp.ne.s32.totalorder %s376, %s379
      %p388 = scmp.eq.s32.totalorder %s30, 1
      %p389 = por %p387, %p388
      %p390 = scmp.ne.s32.totalorder %s379, %s380
      %p391 = scmp.eq.s32.totalorder %s30, 0
      %p392 = por %p390, %p391
      %p393 = scmp.ne.s32.totalorder %s379, %s380
      %p394 = scmp.eq.s32.totalorder %s31, 1
      %p395 = por %p393, %p394
      %p397 = scmp.ne.s32.totalorder %s380, %s396
      %p398 = scmp.eq.s32.totalorder %s31, 0
      %p399 = por %p397, %p398
      %p400 = scmp.le.s32.totalorder 1, %s25
      %p401 = scmp.lt.s32.totalorder %s25, 3
      %p402 = pnand %p400, %p401
      %p403 = pneg %p402
      // Predicated region
      $region9: #{bert_word_encoder.1} parent=5 // pred_check
        _
      $region10: #{bert_word_encoder.1} parent=5 // pred_check_branch
        %405 = sbr.rel (%p402) target = $region12
      $region11: #{bert_word_encoder.1} parent=5 // pred_region
        %s406 = ssub.s32 %s25, 1
        // Predicated region
        $region13: #{bert_word_encoder.1} parent=11 // pred_check
          %p407 = pneg %p46
        $region14: #{bert_word_encoder.1} parent=11 // pred_check_branch
          %409 = sbr.rel (%p407) target = $region16
        $region15: #{bert_word_encoder.1} parent=11 // pred_region
          _
        $region16: #{bert_word_encoder.1} parent=11 // pred_fallthru
          _
        // Predicated region
        $region17: #{bert_word_encoder.1} parent=11 // pred_check
          %p410 = pneg %p93
        $region18: #{bert_word_encoder.1} parent=11 // pred_check_branch
          %412 = sbr.rel (%p410) target = $region20
        $region19: #{bert_word_encoder.1} parent=11 // pred_region
          _
        $region20: #{bert_word_encoder.1} parent=11 // pred_fallthru
          _
        // Predicated region
        $region21: #{bert_word_encoder.1} parent=11 // pred_check
          %p413 = pneg %p114
        $region22: #{bert_word_encoder.1} parent=11 // pred_check_branch
          %415 = sbr.rel (%p413) target = $region24
        $region23: #{bert_word_encoder.1} parent=11 // pred_region
          _
        $region24: #{bert_word_encoder.1} parent=11 // pred_fallthru
          _
        // Predicated region
        $region25: #{bert_word_encoder.1} parent=11 // pred_check
          %p416 = pneg %p135
        $region26: #{bert_word_encoder.1} parent=11 // pred_check_branch
          %418 = sbr.rel (%p416) target = $region28
        $region27: #{bert_word_encoder.1} parent=11 // pred_region
          _
        $region28: #{bert_word_encoder.1} parent=11 // pred_fallthru
          _
        // Predicated region
        $region29: #{bert_word_encoder.1} parent=11 // pred_check
          %p419 = pneg %p156
        $region30: #{bert_word_encoder.1} parent=11 // pred_check_branch
          %421 = sbr.rel (%p419) target = $region32
        $region31: #{bert_word_encoder.1} parent=11 // pred_region
          _
        $region32: #{bert_word_encoder.1} parent=11 // pred_fallthru
          _
        // Predicated region
        $region33: #{bert_word_encoder.1} parent=11 // pred_check
          %p422 = pneg %p177
        $region34: #{bert_word_encoder.1} parent=11 // pred_check_branch
          %424 = sbr.rel (%p422) target = $region36
        $region35: #{bert_word_encoder.1} parent=11 // pred_region
          _
        $region36: #{bert_word_encoder.1} parent=11 // pred_fallthru
          _
        // Predicated region
        $region37: #{bert_word_encoder.1} parent=11 // pred_check
          %p425 = pneg %p198
        $region38: #{bert_word_encoder.1} parent=11 // pred_check_branch
          %427 = sbr.rel (%p425) target = $region40
        $region39: #{bert_word_encoder.1} parent=11 // pred_region
          _
        $region40: #{bert_word_encoder.1} parent=11 // pred_fallthru
          _
        // Predicated region
        $region41: #{bert_word_encoder.1} parent=11 // pred_check
          %p428 = pneg %p219
        $region42: #{bert_word_encoder.1} parent=11 // pred_check_branch
          %430 = sbr.rel (%p428) target = $region44
        $region43: #{bert_word_encoder.1} parent=11 // pred_region
          _
        $region44: #{bert_word_encoder.1} parent=11 // pred_fallthru
          _
        // Predicated region
        $region45: #{bert_word_encoder.1} parent=11 // pred_check
          %p431 = pneg %p240
        $region46: #{bert_word_encoder.1} parent=11 // pred_check_branch
          %433 = sbr.rel (%p431) target = $region48
        $region47: #{bert_word_encoder.1} parent=11 // pred_region
          _
        $region48: #{bert_word_encoder.1} parent=11 // pred_fallthru
          _
        // Predicated region
        $region49: #{bert_word_encoder.1} parent=11 // pred_check
          %p434 = pneg %p261
        $region50: #{bert_word_encoder.1} parent=11 // pred_check_branch
          %436 = sbr.rel (%p434) target = $region52
        $region51: #{bert_word_encoder.1} parent=11 // pred_region
          _
        $region52: #{bert_word_encoder.1} parent=11 // pred_fallthru
          _
        // Predicated region
        $region53: #{bert_word_encoder.1} parent=11 // pred_check
          %p437 = pneg %p282
        $region54: #{bert_word_encoder.1} parent=11 // pred_check_branch
          %439 = sbr.rel (%p437) target = $region56
        $region55: #{bert_word_encoder.1} parent=11 // pred_region
          _
        $region56: #{bert_word_encoder.1} parent=11 // pred_fallthru
          _
        // Predicated region
        $region57: #{bert_word_encoder.1} parent=11 // pred_check
          %p440 = pneg %p303
        $region58: #{bert_word_encoder.1} parent=11 // pred_check_branch
          %442 = sbr.rel (%p440) target = $region60
        $region59: #{bert_word_encoder.1} parent=11 // pred_region
          _
        $region60: #{bert_word_encoder.1} parent=11 // pred_fallthru
          _
        // Predicated region
        $region61: #{bert_word_encoder.1} parent=11 // pred_check
          %p443 = pneg %p324
        $region62: #{bert_word_encoder.1} parent=11 // pred_check_branch
          %445 = sbr.rel (%p443) target = $region64
        $region63: #{bert_word_encoder.1} parent=11 // pred_region
          _
        $region64: #{bert_word_encoder.1} parent=11 // pred_fallthru
          _
        // Predicated region
        $region65: #{bert_word_encoder.1} parent=11 // pred_check
          %p446 = pneg %p345
        $region66: #{bert_word_encoder.1} parent=11 // pred_check_branch
          %448 = sbr.rel (%p446) target = $region68
        $region67: #{bert_word_encoder.1} parent=11 // pred_region
          _
        $region68: #{bert_word_encoder.1} parent=11 // pred_fallthru
          _
        // Predicated region
        $region69: #{bert_word_encoder.1} parent=11 // pred_check
          %p449 = pneg %p366
        $region70: #{bert_word_encoder.1} parent=11 // pred_check_branch
          %451 = sbr.rel (%p449) target = $region72
        $region71: #{bert_word_encoder.1} parent=11 // pred_region
          _
        $region72: #{bert_word_encoder.1} parent=11 // pred_fallthru
          _
      $region12: #{bert_word_encoder.1} parent=5 // pred_fallthru
        _
      %p452 = scmp.lt.s32.totalorder %s25, 2
      // Predicated region
      $region73: #{bert_word_encoder.1} parent=5 // pred_check
        %p453 = pneg %p452
      $region74: #{bert_word_encoder.1} parent=5 // pred_check_branch
        %455 = sbr.rel (%p453) target = $region76
      $region75: #{bert_word_encoder.1} parent=5 // pred_region
        // Predicated region
        $region77: #{bert_word_encoder.1} parent=75 // pred_check
          %p456 = pneg %p66
        $region78: #{bert_word_encoder.1} parent=75 // pred_check_branch
          %458 = sbr.rel (%p456) target = $region80
        $region79: #{bert_word_encoder.1} parent=75 // pred_region
          %p459 = scmp.lt.s32.totalorder %s25, 1
          %s460 = scalar_select %p459, %s25, 1
          %s461 = smul.addr %s460, 8
          %s462 = scalar_lea.vmem %s1, %s461
        $region80: #{bert_word_encoder.1} parent=75 // pred_fallthru
          _
      $region76: #{bert_word_encoder.1} parent=5 // pred_fallthru
        _
      %p463 = scmp.le.s32.totalorder 1, %s25
      %p464 = scmp.lt.s32.totalorder %s25, 3
      %p465 = pnand %p463, %p464
      %p466 = pneg %p465
      // Predicated region
      $region81: #{bert_word_encoder.1} parent=5 // pred_check
        _
      $region82: #{bert_word_encoder.1} parent=5 // pred_check_branch
        %468 = sbr.rel (%p465) target = $region84
      $region83: #{bert_word_encoder.1} parent=5 // pred_region
        %s469 = ssub.s32 %s25, 1
        %p470 = pneg %p46
        %p471 = pneg %p43
        %p472 = scmp.lt.s32.totalorder %s30, 1
        %s473 = scalar_select %p472, %s30, 1
        %s474 = smul.addr %s473, 8
        %s475 = scalar_lea.vmem %s1, %s474
        %p476 = pneg %p72
        %p477 = pneg %p69
        %p478 = pneg %p93
        %p479 = pneg %p90
        %p480 = pneg %p114
        %p481 = pneg %p111
        %p482 = pneg %p135
        %p483 = pneg %p132
        %p484 = pneg %p156
        %p485 = pneg %p153
        %p486 = pneg %p177
        %p487 = pneg %p174
        %p488 = pneg %p198
        %p489 = pneg %p195
        %p490 = pneg %p219
        %p491 = pneg %p216
        %p492 = pneg %p240
        %p493 = pneg %p237
        %p494 = pneg %p261
        %p495 = pneg %p258
        %p496 = pneg %p282
        %p497 = pneg %p279
        %p498 = pneg %p303
        %p499 = pneg %p300
        %p500 = pneg %p324
        %p501 = pneg %p321
        %p502 = pneg %p345
        %p503 = pneg %p342
        %p504 = pneg %p366
        %p505 = pneg %p363
        %p506 = pneg %p392
        %p507 = pneg %p389
        %s508 = sand.u32 %s379, 1
        %s509 = scalar_lea.sflag [#allocation3], %s508
        %s510 = sand.u32 %s379, 1
        %s511 = smul.addr %s510, 8
        %s512 = scalar_lea.vmem [#allocation2], %s511
        %p513 = scmp.lt.s32.totalorder %s30, 1
        %s514 = scalar_select %p513, %s30, 1
        %s515 = smul.addr %s514, 8
        %s516 = scalar_lea.vmem %s1, %s515
        %s518 = scalar_lea.vmem %s0, %s30
        %v519 = vld [vmem:[%s518] sm:$0x1]
        %v520 = vsub.f32 1.0, %v519
        %v521 = vmul.f32 %v520, -10000.0
        %v522 = vld [vmem:[%s516] sm:$0xff]
        %v523 = vld [vmem:[%s2] sm:$0x1]
        %v524 = vld [vmem:[%s3] sm:$0x1]
        %vm525 = vcmask 261120
        %v526 = vsel %vm525, %v522, 0.0
        %527 = vadd.xlane.f32.xlu0 %v526
        %v528 = vpop.xlane.xlu0 %527
        %v529 = vrcp.pop 32.0
        %v530 = vmul.f32 %v528, %v529
        %v531 = vmul.f32 %v522, %v522
        %v532 = vsel %vm525, %v531, 0.0
        %533 = vadd.xlane.f32.xlu0 %v532
        %v534 = vpop.xlane.xlu0 %533
        %v535 = vmul.f32 %v534, %v529
        %v536 = vmul.f32 %v530, %v530
        %v537 = vsub.f32 %v535, %v536
        %v538 = vsub.f32 %v522, %v530
        %v539 = vadd.f32 %v537, 1e-05
        %v540 = vrsqrt.pop %v539
        %v541 = vmul.f32 %v538, %v540
        %v543 = vlaneseq
        %v544 = vshrl.u32 %v543, 7
        %v545 = vsub.s32 0, %v544
        %v546 = vrot.slane %v523, %v545
        %v548 = vmul.f32 %v541, %v546
        %v550 = vlaneseq
        %v551 = vshrl.u32 %v550, 7
        %v552 = vsub.s32 0, %v551
        %v553 = vrot.slane %v524, %v552
        %v555 = vadd.f32 %v548, %v553
        %v556 = vpack.c.bf16 %v555, %v555
        %v557 = vld [vmem:[%s4] sm:$0xf]
        %v558 = vld [vmem:[%s4 + $0x4] sm:$0xf]
        %v559 = vld [vmem:[%s4 + $0x8] sm:$0xf]
        %v560 = vld [vmem:[%s4 + $0xc] sm:$0xf]
        %v561 = vld [vmem:[%s5] sm:$0x1]
        %v563 = vlaneseq
        %v564 = vshrl.u32 %v563, 7
        %v565 = vsub.s32 0, %v564
        %v566 = vrot.slane %v561, %v565
        %v572 = vunpack.c.l.b16 %v557
        %v573 = vunpack.c.l.b16 %v558
        %v574 = vunpack.c.l.b16 %v559
        %v575 = vunpack.c.l.b16 %v560
        %v576 = vpack.c.b16 %v573, %v572
        %v577 = vpack.c.b16 %v575, %v574
        %v581 = vsel %vm525, %v556, 0
        %583 = vmatprep.subr.bf16.mxu0 0
        %584 = vmatpush1.bf16.msra.mxu0 0
        %585 = vmatprep.subr.bf16.mxu0 0
        %586 = vmatpush1.bf16.msra.mxu0 0
        %587 = vmatprep.subr.bf16.mxu0 0
        %588 = vmatpush1.bf16.msra.mxu0 0
        %589 = vmatprep.subr.bf16.mxu0 0
        %590 = vmatpush1.bf16.msra.mxu0 0
        %591 = vmatprep.subr.bf16.mxu0 0
        %592 = vmatpush1.bf16.msra.mxu0 0
        %593 = vmatprep.subr.bf16.mxu0 0
        %594 = vmatpush1.bf16.msra.mxu0 0
        %595 = vmatprep.subr.bf16.mxu0 0
        %596 = vmatpush1.bf16.msra.mxu0 %v577
        %597 = vmatprep.subr.bf16.mxu0 0
        %598 = vmatpush1.bf16.msra.mxu0 %v576
        %599 = vmatprep.subr.bf16.mxu0 0
        %600 = vmatpush2.bf16.msra.mxu0 0
        %601 = vmatprep.subr.bf16.mxu0 0
        %602 = vmatpush2.bf16.msra.mxu0 0
        %603 = vmatprep.subr.bf16.mxu0 0
        %604 = vmatpush2.bf16.msra.mxu0 0
        %605 = vmatprep.subr.bf16.mxu0 0
        %606 = vmatpush2.bf16.msra.mxu0 0
        %607 = vmatprep.subr.bf16.mxu0 0
        %608 = vmatpush2.bf16.msra.mxu0 0
        %609 = vmatprep.subr.bf16.mxu0 0
        %610 = vmatpush2.bf16.msra.mxu0 0
        %611 = vmatprep.subr.bf16.mxu0 0
        %612 = vmatpush2.bf16.msra.mxu0 0
        %613 = vmatprep.subr.bf16.mxu0 0
        %614 = vmatpush2.bf16.msra.mxu0 0
        %615 = vmatprep.mubr.bf16.mxu0 0
        %616 = vmatmul.mubr.bf16.gmra.mxu0 %v581
        %v617 = vpop.f32.mrf.mxu0
        %v618 = vadd.f32 %v566, %v617
        %v619 = vpop.f32.mrf.mxu0
        %v620 = vpop.f32.mrf.mxu0
        %v621 = vpop.f32.mrf.mxu0
        %622 = vdwg.mxu0
        %v623 = vpack.c.bf16 %v618, %v618
        %v624 = vlaneseq
        %v625 = vshrl.u32 %v624, 7
        %v626 = vsub.s32 0, %v625
        %v627 = vrot.slane %v521, %v626
        %629 = vrot.lane.b32.xlu0 %v623, 96
        %v630 = vpop.permute.xlu0 %629
        %vm631 = vcmask 130048
        %v633 = vsel %vm631, %v623, 0
        %v636 = vsel %vm631, %v630, 0
        %638 = vmatprep.subr.bf16.mxu0 0
        %639 = vmatpush1.bf16.xpose.msra.mxu0 0
        %640 = vmatprep.subr.bf16.mxu0 0
        %641 = vmatpush1.bf16.xpose.msra.mxu0 0
        %642 = vmatprep.subr.bf16.mxu0 0
        %643 = vmatpush1.bf16.xpose.msra.mxu0 0
        %644 = vmatprep.subr.bf16.mxu0 0
        %645 = vmatpush1.bf16.xpose.msra.mxu0 0
        %646 = vmatprep.subr.bf16.mxu0 0
        %647 = vmatpush1.bf16.xpose.msra.mxu0 0
        %648 = vmatprep.subr.bf16.mxu0 0
        %649 = vmatpush1.bf16.xpose.msra.mxu0 0
        %650 = vmatprep.subr.bf16.mxu0 0
        %651 = vmatpush1.bf16.xpose.msra.mxu0 0
        %652 = vmatprep.subr.bf16.mxu0 0
        %653 = vmatpush1.bf16.xpose.msra.mxu0 %v636
        %654 = vmatprep.subr.bf16.mxu0 0
        %655 = vmatpush2.bf16.xpose.msra.mxu0 0
        %656 = vmatprep.subr.bf16.mxu0 0
        %657 = vmatpush2.bf16.xpose.msra.mxu0 0
        %658 = vmatprep.subr.bf16.mxu0 0
        %659 = vmatpush2.bf16.xpose.msra.mxu0 0
        %660 = vmatprep.subr.bf16.mxu0 0
        %661 = vmatpush2.bf16.xpose.msra.mxu0 0
        %662 = vmatprep.subr.bf16.mxu0 0
        %663 = vmatpush2.bf16.xpose.msra.mxu0 0
        %664 = vmatprep.subr.bf16.mxu0 0
        %665 = vmatpush2.bf16.xpose.msra.mxu0 0
        %666 = vmatprep.subr.bf16.mxu0 0
        %667 = vmatpush2.bf16.xpose.msra.mxu0 0
        %668 = vmatprep.subr.bf16.mxu0 0
        %669 = vmatpush2.bf16.xpose.msra.mxu0 0
        %670 = vmatprep.mubr.bf16.mxu0 0
        %671 = vmatmul.mubr.bf16.gmra.mxu0 %v633
        %v672 = vpop.f32.mrf.mxu0
        %v673 = vadd.f32 %v627, %v672
        %v674 = vpop.f32.mrf.mxu0
        %v675 = vpop.f32.mrf.mxu0
        %v676 = vpop.f32.mrf.mxu0
        %677 = vdwg.mxu0
        %vm678 = vcmask 64512
        %v679 = vsel %vm678, %v673, -inf
        %680 = vmax.xlane.f32.xlu0 %v679
        %v681 = vpop.xlane.xlu0 %680
        %v682 = vsub.f32 %v673, %v681
        %v683 = vmul.f32 %v682, 1.442695
        %v684 = vpow.pop %v683
        %v685 = vsel %vm678, %v684, 0.0
        %686 = vadd.xlane.f32.xlu0 %v685
        %v687 = vpop.xlane.xlu0 %686
        %v688 = vrcp.pop %v687
        %v689 = vmul.f32 %v684, %v688
        %v690 = vpack.c.bf16 %v689, %v689
        %691 = vrot.lane.b32.xlu0 %v623, 64
        %v692 = vpop.permute.xlu0 %691
        %v694 = vsel %vm678, %v690, 0
        %vm696 = vcmask 1043456
        %v698 = vsel %vm696, %v692, 0
        %700 = vmatprep.subr.bf16.mxu0 0
        %701 = vmatpush1.bf16.msra.mxu0 0
        %702 = vmatprep.subr.bf16.mxu0 0
        %703 = vmatpush1.bf16.msra.mxu0 0
        %704 = vmatprep.subr.bf16.mxu0 0
        %705 = vmatpush1.bf16.msra.mxu0 0
        %706 = vmatprep.subr.bf16.mxu0 0
        %707 = vmatpush1.bf16.msra.mxu0 0
        %708 = vmatprep.subr.bf16.mxu0 0
        %709 = vmatpush1.bf16.msra.mxu0 0
        %710 = vmatprep.subr.bf16.mxu0 0
        %711 = vmatpush1.bf16.msra.mxu0 0
        %712 = vmatprep.subr.bf16.mxu0 0
        %713 = vmatpush1.bf16.msra.mxu0 0
        %714 = vmatprep.subr.bf16.mxu0 0
        %715 = vmatpush1.bf16.msra.mxu0 %v698
        %716 = vmatprep.subr.bf16.mxu0 0
        %717 = vmatpush2.bf16.msra.mxu0 0
        %718 = vmatprep.subr.bf16.mxu0 0
        %719 = vmatpush2.bf16.msra.mxu0 0
        %720 = vmatprep.subr.bf16.mxu0 0
        %721 = vmatpush2.bf16.msra.mxu0 0
        %722 = vmatprep.subr.bf16.mxu0 0
        %723 = vmatpush2.bf16.msra.mxu0 0
        %724 = vmatprep.subr.bf16.mxu0 0
        %725 = vmatpush2.bf16.msra.mxu0 0
        %726 = vmatprep.subr.bf16.mxu0 0
        %727 = vmatpush2.bf16.msra.mxu0 0
        %728 = vmatprep.subr.bf16.mxu0 0
        %729 = vmatpush2.bf16.msra.mxu0 0
        %730 = vmatprep.subr.bf16.mxu0 0
        %731 = vmatpush2.bf16.msra.mxu0 0
        %732 = vmatprep.mubr.bf16.mxu0 0
        %733 = vmatmul.mubr.bf16.gmra.mxu0 %v694
        %v734 = vpop.f32.mrf.mxu0
        %v735 = vadd.f32 0.0, %v734
        %v736 = vpop.f32.mrf.mxu0
        %v737 = vpop.f32.mrf.mxu0
        %v738 = vpop.f32.mrf.mxu0
        %739 = vdwg.mxu0
        %740 = vrot.lane.b32.xlu0 %v623, 112
        %v741 = vpop.permute.xlu0 %740
        %742 = vrot.lane.b32.xlu0 %v623, 80
        %v743 = vpop.permute.xlu0 %742
        %v745 = vsel %vm631, %v741, 0
        %v748 = vsel %vm631, %v743, 0
        %750 = vmatprep.subr.bf16.mxu0 0
        %751 = vmatpush1.bf16.xpose.msra.mxu0 0
        %752 = vmatprep.subr.bf16.mxu0 0
        %753 = vmatpush1.bf16.xpose.msra.mxu0 0
        %754 = vmatprep.subr.bf16.mxu0 0
        %755 = vmatpush1.bf16.xpose.msra.mxu0 0
        %756 = vmatprep.subr.bf16.mxu0 0
        %757 = vmatpush1.bf16.xpose.msra.mxu0 0
        %758 = vmatprep.subr.bf16.mxu0 0
        %759 = vmatpush1.bf16.xpose.msra.mxu0 0
        %760 = vmatprep.subr.bf16.mxu0 0
        %761 = vmatpush1.bf16.xpose.msra.mxu0 0
        %762 = vmatprep.subr.bf16.mxu0 0
        %763 = vmatpush1.bf16.xpose.msra.mxu0 0
        %764 = vmatprep.subr.bf16.mxu0 0
        %765 = vmatpush1.bf16.xpose.msra.mxu0 %v748
        %766 = vmatprep.subr.bf16.mxu0 0
        %767 = vmatpush2.bf16.xpose.msra.mxu0 0
        %768 = vmatprep.subr.bf16.mxu0 0
        %769 = vmatpush2.bf16.xpose.msra.mxu0 0
        %770 = vmatprep.subr.bf16.mxu0 0
        %771 = vmatpush2.bf16.xpose.msra.mxu0 0
        %772 = vmatprep.subr.bf16.mxu0 0
        %773 = vmatpush2.bf16.xpose.msra.mxu0 0
        %774 = vmatprep.subr.bf16.mxu0 0
        %775 = vmatpush2.bf16.xpose.msra.mxu0 0
        %776 = vmatprep.subr.bf16.mxu0 0
        %777 = vmatpush2.bf16.xpose.msra.mxu0 0
        %778 = vmatprep.subr.bf16.mxu0 0
        %779 = vmatpush2.bf16.xpose.msra.mxu0 0
        %780 = vmatprep.subr.bf16.mxu0 0
        %781 = vmatpush2.bf16.xpose.msra.mxu0 0
        %782 = vmatprep.mubr.bf16.mxu0 0
        %783 = vmatmul.mubr.bf16.gmra.mxu0 %v745
        %v784 = vpop.f32.mrf.mxu0
        %v785 = vadd.f32 %v627, %v784
        %v786 = vpop.f32.mrf.mxu0
        %v787 = vpop.f32.mrf.mxu0
        %v788 = vpop.f32.mrf.mxu0
        %789 = vdwg.mxu0
        %v790 = vsel %vm678, %v785, -inf
        %791 = vmax.xlane.f32.xlu0 %v790
        %v792 = vpop.xlane.xlu0 %791
        %v793 = vsub.f32 %v785, %v792
        %v794 = vmul.f32 %v793, 1.442695
        %v795 = vpow.pop %v794
        %v796 = vsel %vm678, %v795, 0.0
        %797 = vadd.xlane.f32.xlu0 %v796
        %v798 = vpop.xlane.xlu0 %797
        %v799 = vrcp.pop %v798
        %v800 = vmul.f32 %v795, %v799
        %v801 = vpack.c.bf16 %v800, %v800
        %802 = vrot.lane.b32.xlu0 %v623, 48
        %v803 = vpop.permute.xlu0 %802
        %v805 = vsel %vm678, %v801, 0
        %v808 = vsel %vm696, %v803, 0
        %810 = vmatprep.subr.bf16.mxu0 0
        %811 = vmatpush1.bf16.msra.mxu0 0
        %812 = vmatprep.subr.bf16.mxu0 0
        %813 = vmatpush1.bf16.msra.mxu0 0
        %814 = vmatprep.subr.bf16.mxu0 0
        %815 = vmatpush1.bf16.msra.mxu0 0
        %816 = vmatprep.subr.bf16.mxu0 0
        %817 = vmatpush1.bf16.msra.mxu0 0
        %818 = vmatprep.subr.bf16.mxu0 0
        %819 = vmatpush1.bf16.msra.mxu0 0
        %820 = vmatprep.subr.bf16.mxu0 0
        %821 = vmatpush1.bf16.msra.mxu0 0
        %822 = vmatprep.subr.bf16.mxu0 0
        %823 = vmatpush1.bf16.msra.mxu0 0
        %824 = vmatprep.subr.bf16.mxu0 0
        %825 = vmatpush1.bf16.msra.mxu0 %v808
        %826 = vmatprep.subr.bf16.mxu0 0
        %827 = vmatpush2.bf16.msra.mxu0 0
        %828 = vmatprep.subr.bf16.mxu0 0
        %829 = vmatpush2.bf16.msra.mxu0 0
        %830 = vmatprep.subr.bf16.mxu0 0
        %831 = vmatpush2.bf16.msra.mxu0 0
        %832 = vmatprep.subr.bf16.mxu0 0
        %833 = vmatpush2.bf16.msra.mxu0 0
        %834 = vmatprep.subr.bf16.mxu0 0
        %835 = vmatpush2.bf16.msra.mxu0 0
        %836 = vmatprep.subr.bf16.mxu0 0
        %837 = vmatpush2.bf16.msra.mxu0 0
        %838 = vmatprep.subr.bf16.mxu0 0
        %839 = vmatpush2.bf16.msra.mxu0 0
        %840 = vmatprep.subr.bf16.mxu0 0
        %841 = vmatpush2.bf16.msra.mxu0 0
        %842 = vmatprep.mubr.bf16.mxu0 0
        %843 = vmatmul.mubr.bf16.gmra.mxu0 %v805
        %v844 = vpop.f32.mrf.mxu0
        %v845 = vadd.f32 0.0, %v844
        %v846 = vpop.f32.mrf.mxu0
        %v847 = vpop.f32.mrf.mxu0
        %v848 = vpop.f32.mrf.mxu0
        %849 = vdwg.mxu0
        %851 = vrot.lane.b32.xlu0 %v845, 16
        %v852 = vpop.permute.xlu0 %851
        %v854 = vsel %vm631, %v735, %v852
        %v855 = vpack.c.bf16 %v854, %v854
        %v856 = vld [vmem:[%s6] sm:$0xf]
        %v857 = vld [vmem:[%s6 + $0x4] sm:$0xf]
        %v858 = vld [vmem:[%s6 + $0x8] sm:$0xf]
        %v859 = vld [vmem:[%s6 + $0xc] sm:$0xf]
        %v860 = vld [vmem:[%s7] sm:$0x1]
        %v862 = vlaneseq
        %v863 = vshrl.u32 %v862, 7
        %v864 = vsub.s32 0, %v863
        %v865 = vrot.slane %v860, %v864
        %v871 = vunpack.c.l.b16 %v856
        %v872 = vunpack.c.l.b16 %v857
        %v873 = vunpack.c.l.b16 %v858
        %v874 = vunpack.c.l.b16 %v859
        %v875 = vpack.c.b16 %v872, %v871
        %v876 = vpack.c.b16 %v874, %v873
        %v880 = vsel %vm525, %v855, 0
        %882 = vmatprep.subr.bf16.mxu0 0
        %883 = vmatpush1.bf16.msra.mxu0 0
        %884 = vmatprep.subr.bf16.mxu0 0
        %885 = vmatpush1.bf16.msra.mxu0 0
        %886 = vmatprep.subr.bf16.mxu0 0
        %887 = vmatpush1.bf16.msra.mxu0 0
        %888 = vmatprep.subr.bf16.mxu0 0
        %889 = vmatpush1.bf16.msra.mxu0 0
        %890 = vmatprep.subr.bf16.mxu0 0
        %891 = vmatpush1.bf16.msra.mxu0 0
        %892 = vmatprep.subr.bf16.mxu0 0
        %893 = vmatpush1.bf16.msra.mxu0 0
        %894 = vmatprep.subr.bf16.mxu0 0
        %895 = vmatpush1.bf16.msra.mxu0 %v876
        %896 = vmatprep.subr.bf16.mxu0 0
        %897 = vmatpush1.bf16.msra.mxu0 %v875
        %898 = vmatprep.subr.bf16.mxu0 0
        %899 = vmatpush2.bf16.msra.mxu0 0
        %900 = vmatprep.subr.bf16.mxu0 0
        %901 = vmatpush2.bf16.msra.mxu0 0
        %902 = vmatprep.subr.bf16.mxu0 0
        %903 = vmatpush2.bf16.msra.mxu0 0
        %904 = vmatprep.subr.bf16.mxu0 0
        %905 = vmatpush2.bf16.msra.mxu0 0
        %906 = vmatprep.subr.bf16.mxu0 0
        %907 = vmatpush2.bf16.msra.mxu0 0
        %908 = vmatprep.subr.bf16.mxu0 0
        %909 = vmatpush2.bf16.msra.mxu0 0
        %910 = vmatprep.subr.bf16.mxu0 0
        %911 = vmatpush2.bf16.msra.mxu0 0
        %912 = vmatprep.subr.bf16.mxu0 0
        %913 = vmatpush2.bf16.msra.mxu0 0
        %914 = vmatprep.mubr.bf16.mxu0 0
        %915 = vmatmul.mubr.bf16.gmra.mxu0 %v880
        %v916 = vpop.f32.mrf.mxu0
        %v917 = vadd.f32 %v865, %v916
        %v918 = vpop.f32.mrf.mxu0
        %v919 = vpop.f32.mrf.mxu0
        %v920 = vpop.f32.mrf.mxu0
        %921 = vdwg.mxu0
        %v922 = vadd.f32 %v917, %v555
        %v923 = vld [vmem:[%s8] sm:$0x1]
        %v924 = vld [vmem:[%s9] sm:$0x1]
        %v925 = vsel %vm525, %v922, 0.0
        %926 = vadd.xlane.f32.xlu0 %v925
        %v927 = vpop.xlane.xlu0 %926
        %v928 = vmul.f32 %v927, %v529
        %v929 = vmul.f32 %v922, %v922
        %v930 = vsel %vm525, %v929, 0.0
        %931 = vadd.xlane.f32.xlu0 %v930
        %v932 = vpop.xlane.xlu0 %931
        %v933 = vmul.f32 %v932, %v529
        %v934 = vmul.f32 %v928, %v928
        %v935 = vsub.f32 %v933, %v934
        %v936 = vsub.f32 %v922, %v928
        %v937 = vadd.f32 %v935, 1e-05
        %v938 = vrsqrt.pop %v937
        %v939 = vmul.f32 %v936, %v938
        %v941 = vlaneseq
        %v942 = vshrl.u32 %v941, 7
        %v943 = vsub.s32 0, %v942
        %v944 = vrot.slane %v923, %v943
        %v946 = vmul.f32 %v939, %v944
        %v948 = vlaneseq
        %v949 = vshrl.u32 %v948, 7
        %v950 = vsub.s32 0, %v949
        %v951 = vrot.slane %v924, %v950
        %v953 = vadd.f32 %v946, %v951
        %v954 = vpack.c.bf16 %v953, %v953
        %v955 = vld [vmem:[%s10] sm:$0xf]
        %v956 = vld [vmem:[%s10 + $0x4] sm:$0xf]
        %v957 = vld [vmem:[%s10 + $0x8] sm:$0xf]
        %v958 = vld [vmem:[%s10 + $0xc] sm:$0xf]
        %v959 = vld [vmem:[%s11] sm:$0x1]
        %v961 = vlaneseq
        %v962 = vshrl.u32 %v961, 7
        %v963 = vsub.s32 0, %v962
        %v964 = vrot.slane %v959, %v963
        %v970 = vunpack.c.l.b16 %v955
        %v971 = vunpack.c.l.b16 %v956
        %v972 = vunpack.c.l.b16 %v957
        %v973 = vunpack.c.l.b16 %v958
        %v974 = vpack.c.b16 %v971, %v970
        %v975 = vpack.c.b16 %v973, %v972
        %v979 = vsel %vm525, %v954, 0
        %981 = vmatprep.subr.bf16.mxu0 0
        %982 = vmatpush1.bf16.msra.mxu0 0
        %983 = vmatprep.subr.bf16.mxu0 0
        %984 = vmatpush1.bf16.msra.mxu0 0
        %985 = vmatprep.subr.bf16.mxu0 0
        %986 = vmatpush1.bf16.msra.mxu0 0
        %987 = vmatprep.subr.bf16.mxu0 0
        %988 = vmatpush1.bf16.msra.mxu0 0
        %989 = vmatprep.subr.bf16.mxu0 0
        %990 = vmatpush1.bf16.msra.mxu0 0
        %991 = vmatprep.subr.bf16.mxu0 0
        %992 = vmatpush1.bf16.msra.mxu0 0
        %993 = vmatprep.subr.bf16.mxu0 0
        %994 = vmatpush1.bf16.msra.mxu0 %v975
        %995 = vmatprep.subr.bf16.mxu0 0
        %996 = vmatpush1.bf16.msra.mxu0 %v974
        %997 = vmatprep.subr.bf16.mxu0 0
        %998 = vmatpush2.bf16.msra.mxu0 0
        %999 = vmatprep.subr.bf16.mxu0 0
        %1000 = vmatpush2.bf16.msra.mxu0 0
        %1001 = vmatprep.subr.bf16.mxu0 0
        %1002 = vmatpush2.bf16.msra.mxu0 0
        %1003 = vmatprep.subr.bf16.mxu0 0
        %1004 = vmatpush2.bf16.msra.mxu0 0
        %1005 = vmatprep.subr.bf16.mxu0 0
        %1006 = vmatpush2.bf16.msra.mxu0 0
        %1007 = vmatprep.subr.bf16.mxu0 0
        %1008 = vmatpush2.bf16.msra.mxu0 0
        %1009 = vmatprep.subr.bf16.mxu0 0
        %1010 = vmatpush2.bf16.msra.mxu0 0
        %1011 = vmatprep.subr.bf16.mxu0 0
        %1012 = vmatpush2.bf16.msra.mxu0 0
        %1013 = vmatprep.mubr.bf16.mxu0 0
        %1014 = vmatmul.mubr.bf16.gmra.mxu0 %v979
        %v1015 = vpop.f32.mrf.mxu0
        %v1016 = vadd.f32 %v964, %v1015
        %v1017 = vpop.f32.mrf.mxu0
        %v1018 = vpop.f32.mrf.mxu0
        %v1019 = vpop.f32.mrf.mxu0
        %1020 = vdwg.mxu0
        %v1021 = vmul.f32 %v1016, 0.5
        %v1022 = vmul.f32 %v1016, 0.044715
        %v1023 = vmul.f32 %v1022, %v1016
        %v1024 = vmul.f32 %v1023, %v1016
        %v1025 = vadd.f32 %v1016, %v1024
        %v1026 = vmul.f32 %v1025, 0.7978846
        %v1027 = vtanh.pop %v1026
        %v1028 = vadd.f32 %v1027, 1.0
        %v1029 = vmul.f32 %v1021, %v1028
        %v1030 = vpack.c.bf16 %v1029, %v1029
        %v1031 = vld [vmem:[%s12] sm:$0xf]
        %v1032 = vld [vmem:[%s12 + $0x4] sm:$0xf]
        %v1033 = vld [vmem:[%s12 + $0x8] sm:$0xf]
        %v1034 = vld [vmem:[%s12 + $0xc] sm:$0xf]
        %v1035 = vld [vmem:[%s12 + $0x10] sm:$0xf]
        %v1036 = vld [vmem:[%s12 + $0x14] sm:$0xf]
        %v1037 = vld [vmem:[%s12 + $0x18] sm:$0xf]
        %v1038 = vld [vmem:[%s12 + $0x1c] sm:$0xf]
        %v1039 = vld [vmem:[%s13] sm:$0x1]
        %v1041 = vlaneseq
        %v1042 = vshrl.u32 %v1041, 7
        %v1043 = vsub.s32 0, %v1042
        %v1044 = vrot.slane %v1039, %v1043
        %v1054 = vunpack.c.l.b16 %v1031
        %v1055 = vunpack.c.l.b16 %v1032
        %v1056 = vunpack.c.l.b16 %v1033
        %v1057 = vunpack.c.l.b16 %v1034
        %v1058 = vunpack.c.l.b16 %v1035
        %v1059 = vunpack.c.l.b16 %v1036
        %v1060 = vunpack.c.l.b16 %v1037
        %v1061 = vunpack.c.l.b16 %v1038
        %v1062 = vpack.c.b16 %v1055, %v1054
        %v1063 = vpack.c.b16 %v1057, %v1056
        %v1064 = vpack.c.b16 %v1059, %v1058
        %v1065 = vpack.c.b16 %v1061, %v1060
        %vm1070 = vcmask 523264
        %v1072 = vsel %vm1070, %v1030, 0
        %1074 = vmatprep.subr.bf16.mxu0 0
        %1075 = vmatpush1.bf16.msra.mxu0 0
        %1076 = vmatprep.subr.bf16.mxu0 0
        %1077 = vmatpush1.bf16.msra.mxu0 0
        %1078 = vmatprep.subr.bf16.mxu0 0
        %1079 = vmatpush1.bf16.msra.mxu0 0
        %1080 = vmatprep.subr.bf16.mxu0 0
        %1081 = vmatpush1.bf16.msra.mxu0 0
        %1082 = vmatprep.subr.bf16.mxu0 0
        %1083 = vmatpush1.bf16.msra.mxu0 %v1065
        %1084 = vmatprep.subr.bf16.mxu0 0
        %1085 = vmatpush1.bf16.msra.mxu0 %v1064
        %1086 = vmatprep.subr.bf16.mxu0 0
        %1087 = vmatpush1.bf16.msra.mxu0 %v1063
        %1088 = vmatprep.subr.bf16.mxu0 0
        %1089 = vmatpush1.bf16.msra.mxu0 %v1062
        %1090 = vmatprep.subr.bf16.mxu0 0
        %1091 = vmatpush2.bf16.msra.mxu0 0
        %1092 = vmatprep.subr.bf16.mxu0 0
        %1093 = vmatpush2.bf16.msra.mxu0 0
        %1094 = vmatprep.subr.bf16.mxu0 0
        %1095 = vmatpush2.bf16.msra.mxu0 0
        %1096 = vmatprep.subr.bf16.mxu0 0
        %1097 = vmatpush2.bf16.msra.mxu0 0
        %1098 = vmatprep.subr.bf16.mxu0 0
        %1099 = vmatpush2.bf16.msra.mxu0 0
        %1100 = vmatprep.subr.bf16.mxu0 0
        %1101 = vmatpush2.bf16.msra.mxu0 0
        %1102 = vmatprep.subr.bf16.mxu0 0
        %1103 = vmatpush2.bf16.msra.mxu0 0
        %1104 = vmatprep.subr.bf16.mxu0 0
        %1105 = vmatpush2.bf16.msra.mxu0 0
        %1106 = vmatprep.mubr.bf16.mxu0 0
        %1107 = vmatmul.mubr.bf16.gmra.mxu0 %v1072
        %v1108 = vpop.f32.mrf.mxu0
        %v1109 = vadd.f32 %v1044, %v1108
        %v1110 = vpop.f32.mrf.mxu0
        %v1111 = vpop.f32.mrf.mxu0
        %v1112 = vpop.f32.mrf.mxu0
        %1113 = vdwg.mxu0
        %v1114 = vadd.f32 %v1109, %v953
        %v1115 = vld [vmem:[%s14] sm:$0x1]
        %v1116 = vld [vmem:[%s15] sm:$0x1]
        %v1117 = vsel %vm525, %v1114, 0.0
        %1118 = vadd.xlane.f32.xlu0 %v1117
        %v1119 = vpop.xlane.xlu0 %1118
        %v1120 = vmul.f32 %v1119, %v529
        %v1121 = vmul.f32 %v1114, %v1114
        %v1122 = vsel %vm525, %v1121, 0.0
        %1123 = vadd.xlane.f32.xlu0 %v1122
        %v1124 = vpop.xlane.xlu0 %1123
        %v1125 = vmul.f32 %v1124, %v529
        %v1126 = vmul.f32 %v1120, %v1120
        %v1127 = vsub.f32 %v1125, %v1126
        %v1128 = vsub.f32 %v1114, %v1120
        %v1129 = vadd.f32 %v1127, 1e-05
        %v1130 = vrsqrt.pop %v1129
        %v1131 = vmul.f32 %v1128, %v1130
        %v1133 = vlaneseq
        %v1134 = vshrl.u32 %v1133, 7
        %v1135 = vsub.s32 0, %v1134
        %v1136 = vrot.slane %v1115, %v1135
        %v1138 = vmul.f32 %v1131, %v1136
        %v1140 = vlaneseq
        %v1141 = vshrl.u32 %v1140, 7
        %v1142 = vsub.s32 0, %v1141
        %v1143 = vrot.slane %v1116, %v1142
        %v1145 = vadd.f32 %v1138, %v1143
        %v1146 = vadd.f32 %v1145, 0.0
        %v1147 = vpack.c.bf16 %v1145, %v1145
        %s1148 = scalar_lea.vmem %s4, 16
        %v1149 = vld [vmem:[%s1148] sm:$0xf]
        %v1150 = vld [vmem:[%s1148 + $0x4] sm:$0xf]
        %v1151 = vld [vmem:[%s1148 + $0x8] sm:$0xf]
        %v1152 = vld [vmem:[%s1148 + $0xc] sm:$0xf]
        %s1153 = scalar_lea.vmem %s5, 1
        %v1154 = vld [vmem:[%s1153] sm:$0x1]
        %v1156 = vlaneseq
        %v1157 = vshrl.u32 %v1156, 7
        %v1158 = vsub.s32 0, %v1157
        %v1159 = vrot.slane %v1154, %v1158
        %v1165 = vunpack.c.l.b16 %v1149
        %v1166 = vunpack.c.l.b16 %v1150
        %v1167 = vunpack.c.l.b16 %v1151
        %v1168 = vunpack.c.l.b16 %v1152
        %v1169 = vpack.c.b16 %v1166, %v1165
        %v1170 = vpack.c.b16 %v1168, %v1167
        %v1174 = vsel %vm525, %v1147, 0
        %1176 = vmatprep.subr.bf16.mxu0 0
        %1177 = vmatpush1.bf16.msra.mxu0 0
        %1178 = vmatprep.subr.bf16.mxu0 0
        %1179 = vmatpush1.bf16.msra.mxu0 0
        %1180 = vmatprep.subr.bf16.mxu0 0
        %1181 = vmatpush1.bf16.msra.mxu0 0
        %1182 = vmatprep.subr.bf16.mxu0 0
        %1183 = vmatpush1.bf16.msra.mxu0 0
        %1184 = vmatprep.subr.bf16.mxu0 0
        %1185 = vmatpush1.bf16.msra.mxu0 0
        %1186 = vmatprep.subr.bf16.mxu0 0
        %1187 = vmatpush1.bf16.msra.mxu0 0
        %1188 = vmatprep.subr.bf16.mxu0 0
        %1189 = vmatpush1.bf16.msra.mxu0 %v1170
        %1190 = vmatprep.subr.bf16.mxu0 0
        %1191 = vmatpush1.bf16.msra.mxu0 %v1169
        %1192 = vmatprep.subr.bf16.mxu0 0
        %1193 = vmatpush2.bf16.msra.mxu0 0
        %1194 = vmatprep.subr.bf16.mxu0 0
        %1195 = vmatpush2.bf16.msra.mxu0 0
        %1196 = vmatprep.subr.bf16.mxu0 0
        %1197 = vmatpush2.bf16.msra.mxu0 0
        %1198 = vmatprep.subr.bf16.mxu0 0
        %1199 = vmatpush2.bf16.msra.mxu0 0
        %1200 = vmatprep.subr.bf16.mxu0 0
        %1201 = vmatpush2.bf16.msra.mxu0 0
        %1202 = vmatprep.subr.bf16.mxu0 0
        %1203 = vmatpush2.bf16.msra.mxu0 0
        %1204 = vmatprep.subr.bf16.mxu0 0
        %1205 = vmatpush2.bf16.msra.mxu0 0
        %1206 = vmatprep.subr.bf16.mxu0 0
        %1207 = vmatpush2.bf16.msra.mxu0 0
        %1208 = vmatprep.mubr.bf16.mxu0 0
        %1209 = vmatmul.mubr.bf16.gmra.mxu0 %v1174
        %v1210 = vpop.f32.mrf.mxu0
        %v1211 = vadd.f32 %v1159, %v1210
        %v1212 = vpop.f32.mrf.mxu0
        %v1213 = vpop.f32.mrf.mxu0
        %v1214 = vpop.f32.mrf.mxu0
        %1215 = vdwg.mxu0
        %v1216 = vpack.c.bf16 %v1211, %v1211
        %1218 = vrot.lane.b32.xlu0 %v1216, 96
        %v1219 = vpop.permute.xlu0 %1218
        %v1221 = vsel %vm631, %v1216, 0
        %v1224 = vsel %vm631, %v1219, 0
        %1226 = vmatprep.subr.bf16.mxu0 0
        %1227 = vmatpush1.bf16.xpose.msra.mxu0 0
        %1228 = vmatprep.subr.bf16.mxu0 0
        %1229 = vmatpush1.bf16.xpose.msra.mxu0 0
        %1230 = vmatprep.subr.bf16.mxu0 0
        %1231 = vmatpush1.bf16.xpose.msra.mxu0 0
        %1232 = vmatprep.subr.bf16.mxu0 0
        %1233 = vmatpush1.bf16.xpose.msra.mxu0 0
        %1234 = vmatprep.subr.bf16.mxu0 0
        %1235 = vmatpush1.bf16.xpose.msra.mxu0 0
        %1236 = vmatprep.subr.bf16.mxu0 0
        %1237 = vmatpush1.bf16.xpose.msra.mxu0 0
        %1238 = vmatprep.subr.bf16.mxu0 0
        %1239 = vmatpush1.bf16.xpose.msra.mxu0 0
        %1240 = vmatprep.subr.bf16.mxu0 0
        %1241 = vmatpush1.bf16.xpose.msra.mxu0 %v1224
        %1242 = vmatprep.subr.bf16.mxu0 0
        %1243 = vmatpush2.bf16.xpose.msra.mxu0 0
        %1244 = vmatprep.subr.bf16.mxu0 0
        %1245 = vmatpush2.bf16.xpose.msra.mxu0 0
        %1246 = vmatprep.subr.bf16.mxu0 0
        %1247 = vmatpush2.bf16.xpose.msra.mxu0 0
        %1248 = vmatprep.subr.bf16.mxu0 0
        %1249 = vmatpush2.bf16.xpose.msra.mxu0 0
        %1250 = vmatprep.subr.bf16.mxu0 0
        %1251 = vmatpush2.bf16.xpose.msra.mxu0 0
        %1252 = vmatprep.subr.bf16.mxu0 0
        %1253 = vmatpush2.bf16.xpose.msra.mxu0 0
        %1254 = vmatprep.subr.bf16.mxu0 0
        %1255 = vmatpush2.bf16.xpose.msra.mxu0 0
        %1256 = vmatprep.subr.bf16.mxu0 0
        %1257 = vmatpush2.bf16.xpose.msra.mxu0 0
        %1258 = vmatprep.mubr.bf16.mxu0 0
        %1259 = vmatmul.mubr.bf16.gmra.mxu0 %v1221
        %v1260 = vpop.f32.mrf.mxu0
        %v1261 = vadd.f32 %v627, %v1260
        %v1262 = vpop.f32.mrf.mxu0
        %v1263 = vpop.f32.mrf.mxu0
        %v1264 = vpop.f32.mrf.mxu0
        %1265 = vdwg.mxu0
        %v1266 = vsel %vm678, %v1261, -inf
        %1267 = vmax.xlane.f32.xlu0 %v1266
        %v1268 = vpop.xlane.xlu0 %1267
        %v1269 = vsub.f32 %v1261, %v1268
        %v1270 = vmul.f32 %v1269, 1.442695
        %v1271 = vpow.pop %v1270
        %v1272 = vsel %vm678, %v1271, 0.0
        %1273 = vadd.xlane.f32.xlu0 %v1272
        %v1274 = vpop.xlane.xlu0 %1273
        %v1275 = vrcp.pop %v1274
        %v1276 = vmul.f32 %v1271, %v1275
        %v1277 = vpack.c.bf16 %v1276, %v1276
        %1278 = vrot.lane.b32.xlu0 %v1216, 64
        %v1279 = vpop.permute.xlu0 %1278
        %v1281 = vsel %vm678, %v1277, 0
        %v1284 = vsel %vm696, %v1279, 0
        %1286 = vmatprep.subr.bf16.mxu0 0
        %1287 = vmatpush1.bf16.msra.mxu0 0
        %1288 = vmatprep.subr.bf16.mxu0 0
        %1289 = vmatpush1.bf16.msra.mxu0 0
        %1290 = vmatprep.subr.bf16.mxu0 0
        %1291 = vmatpush1.bf16.msra.mxu0 0
        %1292 = vmatprep.subr.bf16.mxu0 0
        %1293 = vmatpush1.bf16.msra.mxu0 0
        %1294 = vmatprep.subr.bf16.mxu0 0
        %1295 = vmatpush1.bf16.msra.mxu0 0
        %1296 = vmatprep.subr.bf16.mxu0 0
        %1297 = vmatpush1.bf16.msra.mxu0 0
        %1298 = vmatprep.subr.bf16.mxu0 0
        %1299 = vmatpush1.bf16.msra.mxu0 0
        %1300 = vmatprep.subr.bf16.mxu0 0
        %1301 = vmatpush1.bf16.msra.mxu0 %v1284
        %1302 = vmatprep.subr.bf16.mxu0 0
        %1303 = vmatpush2.bf16.msra.mxu0 0
        %1304 = vmatprep.subr.bf16.mxu0 0
        %1305 = vmatpush2.bf16.msra.mxu0 0
        %1306 = vmatprep.subr.bf16.mxu0 0
        %1307 = vmatpush2.bf16.msra.mxu0 0
        %1308 = vmatprep.subr.bf16.mxu0 0
        %1309 = vmatpush2.bf16.msra.mxu0 0
        %1310 = vmatprep.subr.bf16.mxu0 0
        %1311 = vmatpush2.bf16.msra.mxu0 0
        %1312 = vmatprep.subr.bf16.mxu0 0
        %1313 = vmatpush2.bf16.msra.mxu0 0
        %1314 = vmatprep.subr.bf16.mxu0 0
        %1315 = vmatpush2.bf16.msra.mxu0 0
        %1316 = vmatprep.subr.bf16.mxu0 0
        %1317 = vmatpush2.bf16.msra.mxu0 0
        %1318 = vmatprep.mubr.bf16.mxu0 0
        %1319 = vmatmul.mubr.bf16.gmra.mxu0 %v1281
        %v1320 = vpop.f32.mrf.mxu0
        %v1321 = vadd.f32 0.0, %v1320
        %v1322 = vpop.f32.mrf.mxu0
        %v1323 = vpop.f32.mrf.mxu0
        %v1324 = vpop.f32.mrf.mxu0
        %1325 = vdwg.mxu0
        %1326 = vrot.lane.b32.xlu0 %v1216, 112
        %v1327 = vpop.permute.xlu0 %1326
        %1328 = vrot.lane.b32.xlu0 %v1216, 80
        %v1329 = vpop.permute.xlu0 %1328
        %v1331 = vsel %vm631, %v1327, 0
        %v1334 = vsel %vm631, %v1329, 0
        %1336 = vmatprep.subr.bf16.mxu0 0
        %1337 = vmatpush1.bf16.xpose.msra.mxu0 0
        %1338 = vmatprep.subr.bf16.mxu0 0
        %1339 = vmatpush1.bf16.xpose.msra.mxu0 0
        %1340 = vmatprep.subr.bf16.mxu0 0
        %1341 = vmatpush1.bf16.xpose.msra.mxu0 0
        %1342 = vmatprep.subr.bf16.mxu0 0
        %1343 = vmatpush1.bf16.xpose.msra.mxu0 0
        %1344 = vmatprep.subr.bf16.mxu0 0
        %1345 = vmatpush1.bf16.xpose.msra.mxu0 0
        %1346 = vmatprep.subr.bf16.mxu0 0
        %1347 = vmatpush1.bf16.xpose.msra.mxu0 0
        %1348 = vmatprep.subr.bf16.mxu0 0
        %1349 = vmatpush1.bf16.xpose.msra.mxu0 0
        %1350 = vmatprep.subr.bf16.mxu0 0
        %1351 = vmatpush1.bf16.xpose.msra.mxu0 %v1334
        %1352 = vmatprep.subr.bf16.mxu0 0
        %1353 = vmatpush2.bf16.xpose.msra.mxu0 0
        %1354 = vmatprep.subr.bf16.mxu0 0
        %1355 = vmatpush2.bf16.xpose.msra.mxu0 0
        %1356 = vmatprep.subr.bf16.mxu0 0
        %1357 = vmatpush2.bf16.xpose.msra.mxu0 0
        %1358 = vmatprep.subr.bf16.mxu0 0
        %1359 = vmatpush2.bf16.xpose.msra.mxu0 0
        %1360 = vmatprep.subr.bf16.mxu0 0
        %1361 = vmatpush2.bf16.xpose.msra.mxu0 0
        %1362 = vmatprep.subr.bf16.mxu0 0
        %1363 = vmatpush2.bf16.xpose.msra.mxu0 0
        %1364 = vmatprep.subr.bf16.mxu0 0
        %1365 = vmatpush2.bf16.xpose.msra.mxu0 0
        %1366 = vmatprep.subr.bf16.mxu0 0
        %1367 = vmatpush2.bf16.xpose.msra.mxu0 0
        %1368 = vmatprep.mubr.bf16.mxu0 0
        %1369 = vmatmul.mubr.bf16.gmra.mxu0 %v1331
        %v1370 = vpop.f32.mrf.mxu0
        %v1371 = vadd.f32 %v627, %v1370
        %v1372 = vpop.f32.mrf.mxu0
        %v1373 = vpop.f32.mrf.mxu0
        %v1374 = vpop.f32.mrf.mxu0
        %1375 = vdwg.mxu0
        %v1376 = vsel %vm678, %v1371, -inf
        %1377 = vmax.xlane.f32.xlu0 %v1376
        %v1378 = vpop.xlane.xlu0 %1377
        %v1379 = vsub.f32 %v1371, %v1378
        %v1380 = vmul.f32 %v1379, 1.442695
        %v1381 = vpow.pop %v1380
        %v1382 = vsel %vm678, %v1381, 0.0
        %1383 = vadd.xlane.f32.xlu0 %v1382
        %v1384 = vpop.xlane.xlu0 %1383
        %v1385 = vrcp.pop %v1384
        %v1386 = vmul.f32 %v1381, %v1385
        %v1387 = vpack.c.bf16 %v1386, %v1386
        %1388 = vrot.lane.b32.xlu0 %v1216, 48
        %v1389 = vpop.permute.xlu0 %1388
        %v1391 = vsel %vm678, %v1387, 0
        %v1394 = vsel %vm696, %v1389, 0
        %1396 = vmatprep.subr.bf16.mxu0 0
        %1397 = vmatpush1.bf16.msra.mxu0 0
        %1398 = vmatprep.subr.bf16.mxu0 0
        %1399 = vmatpush1.bf16.msra.mxu0 0
        %1400 = vmatprep.subr.bf16.mxu0 0
        %1401 = vmatpush1.bf16.msra.mxu0 0
        %1402 = vmatprep.subr.bf16.mxu0 0
        %1403 = vmatpush1.bf16.msra.mxu0 0
        %1404 = vmatprep.subr.bf16.mxu0 0
        %1405 = vmatpush1.bf16.msra.mxu0 0
        %1406 = vmatprep.subr.bf16.mxu0 0
        %1407 = vmatpush1.bf16.msra.mxu0 0
        %1408 = vmatprep.subr.bf16.mxu0 0
        %1409 = vmatpush1.bf16.msra.mxu0 0
        %1410 = vmatprep.subr.bf16.mxu0 0
        %1411 = vmatpush1.bf16.msra.mxu0 %v1394
        %1412 = vmatprep.subr.bf16.mxu0 0
        %1413 = vmatpush2.bf16.msra.mxu0 0
        %1414 = vmatprep.subr.bf16.mxu0 0
        %1415 = vmatpush2.bf16.msra.mxu0 0
        %1416 = vmatprep.subr.bf16.mxu0 0
        %1417 = vmatpush2.bf16.msra.mxu0 0
        %1418 = vmatprep.subr.bf16.mxu0 0
        %1419 = vmatpush2.bf16.msra.mxu0 0
        %1420 = vmatprep.subr.bf16.mxu0 0
        %1421 = vmatpush2.bf16.msra.mxu0 0
        %1422 = vmatprep.subr.bf16.mxu0 0
        %1423 = vmatpush2.bf16.msra.mxu0 0
        %1424 = vmatprep.subr.bf16.mxu0 0
        %1425 = vmatpush2.bf16.msra.mxu0 0
        %1426 = vmatprep.subr.bf16.mxu0 0
        %1427 = vmatpush2.bf16.msra.mxu0 0
        %1428 = vmatprep.mubr.bf16.mxu0 0
        %1429 = vmatmul.mubr.bf16.gmra.mxu0 %v1391
        %v1430 = vpop.f32.mrf.mxu0
        %v1431 = vadd.f32 0.0, %v1430
        %v1432 = vpop.f32.mrf.mxu0
        %v1433 = vpop.f32.mrf.mxu0
        %v1434 = vpop.f32.mrf.mxu0
        %1435 = vdwg.mxu0
        %1437 = vrot.lane.b32.xlu0 %v1431, 16
        %v1438 = vpop.permute.xlu0 %1437
        %v1440 = vsel %vm631, %v1321, %v1438
        %v1441 = vpack.c.bf16 %v1440, %v1440
        %s1442 = scalar_lea.vmem %s6, 16
        %v1443 = vld [vmem:[%s1442] sm:$0xf]
        %v1444 = vld [vmem:[%s1442 + $0x4] sm:$0xf]
        %v1445 = vld [vmem:[%s1442 + $0x8] sm:$0xf]
        %v1446 = vld [vmem:[%s1442 + $0xc] sm:$0xf]
        %s1447 = scalar_lea.vmem %s7, 1
        %v1448 = vld [vmem:[%s1447] sm:$0x1]
        %v1450 = vlaneseq
        %v1451 = vshrl.u32 %v1450, 7
        %v1452 = vsub.s32 0, %v1451
        %v1453 = vrot.slane %v1448, %v1452
        %v1459 = vunpack.c.l.b16 %v1443
        %v1460 = vunpack.c.l.b16 %v1444
        %v1461 = vunpack.c.l.b16 %v1445
        %v1462 = vunpack.c.l.b16 %v1446
        %v1463 = vpack.c.b16 %v1460, %v1459
        %v1464 = vpack.c.b16 %v1462, %v1461
        %v1468 = vsel %vm525, %v1441, 0
        %1470 = vmatprep.subr.bf16.mxu0 0
        %1471 = vmatpush1.bf16.msra.mxu0 0
        %1472 = vmatprep.subr.bf16.mxu0 0
        %1473 = vmatpush1.bf16.msra.mxu0 0
        %1474 = vmatprep.subr.bf16.mxu0 0
        %1475 = vmatpush1.bf16.msra.mxu0 0
        %1476 = vmatprep.subr.bf16.mxu0 0
        %1477 = vmatpush1.bf16.msra.mxu0 0
        %1478 = vmatprep.subr.bf16.mxu0 0
        %1479 = vmatpush1.bf16.msra.mxu0 0
        %1480 = vmatprep.subr.bf16.mxu0 0
        %1481 = vmatpush1.bf16.msra.mxu0 0
        %1482 = vmatprep.subr.bf16.mxu0 0
        %1483 = vmatpush1.bf16.msra.mxu0 %v1464
        %1484 = vmatprep.subr.bf16.mxu0 0
        %1485 = vmatpush1.bf16.msra.mxu0 %v1463
        %1486 = vmatprep.subr.bf16.mxu0 0
        %1487 = vmatpush2.bf16.msra.mxu0 0
        %1488 = vmatprep.subr.bf16.mxu0 0
        %1489 = vmatpush2.bf16.msra.mxu0 0
        %1490 = vmatprep.subr.bf16.mxu0 0
        %1491 = vmatpush2.bf16.msra.mxu0 0
        %1492 = vmatprep.subr.bf16.mxu0 0
        %1493 = vmatpush2.bf16.msra.mxu0 0
        %1494 = vmatprep.subr.bf16.mxu0 0
        %1495 = vmatpush2.bf16.msra.mxu0 0
        %1496 = vmatprep.subr.bf16.mxu0 0
        %1497 = vmatpush2.bf16.msra.mxu0 0
        %1498 = vmatprep.subr.bf16.mxu0 0
        %1499 = vmatpush2.bf16.msra.mxu0 0
        %1500 = vmatprep.subr.bf16.mxu0 0
        %1501 = vmatpush2.bf16.msra.mxu0 0
        %1502 = vmatprep.mubr.bf16.mxu0 0
        %1503 = vmatmul.mubr.bf16.gmra.mxu0 %v1468
        %v1504 = vpop.f32.mrf.mxu0
        %v1505 = vadd.f32 %v1453, %v1504
        %v1506 = vpop.f32.mrf.mxu0
        %v1507 = vpop.f32.mrf.mxu0
        %v1508 = vpop.f32.mrf.mxu0
        %1509 = vdwg.mxu0
        %v1510 = vadd.f32 %v1505, %v1145
        %s1511 = scalar_lea.vmem %s8, 1
        %v1512 = vld [vmem:[%s1511] sm:$0x1]
        %s1513 = scalar_lea.vmem %s9, 1
        %v1514 = vld [vmem:[%s1513] sm:$0x1]
        %v1515 = vsel %vm525, %v1510, 0.0
        %1516 = vadd.xlane.f32.xlu0 %v1515
        %v1517 = vpop.xlane.xlu0 %1516
        %v1518 = vmul.f32 %v1517, %v529
        %v1519 = vmul.f32 %v1510, %v1510
        %v1520 = vsel %vm525, %v1519, 0.0
        %1521 = vadd.xlane.f32.xlu0 %v1520
        %v1522 = vpop.xlane.xlu0 %1521
        %v1523 = vmul.f32 %v1522, %v529
        %v1524 = vmul.f32 %v1518, %v1518
        %v1525 = vsub.f32 %v1523, %v1524
        %v1526 = vsub.f32 %v1510, %v1518
        %v1527 = vadd.f32 %v1525, 1e-05
        %v1528 = vrsqrt.pop %v1527
        %v1529 = vmul.f32 %v1526, %v1528
        %v1531 = vlaneseq
        %v1532 = vshrl.u32 %v1531, 7
        %v1533 = vsub.s32 0, %v1532
        %v1534 = vrot.slane %v1512, %v1533
        %v1536 = vmul.f32 %v1529, %v1534
        %v1538 = vlaneseq
        %v1539 = vshrl.u32 %v1538, 7
        %v1540 = vsub.s32 0, %v1539
        %v1541 = vrot.slane %v1514, %v1540
        %v1543 = vadd.f32 %v1536, %v1541
        %v1544 = vpack.c.bf16 %v1543, %v1543
        %s1545 = scalar_lea.vmem %s10, 16
        %v1546 = vld [vmem:[%s1545] sm:$0xf]
        %v1547 = vld [vmem:[%s1545 + $0x4] sm:$0xf]
        %v1548 = vld [vmem:[%s1545 + $0x8] sm:$0xf]
        %v1549 = vld [vmem:[%s1545 + $0xc] sm:$0xf]
        %s1550 = scalar_lea.vmem %s11, 1
        %v1551 = vld [vmem:[%s1550] sm:$0x1]
        %v1553 = vlaneseq
        %v1554 = vshrl.u32 %v1553, 7
        %v1555 = vsub.s32 0, %v1554
        %v1556 = vrot.slane %v1551, %v1555
        %v1562 = vunpack.c.l.b16 %v1546
        %v1563 = vunpack.c.l.b16 %v1547
        %v1564 = vunpack.c.l.b16 %v1548
        %v1565 = vunpack.c.l.b16 %v1549
        %v1566 = vpack.c.b16 %v1563, %v1562
        %v1567 = vpack.c.b16 %v1565, %v1564
        %v1571 = vsel %vm525, %v1544, 0
        %1573 = vmatprep.subr.bf16.mxu0 0
        %1574 = vmatpush1.bf16.msra.mxu0 0
        %1575 = vmatprep.subr.bf16.mxu0 0
        %1576 = vmatpush1.bf16.msra.mxu0 0
        %1577 = vmatprep.subr.bf16.mxu0 0
        %1578 = vmatpush1.bf16.msra.mxu0 0
        %1579 = vmatprep.subr.bf16.mxu0 0
        %1580 = vmatpush1.bf16.msra.mxu0 0
        %1581 = vmatprep.subr.bf16.mxu0 0
        %1582 = vmatpush1.bf16.msra.mxu0 0
        %1583 = vmatprep.subr.bf16.mxu0 0
        %1584 = vmatpush1.bf16.msra.mxu0 0
        %1585 = vmatprep.subr.bf16.mxu0 0
        %1586 = vmatpush1.bf16.msra.mxu0 %v1567
        %1587 = vmatprep.subr.bf16.mxu0 0
        %1588 = vmatpush1.bf16.msra.mxu0 %v1566
        %1589 = vmatprep.subr.bf16.mxu0 0
        %1590 = vmatpush2.bf16.msra.mxu0 0
        %1591 = vmatprep.subr.bf16.mxu0 0
        %1592 = vmatpush2.bf16.msra.mxu0 0
        %1593 = vmatprep.subr.bf16.mxu0 0
        %1594 = vmatpush2.bf16.msra.mxu0 0
        %1595 = vmatprep.subr.bf16.mxu0 0
        %1596 = vmatpush2.bf16.msra.mxu0 0
        %1597 = vmatprep.subr.bf16.mxu0 0
        %1598 = vmatpush2.bf16.msra.mxu0 0
        %1599 = vmatprep.subr.bf16.mxu0 0
        %1600 = vmatpush2.bf16.msra.mxu0 0
        %1601 = vmatprep.subr.bf16.mxu0 0
        %1602 = vmatpush2.bf16.msra.mxu0 0
        %1603 = vmatprep.subr.bf16.mxu0 0
        %1604 = vmatpush2.bf16.msra.mxu0 0
        %1605 = vmatprep.mubr.bf16.mxu0 0
        %1606 = vmatmul.mubr.bf16.gmra.mxu0 %v1571
        %v1607 = vpop.f32.mrf.mxu0
        %v1608 = vadd.f32 %v1556, %v1607
        %v1609 = vpop.f32.mrf.mxu0
        %v1610 = vpop.f32.mrf.mxu0
        %v1611 = vpop.f32.mrf.mxu0
        %1612 = vdwg.mxu0
        %v1613 = vmul.f32 %v1608, 0.5
        %v1614 = vmul.f32 %v1608, 0.044715
        %v1615 = vmul.f32 %v1614, %v1608
        %v1616 = vmul.f32 %v1615, %v1608
        %v1617 = vadd.f32 %v1608, %v1616
        %v1618 = vmul.f32 %v1617, 0.7978846
        %v1619 = vtanh.pop %v1618
        %v1620 = vadd.f32 %v1619, 1.0
        %v1621 = vmul.f32 %v1613, %v1620
        %v1622 = vpack.c.bf16 %v1621, %v1621
        %s1623 = scalar_lea.vmem %s12, 32
        %v1624 = vld [vmem:[%s1623] sm:$0xf]
        %v1625 = vld [vmem:[%s1623 + $0x4] sm:$0xf]
        %v1626 = vld [vmem:[%s1623 + $0x8] sm:$0xf]
        %v1627 = vld [vmem:[%s1623 + $0xc] sm:$0xf]
        %v1628 = vld [vmem:[%s1623 + $0x10] sm:$0xf]
        %v1629 = vld [vmem:[%s1623 + $0x14] sm:$0xf]
        %v1630 = vld [vmem:[%s1623 + $0x18] sm:$0xf]
        %v1631 = vld [vmem:[%s1623 + $0x1c] sm:$0xf]
        %s1632 = scalar_lea.vmem %s13, 1
        %v1633 = vld [vmem:[%s1632] sm:$0x1]
        %v1635 = vlaneseq
        %v1636 = vshrl.u32 %v1635, 7
        %v1637 = vsub.s32 0, %v1636
        %v1638 = vrot.slane %v1633, %v1637
        %v1648 = vunpack.c.l.b16 %v1624
        %v1649 = vunpack.c.l.b16 %v1625
        %v1650 = vunpack.c.l.b16 %v1626
        %v1651 = vunpack.c.l.b16 %v1627
        %v1652 = vunpack.c.l.b16 %v1628
        %v1653 = vunpack.c.l.b16 %v1629
        %v1654 = vunpack.c.l.b16 %v1630
        %v1655 = vunpack.c.l.b16 %v1631
        %v1656 = vpack.c.b16 %v1649, %v1648
        %v1657 = vpack.c.b16 %v1651, %v1650
        %v1658 = vpack.c.b16 %v1653, %v1652
        %v1659 = vpack.c.b16 %v1655, %v1654
        %v1665 = vsel %vm1070, %v1622, 0
        %1667 = vmatprep.subr.bf16.mxu0 0
        %1668 = vmatpush1.bf16.msra.mxu0 0
        %1669 = vmatprep.subr.bf16.mxu0 0
        %1670 = vmatpush1.bf16.msra.mxu0 0
        %1671 = vmatprep.subr.bf16.mxu0 0
        %1672 = vmatpush1.bf16.msra.mxu0 0
        %1673 = vmatprep.subr.bf16.mxu0 0
        %1674 = vmatpush1.bf16.msra.mxu0 0
        %1675 = vmatprep.subr.bf16.mxu0 0
        %1676 = vmatpush1.bf16.msra.mxu0 %v1659
        %1677 = vmatprep.subr.bf16.mxu0 0
        %1678 = vmatpush1.bf16.msra.mxu0 %v1658
        %1679 = vmatprep.subr.bf16.mxu0 0
        %1680 = vmatpush1.bf16.msra.mxu0 %v1657
        %1681 = vmatprep.subr.bf16.mxu0 0
        %1682 = vmatpush1.bf16.msra.mxu0 %v1656
        %1683 = vmatprep.subr.bf16.mxu0 0
        %1684 = vmatpush2.bf16.msra.mxu0 0
        %1685 = vmatprep.subr.bf16.mxu0 0
        %1686 = vmatpush2.bf16.msra.mxu0 0
        %1687 = vmatprep.subr.bf16.mxu0 0
        %1688 = vmatpush2.bf16.msra.mxu0 0
        %1689 = vmatprep.subr.bf16.mxu0 0
        %1690 = vmatpush2.bf16.msra.mxu0 0
        %1691 = vmatprep.subr.bf16.mxu0 0
        %1692 = vmatpush2.bf16.msra.mxu0 0
        %1693 = vmatprep.subr.bf16.mxu0 0
        %1694 = vmatpush2.bf16.msra.mxu0 0
        %1695 = vmatprep.subr.bf16.mxu0 0
        %1696 = vmatpush2.bf16.msra.mxu0 0
        %1697 = vmatprep.subr.bf16.mxu0 0
        %1698 = vmatpush2.bf16.msra.mxu0 0
        %1699 = vmatprep.mubr.bf16.mxu0 0
        %1700 = vmatmul.mubr.bf16.gmra.mxu0 %v1665
        %v1701 = vpop.f32.mrf.mxu0
        %v1702 = vadd.f32 %v1638, %v1701
        %v1703 = vpop.f32.mrf.mxu0
        %v1704 = vpop.f32.mrf.mxu0
        %v1705 = vpop.f32.mrf.mxu0
        %1706 = vdwg.mxu0
        %v1707 = vadd.f32 %v1702, %v1543
        %s1708 = scalar_lea.vmem %s14, 1
        %v1709 = vld [vmem:[%s1708] sm:$0x1]
        %s1710 = scalar_lea.vmem %s15, 1
        %v1711 = vld [vmem:[%s1710] sm:$0x1]
        %v1712 = vsel %vm525, %v1707, 0.0
        %1713 = vadd.xlane.f32.xlu0 %v1712
        %v1714 = vpop.xlane.xlu0 %1713
        %v1715 = vmul.f32 %v1714, %v529
        %v1716 = vmul.f32 %v1707, %v1707
        %v1717 = vsel %vm525, %v1716, 0.0
        %1718 = vadd.xlane.f32.xlu0 %v1717
        %v1719 = vpop.xlane.xlu0 %1718
        %v1720 = vmul.f32 %v1719, %v529
        %v1721 = vmul.f32 %v1715, %v1715
        %v1722 = vsub.f32 %v1720, %v1721
        %v1723 = vsub.f32 %v1707, %v1715
        %v1724 = vadd.f32 %v1722, 1e-05
        %v1725 = vrsqrt.pop %v1724
        %v1726 = vmul.f32 %v1723, %v1725
        %v1728 = vlaneseq
        %v1729 = vshrl.u32 %v1728, 7
        %v1730 = vsub.s32 0, %v1729
        %v1731 = vrot.slane %v1709, %v1730
        %v1733 = vmul.f32 %v1726, %v1731
        %v1735 = vlaneseq
        %v1736 = vshrl.u32 %v1735, 7
        %v1737 = vsub.s32 0, %v1736
        %v1738 = vrot.slane %v1711, %v1737
        %v1740 = vadd.f32 %v1733, %v1738
        %v1741 = vadd.f32 %v1146, %v1740
        %v1742 = vpack.c.bf16 %v1740, %v1740
        %s1743 = scalar_lea.vmem %s4, 32
        %v1744 = vld [vmem:[%s1743] sm:$0xf]
        %v1745 = vld [vmem:[%s1743 + $0x4] sm:$0xf]
        %v1746 = vld [vmem:[%s1743 + $0x8] sm:$0xf]
        %v1747 = vld [vmem:[%s1743 + $0xc] sm:$0xf]
        %s1748 = scalar_lea.vmem %s5, 2
        %v1749 = vld [vmem:[%s1748] sm:$0x1]
        %v1751 = vlaneseq
        %v1752 = vshrl.u32 %v1751, 7
        %v1753 = vsub.s32 0, %v1752
        %v1754 = vrot.slane %v1749, %v1753
        %v1760 = vunpack.c.l.b16 %v1744
        %v1761 = vunpack.c.l.b16 %v1745
        %v1762 = vunpack.c.l.b16 %v1746
        %v1763 = vunpack.c.l.b16 %v1747
        %v1764 = vpack.c.b16 %v1761, %v1760
        %v1765 = vpack.c.b16 %v1763, %v1762
        %v1769 = vsel %vm525, %v1742, 0
        %1771 = vmatprep.subr.bf16.mxu0 0
        %1772 = vmatpush1.bf16.msra.mxu0 0
        %1773 = vmatprep.subr.bf16.mxu0 0
        %1774 = vmatpush1.bf16.msra.mxu0 0
        %1775 = vmatprep.subr.bf16.mxu0 0
        %1776 = vmatpush1.bf16.msra.mxu0 0
        %1777 = vmatprep.subr.bf16.mxu0 0
        %1778 = vmatpush1.bf16.msra.mxu0 0
        %1779 = vmatprep.subr.bf16.mxu0 0
        %1780 = vmatpush1.bf16.msra.mxu0 0
        %1781 = vmatprep.subr.bf16.mxu0 0
        %1782 = vmatpush1.bf16.msra.mxu0 0
        %1783 = vmatprep.subr.bf16.mxu0 0
        %1784 = vmatpush1.bf16.msra.mxu0 %v1765
        %1785 = vmatprep.subr.bf16.mxu0 0
        %1786 = vmatpush1.bf16.msra.mxu0 %v1764
        %1787 = vmatprep.subr.bf16.mxu0 0
        %1788 = vmatpush2.bf16.msra.mxu0 0
        %1789 = vmatprep.subr.bf16.mxu0 0
        %1790 = vmatpush2.bf16.msra.mxu0 0
        %1791 = vmatprep.subr.bf16.mxu0 0
        %1792 = vmatpush2.bf16.msra.mxu0 0
        %1793 = vmatprep.subr.bf16.mxu0 0
        %1794 = vmatpush2.bf16.msra.mxu0 0
        %1795 = vmatprep.subr.bf16.mxu0 0
        %1796 = vmatpush2.bf16.msra.mxu0 0
        %1797 = vmatprep.subr.bf16.mxu0 0
        %1798 = vmatpush2.bf16.msra.mxu0 0
        %1799 = vmatprep.subr.bf16.mxu0 0
        %1800 = vmatpush2.bf16.msra.mxu0 0
        %1801 = vmatprep.subr.bf16.mxu0 0
        %1802 = vmatpush2.bf16.msra.mxu0 0
        %1803 = vmatprep.mubr.bf16.mxu0 0
        %1804 = vmatmul.mubr.bf16.gmra.mxu0 %v1769
        %v1805 = vpop.f32.mrf.mxu0
        %v1806 = vadd.f32 %v1754, %v1805
        %v1807 = vpop.f32.mrf.mxu0
        %v1808 = vpop.f32.mrf.mxu0
        %v1809 = vpop.f32.mrf.mxu0
        %1810 = vdwg.mxu0
        %v1811 = vpack.c.bf16 %v1806, %v1806
        %1813 = vrot.lane.b32.xlu0 %v1811, 96
        %v1814 = vpop.permute.xlu0 %1813
        %v1816 = vsel %vm631, %v1811, 0
        %v1819 = vsel %vm631, %v1814, 0
        %1821 = vmatprep.subr.bf16.mxu0 0
        %1822 = vmatpush1.bf16.xpose.msra.mxu0 0
        %1823 = vmatprep.subr.bf16.mxu0 0
        %1824 = vmatpush1.bf16.xpose.msra.mxu0 0
        %1825 = vmatprep.subr.bf16.mxu0 0
        %1826 = vmatpush1.bf16.xpose.msra.mxu0 0
        %1827 = vmatprep.subr.bf16.mxu0 0
        %1828 = vmatpush1.bf16.xpose.msra.mxu0 0
        %1829 = vmatprep.subr.bf16.mxu0 0
        %1830 = vmatpush1.bf16.xpose.msra.mxu0 0
        %1831 = vmatprep.subr.bf16.mxu0 0
        %1832 = vmatpush1.bf16.xpose.msra.mxu0 0
        %1833 = vmatprep.subr.bf16.mxu0 0
        %1834 = vmatpush1.bf16.xpose.msra.mxu0 0
        %1835 = vmatprep.subr.bf16.mxu0 0
        %1836 = vmatpush1.bf16.xpose.msra.mxu0 %v1819
        %1837 = vmatprep.subr.bf16.mxu0 0
        %1838 = vmatpush2.bf16.xpose.msra.mxu0 0
        %1839 = vmatprep.subr.bf16.mxu0 0
        %1840 = vmatpush2.bf16.xpose.msra.mxu0 0
        %1841 = vmatprep.subr.bf16.mxu0 0
        %1842 = vmatpush2.bf16.xpose.msra.mxu0 0
        %1843 = vmatprep.subr.bf16.mxu0 0
        %1844 = vmatpush2.bf16.xpose.msra.mxu0 0
        %1845 = vmatprep.subr.bf16.mxu0 0
        %1846 = vmatpush2.bf16.xpose.msra.mxu0 0
        %1847 = vmatprep.subr.bf16.mxu0 0
        %1848 = vmatpush2.bf16.xpose.msra.mxu0 0
        %1849 = vmatprep.subr.bf16.mxu0 0
        %1850 = vmatpush2.bf16.xpose.msra.mxu0 0
        %1851 = vmatprep.subr.bf16.mxu0 0
        %1852 = vmatpush2.bf16.xpose.msra.mxu0 0
        %1853 = vmatprep.mubr.bf16.mxu0 0
        %1854 = vmatmul.mubr.bf16.gmra.mxu0 %v1816
        %v1855 = vpop.f32.mrf.mxu0
        %v1856 = vadd.f32 %v627, %v1855
        %v1857 = vpop.f32.mrf.mxu0
        %v1858 = vpop.f32.mrf.mxu0
        %v1859 = vpop.f32.mrf.mxu0
        %1860 = vdwg.mxu0
        %v1861 = vsel %vm678, %v1856, -inf
        %1862 = vmax.xlane.f32.xlu0 %v1861
        %v1863 = vpop.xlane.xlu0 %1862
        %v1864 = vsub.f32 %v1856, %v1863
        %v1865 = vmul.f32 %v1864, 1.442695
        %v1866 = vpow.pop %v1865
        %v1867 = vsel %vm678, %v1866, 0.0
        %1868 = vadd.xlane.f32.xlu0 %v1867
        %v1869 = vpop.xlane.xlu0 %1868
        %v1870 = vrcp.pop %v1869
        %v1871 = vmul.f32 %v1866, %v1870
        %v1872 = vpack.c.bf16 %v1871, %v1871
        %1873 = vrot.lane.b32.xlu0 %v1811, 64
        %v1874 = vpop.permute.xlu0 %1873
        %v1876 = vsel %vm678, %v1872, 0
        %v1879 = vsel %vm696, %v1874, 0
        %1881 = vmatprep.subr.bf16.mxu0 0
        %1882 = vmatpush1.bf16.msra.mxu0 0
        %1883 = vmatprep.subr.bf16.mxu0 0
        %1884 = vmatpush1.bf16.msra.mxu0 0
        %1885 = vmatprep.subr.bf16.mxu0 0
        %1886 = vmatpush1.bf16.msra.mxu0 0
        %1887 = vmatprep.subr.bf16.mxu0 0
        %1888 = vmatpush1.bf16.msra.mxu0 0
        %1889 = vmatprep.subr.bf16.mxu0 0
        %1890 = vmatpush1.bf16.msra.mxu0 0
        %1891 = vmatprep.subr.bf16.mxu0 0
        %1892 = vmatpush1.bf16.msra.mxu0 0
        %1893 = vmatprep.subr.bf16.mxu0 0
        %1894 = vmatpush1.bf16.msra.mxu0 0
        %1895 = vmatprep.subr.bf16.mxu0 0
        %1896 = vmatpush1.bf16.msra.mxu0 %v1879
        %1897 = vmatprep.subr.bf16.mxu0 0
        %1898 = vmatpush2.bf16.msra.mxu0 0
        %1899 = vmatprep.subr.bf16.mxu0 0
        %1900 = vmatpush2.bf16.msra.mxu0 0
        %1901 = vmatprep.subr.bf16.mxu0 0
        %1902 = vmatpush2.bf16.msra.mxu0 0
        %1903 = vmatprep.subr.bf16.mxu0 0
        %1904 = vmatpush2.bf16.msra.mxu0 0
        %1905 = vmatprep.subr.bf16.mxu0 0
        %1906 = vmatpush2.bf16.msra.mxu0 0
        %1907 = vmatprep.subr.bf16.mxu0 0
        %1908 = vmatpush2.bf16.msra.mxu0 0
        %1909 = vmatprep.subr.bf16.mxu0 0
        %1910 = vmatpush2.bf16.msra.mxu0 0
        %1911 = vmatprep.subr.bf16.mxu0 0
        %1912 = vmatpush2.bf16.msra.mxu0 0
        %1913 = vmatprep.mubr.bf16.mxu0 0
        %1914 = vmatmul.mubr.bf16.gmra.mxu0 %v1876
        %v1915 = vpop.f32.mrf.mxu0
        %v1916 = vadd.f32 0.0, %v1915
        %v1917 = vpop.f32.mrf.mxu0
        %v1918 = vpop.f32.mrf.mxu0
        %v1919 = vpop.f32.mrf.mxu0
        %1920 = vdwg.mxu0
        %1921 = vrot.lane.b32.xlu0 %v1811, 112
        %v1922 = vpop.permute.xlu0 %1921
        %1923 = vrot.lane.b32.xlu0 %v1811, 80
        %v1924 = vpop.permute.xlu0 %1923
        %v1926 = vsel %vm631, %v1922, 0
        %v1929 = vsel %vm631, %v1924, 0
        %1931 = vmatprep.subr.bf16.mxu0 0
        %1932 = vmatpush1.bf16.xpose.msra.mxu0 0
        %1933 = vmatprep.subr.bf16.mxu0 0
        %1934 = vmatpush1.bf16.xpose.msra.mxu0 0
        %1935 = vmatprep.subr.bf16.mxu0 0
        %1936 = vmatpush1.bf16.xpose.msra.mxu0 0
        %1937 = vmatprep.subr.bf16.mxu0 0
        %1938 = vmatpush1.bf16.xpose.msra.mxu0 0
        %1939 = vmatprep.subr.bf16.mxu0 0
        %1940 = vmatpush1.bf16.xpose.msra.mxu0 0
        %1941 = vmatprep.subr.bf16.mxu0 0
        %1942 = vmatpush1.bf16.xpose.msra.mxu0 0
        %1943 = vmatprep.subr.bf16.mxu0 0
        %1944 = vmatpush1.bf16.xpose.msra.mxu0 0
        %1945 = vmatprep.subr.bf16.mxu0 0
        %1946 = vmatpush1.bf16.xpose.msra.mxu0 %v1929
        %1947 = vmatprep.subr.bf16.mxu0 0
        %1948 = vmatpush2.bf16.xpose.msra.mxu0 0
        %1949 = vmatprep.subr.bf16.mxu0 0
        %1950 = vmatpush2.bf16.xpose.msra.mxu0 0
        %1951 = vmatprep.subr.bf16.mxu0 0
        %1952 = vmatpush2.bf16.xpose.msra.mxu0 0
        %1953 = vmatprep.subr.bf16.mxu0 0
        %1954 = vmatpush2.bf16.xpose.msra.mxu0 0
        %1955 = vmatprep.subr.bf16.mxu0 0
        %1956 = vmatpush2.bf16.xpose.msra.mxu0 0
        %1957 = vmatprep.subr.bf16.mxu0 0
        %1958 = vmatpush2.bf16.xpose.msra.mxu0 0
        %1959 = vmatprep.subr.bf16.mxu0 0
        %1960 = vmatpush2.bf16.xpose.msra.mxu0 0
        %1961 = vmatprep.subr.bf16.mxu0 0
        %1962 = vmatpush2.bf16.xpose.msra.mxu0 0
        %1963 = vmatprep.mubr.bf16.mxu0 0
        %1964 = vmatmul.mubr.bf16.gmra.mxu0 %v1926
        %v1965 = vpop.f32.mrf.mxu0
        %v1966 = vadd.f32 %v627, %v1965
        %v1967 = vpop.f32.mrf.mxu0
        %v1968 = vpop.f32.mrf.mxu0
        %v1969 = vpop.f32.mrf.mxu0
        %1970 = vdwg.mxu0
        %v1971 = vsel %vm678, %v1966, -inf
        %1972 = vmax.xlane.f32.xlu0 %v1971
        %v1973 = vpop.xlane.xlu0 %1972
        %v1974 = vsub.f32 %v1966, %v1973
        %v1975 = vmul.f32 %v1974, 1.442695
        %v1976 = vpow.pop %v1975
        %v1977 = vsel %vm678, %v1976, 0.0
        %1978 = vadd.xlane.f32.xlu0 %v1977
        %v1979 = vpop.xlane.xlu0 %1978
        %v1980 = vrcp.pop %v1979
        %v1981 = vmul.f32 %v1976, %v1980
        %v1982 = vpack.c.bf16 %v1981, %v1981
        %1983 = vrot.lane.b32.xlu0 %v1811, 48
        %v1984 = vpop.permute.xlu0 %1983
        %v1986 = vsel %vm678, %v1982, 0
        %v1989 = vsel %vm696, %v1984, 0
        %1991 = vmatprep.subr.bf16.mxu0 0
        %1992 = vmatpush1.bf16.msra.mxu0 0
        %1993 = vmatprep.subr.bf16.mxu0 0
        %1994 = vmatpush1.bf16.msra.mxu0 0
        %1995 = vmatprep.subr.bf16.mxu0 0
        %1996 = vmatpush1.bf16.msra.mxu0 0
        %1997 = vmatprep.subr.bf16.mxu0 0
        %1998 = vmatpush1.bf16.msra.mxu0 0
        %1999 = vmatprep.subr.bf16.mxu0 0
        %2000 = vmatpush1.bf16.msra.mxu0 0
        %2001 = vmatprep.subr.bf16.mxu0 0
        %2002 = vmatpush1.bf16.msra.mxu0 0
        %2003 = vmatprep.subr.bf16.mxu0 0
        %2004 = vmatpush1.bf16.msra.mxu0 0
        %2005 = vmatprep.subr.bf16.mxu0 0
        %2006 = vmatpush1.bf16.msra.mxu0 %v1989
        %2007 = vmatprep.subr.bf16.mxu0 0
        %2008 = vmatpush2.bf16.msra.mxu0 0
        %2009 = vmatprep.subr.bf16.mxu0 0
        %2010 = vmatpush2.bf16.msra.mxu0 0
        %2011 = vmatprep.subr.bf16.mxu0 0
        %2012 = vmatpush2.bf16.msra.mxu0 0
        %2013 = vmatprep.subr.bf16.mxu0 0
        %2014 = vmatpush2.bf16.msra.mxu0 0
        %2015 = vmatprep.subr.bf16.mxu0 0
        %2016 = vmatpush2.bf16.msra.mxu0 0
        %2017 = vmatprep.subr.bf16.mxu0 0
        %2018 = vmatpush2.bf16.msra.mxu0 0
        %2019 = vmatprep.subr.bf16.mxu0 0
        %2020 = vmatpush2.bf16.msra.mxu0 0
        %2021 = vmatprep.subr.bf16.mxu0 0
        %2022 = vmatpush2.bf16.msra.mxu0 0
        %2023 = vmatprep.mubr.bf16.mxu0 0
        %2024 = vmatmul.mubr.bf16.gmra.mxu0 %v1986
        %v2025 = vpop.f32.mrf.mxu0
        %v2026 = vadd.f32 0.0, %v2025
        %v2027 = vpop.f32.mrf.mxu0
        %v2028 = vpop.f32.mrf.mxu0
        %v2029 = vpop.f32.mrf.mxu0
        %2030 = vdwg.mxu0
        %2032 = vrot.lane.b32.xlu0 %v2026, 16
        %v2033 = vpop.permute.xlu0 %2032
        %v2035 = vsel %vm631, %v1916, %v2033
        %v2036 = vpack.c.bf16 %v2035, %v2035
        %s2037 = scalar_lea.vmem %s6, 32
        %v2038 = vld [vmem:[%s2037] sm:$0xf]
        %v2039 = vld [vmem:[%s2037 + $0x4] sm:$0xf]
        %v2040 = vld [vmem:[%s2037 + $0x8] sm:$0xf]
        %v2041 = vld [vmem:[%s2037 + $0xc] sm:$0xf]
        %s2042 = scalar_lea.vmem %s7, 2
        %v2043 = vld [vmem:[%s2042] sm:$0x1]
        %v2045 = vlaneseq
        %v2046 = vshrl.u32 %v2045, 7
        %v2047 = vsub.s32 0, %v2046
        %v2048 = vrot.slane %v2043, %v2047
        %v2054 = vunpack.c.l.b16 %v2038
        %v2055 = vunpack.c.l.b16 %v2039
        %v2056 = vunpack.c.l.b16 %v2040
        %v2057 = vunpack.c.l.b16 %v2041
        %v2058 = vpack.c.b16 %v2055, %v2054
        %v2059 = vpack.c.b16 %v2057, %v2056
        %v2063 = vsel %vm525, %v2036, 0
        %2065 = vmatprep.subr.bf16.mxu0 0
        %2066 = vmatpush1.bf16.msra.mxu0 0
        %2067 = vmatprep.subr.bf16.mxu0 0
        %2068 = vmatpush1.bf16.msra.mxu0 0
        %2069 = vmatprep.subr.bf16.mxu0 0
        %2070 = vmatpush1.bf16.msra.mxu0 0
        %2071 = vmatprep.subr.bf16.mxu0 0
        %2072 = vmatpush1.bf16.msra.mxu0 0
        %2073 = vmatprep.subr.bf16.mxu0 0
        %2074 = vmatpush1.bf16.msra.mxu0 0
        %2075 = vmatprep.subr.bf16.mxu0 0
        %2076 = vmatpush1.bf16.msra.mxu0 0
        %2077 = vmatprep.subr.bf16.mxu0 0
        %2078 = vmatpush1.bf16.msra.mxu0 %v2059
        %2079 = vmatprep.subr.bf16.mxu0 0
        %2080 = vmatpush1.bf16.msra.mxu0 %v2058
        %2081 = vmatprep.subr.bf16.mxu0 0
        %2082 = vmatpush2.bf16.msra.mxu0 0
        %2083 = vmatprep.subr.bf16.mxu0 0
        %2084 = vmatpush2.bf16.msra.mxu0 0
        %2085 = vmatprep.subr.bf16.mxu0 0
        %2086 = vmatpush2.bf16.msra.mxu0 0
        %2087 = vmatprep.subr.bf16.mxu0 0
        %2088 = vmatpush2.bf16.msra.mxu0 0
        %2089 = vmatprep.subr.bf16.mxu0 0
        %2090 = vmatpush2.bf16.msra.mxu0 0
        %2091 = vmatprep.subr.bf16.mxu0 0
        %2092 = vmatpush2.bf16.msra.mxu0 0
        %2093 = vmatprep.subr.bf16.mxu0 0
        %2094 = vmatpush2.bf16.msra.mxu0 0
        %2095 = vmatprep.subr.bf16.mxu0 0
        %2096 = vmatpush2.bf16.msra.mxu0 0
        %2097 = vmatprep.mubr.bf16.mxu0 0
        %2098 = vmatmul.mubr.bf16.gmra.mxu0 %v2063
        %v2099 = vpop.f32.mrf.mxu0
        %v2100 = vadd.f32 %v2048, %v2099
        %v2101 = vpop.f32.mrf.mxu0
        %v2102 = vpop.f32.mrf.mxu0
        %v2103 = vpop.f32.mrf.mxu0
        %2104 = vdwg.mxu0
        %v2105 = vadd.f32 %v2100, %v1740
        %s2106 = scalar_lea.vmem %s8, 2
        %v2107 = vld [vmem:[%s2106] sm:$0x1]
        %s2108 = scalar_lea.vmem %s9, 2
        %v2109 = vld [vmem:[%s2108] sm:$0x1]
        %v2110 = vsel %vm525, %v2105, 0.0
        %2111 = vadd.xlane.f32.xlu0 %v2110
        %v2112 = vpop.xlane.xlu0 %2111
        %v2113 = vmul.f32 %v2112, %v529
        %v2114 = vmul.f32 %v2105, %v2105
        %v2115 = vsel %vm525, %v2114, 0.0
        %2116 = vadd.xlane.f32.xlu0 %v2115
        %v2117 = vpop.xlane.xlu0 %2116
        %v2118 = vmul.f32 %v2117, %v529
        %v2119 = vmul.f32 %v2113, %v2113
        %v2120 = vsub.f32 %v2118, %v2119
        %v2121 = vsub.f32 %v2105, %v2113
        %v2122 = vadd.f32 %v2120, 1e-05
        %v2123 = vrsqrt.pop %v2122
        %v2124 = vmul.f32 %v2121, %v2123
        %v2126 = vlaneseq
        %v2127 = vshrl.u32 %v2126, 7
        %v2128 = vsub.s32 0, %v2127
        %v2129 = vrot.slane %v2107, %v2128
        %v2131 = vmul.f32 %v2124, %v2129
        %v2133 = vlaneseq
        %v2134 = vshrl.u32 %v2133, 7
        %v2135 = vsub.s32 0, %v2134
        %v2136 = vrot.slane %v2109, %v2135
        %v2138 = vadd.f32 %v2131, %v2136
        %v2139 = vpack.c.bf16 %v2138, %v2138
        %s2140 = scalar_lea.vmem %s10, 32
        %v2141 = vld [vmem:[%s2140] sm:$0xf]
        %v2142 = vld [vmem:[%s2140 + $0x4] sm:$0xf]
        %v2143 = vld [vmem:[%s2140 + $0x8] sm:$0xf]
        %v2144 = vld [vmem:[%s2140 + $0xc] sm:$0xf]
        %s2145 = scalar_lea.vmem %s11, 2
        %v2146 = vld [vmem:[%s2145] sm:$0x1]
        %v2148 = vlaneseq
        %v2149 = vshrl.u32 %v2148, 7
        %v2150 = vsub.s32 0, %v2149
        %v2151 = vrot.slane %v2146, %v2150
        %v2157 = vunpack.c.l.b16 %v2141
        %v2158 = vunpack.c.l.b16 %v2142
        %v2159 = vunpack.c.l.b16 %v2143
        %v2160 = vunpack.c.l.b16 %v2144
        %v2161 = vpack.c.b16 %v2158, %v2157
        %v2162 = vpack.c.b16 %v2160, %v2159
        %v2166 = vsel %vm525, %v2139, 0
        %2168 = vmatprep.subr.bf16.mxu0 0
        %2169 = vmatpush1.bf16.msra.mxu0 0
        %2170 = vmatprep.subr.bf16.mxu0 0
        %2171 = vmatpush1.bf16.msra.mxu0 0
        %2172 = vmatprep.subr.bf16.mxu0 0
        %2173 = vmatpush1.bf16.msra.mxu0 0
        %2174 = vmatprep.subr.bf16.mxu0 0
        %2175 = vmatpush1.bf16.msra.mxu0 0
        %2176 = vmatprep.subr.bf16.mxu0 0
        %2177 = vmatpush1.bf16.msra.mxu0 0
        %2178 = vmatprep.subr.bf16.mxu0 0
        %2179 = vmatpush1.bf16.msra.mxu0 0
        %2180 = vmatprep.subr.bf16.mxu0 0
        %2181 = vmatpush1.bf16.msra.mxu0 %v2162
        %2182 = vmatprep.subr.bf16.mxu0 0
        %2183 = vmatpush1.bf16.msra.mxu0 %v2161
        %2184 = vmatprep.subr.bf16.mxu0 0
        %2185 = vmatpush2.bf16.msra.mxu0 0
        %2186 = vmatprep.subr.bf16.mxu0 0
        %2187 = vmatpush2.bf16.msra.mxu0 0
        %2188 = vmatprep.subr.bf16.mxu0 0
        %2189 = vmatpush2.bf16.msra.mxu0 0
        %2190 = vmatprep.subr.bf16.mxu0 0
        %2191 = vmatpush2.bf16.msra.mxu0 0
        %2192 = vmatprep.subr.bf16.mxu0 0
        %2193 = vmatpush2.bf16.msra.mxu0 0
        %2194 = vmatprep.subr.bf16.mxu0 0
        %2195 = vmatpush2.bf16.msra.mxu0 0
        %2196 = vmatprep.subr.bf16.mxu0 0
        %2197 = vmatpush2.bf16.msra.mxu0 0
        %2198 = vmatprep.subr.bf16.mxu0 0
        %2199 = vmatpush2.bf16.msra.mxu0 0
        %2200 = vmatprep.mubr.bf16.mxu0 0
        %2201 = vmatmul.mubr.bf16.gmra.mxu0 %v2166
        %v2202 = vpop.f32.mrf.mxu0
        %v2203 = vadd.f32 %v2151, %v2202
        %v2204 = vpop.f32.mrf.mxu0
        %v2205 = vpop.f32.mrf.mxu0
        %v2206 = vpop.f32.mrf.mxu0
        %2207 = vdwg.mxu0
        %v2208 = vmul.f32 %v2203, 0.5
        %v2209 = vmul.f32 %v2203, 0.044715
        %v2210 = vmul.f32 %v2209, %v2203
        %v2211 = vmul.f32 %v2210, %v2203
        %v2212 = vadd.f32 %v2203, %v2211
        %v2213 = vmul.f32 %v2212, 0.7978846
        %v2214 = vtanh.pop %v2213
        %v2215 = vadd.f32 %v2214, 1.0
        %v2216 = vmul.f32 %v2208, %v2215
        %v2217 = vpack.c.bf16 %v2216, %v2216
        %s2218 = scalar_lea.vmem %s12, 64
        %v2219 = vld [vmem:[%s2218] sm:$0xf]
        %v2220 = vld [vmem:[%s2218 + $0x4] sm:$0xf]
        %v2221 = vld [vmem:[%s2218 + $0x8] sm:$0xf]
        %v2222 = vld [vmem:[%s2218 + $0xc] sm:$0xf]
        %v2223 = vld [vmem:[%s2218 + $0x10] sm:$0xf]
        %v2224 = vld [vmem:[%s2218 + $0x14] sm:$0xf]
        %v2225 = vld [vmem:[%s2218 + $0x18] sm:$0xf]
        %v2226 = vld [vmem:[%s2218 + $0x1c] sm:$0xf]
        %s2227 = scalar_lea.vmem %s13, 2
        %v2228 = vld [vmem:[%s2227] sm:$0x1]
        %v2230 = vlaneseq
        %v2231 = vshrl.u32 %v2230, 7
        %v2232 = vsub.s32 0, %v2231
        %v2233 = vrot.slane %v2228, %v2232
        %v2243 = vunpack.c.l.b16 %v2219
        %v2244 = vunpack.c.l.b16 %v2220
        %v2245 = vunpack.c.l.b16 %v2221
        %v2246 = vunpack.c.l.b16 %v2222
        %v2247 = vunpack.c.l.b16 %v2223
        %v2248 = vunpack.c.l.b16 %v2224
        %v2249 = vunpack.c.l.b16 %v2225
        %v2250 = vunpack.c.l.b16 %v2226
        %v2251 = vpack.c.b16 %v2244, %v2243
        %v2252 = vpack.c.b16 %v2246, %v2245
        %v2253 = vpack.c.b16 %v2248, %v2247
        %v2254 = vpack.c.b16 %v2250, %v2249
        %v2260 = vsel %vm1070, %v2217, 0
        %2262 = vmatprep.subr.bf16.mxu0 0
        %2263 = vmatpush1.bf16.msra.mxu0 0
        %2264 = vmatprep.subr.bf16.mxu0 0
        %2265 = vmatpush1.bf16.msra.mxu0 0
        %2266 = vmatprep.subr.bf16.mxu0 0
        %2267 = vmatpush1.bf16.msra.mxu0 0
        %2268 = vmatprep.subr.bf16.mxu0 0
        %2269 = vmatpush1.bf16.msra.mxu0 0
        %2270 = vmatprep.subr.bf16.mxu0 0
        %2271 = vmatpush1.bf16.msra.mxu0 %v2254
        %2272 = vmatprep.subr.bf16.mxu0 0
        %2273 = vmatpush1.bf16.msra.mxu0 %v2253
        %2274 = vmatprep.subr.bf16.mxu0 0
        %2275 = vmatpush1.bf16.msra.mxu0 %v2252
        %2276 = vmatprep.subr.bf16.mxu0 0
        %2277 = vmatpush1.bf16.msra.mxu0 %v2251
        %2278 = vmatprep.subr.bf16.mxu0 0
        %2279 = vmatpush2.bf16.msra.mxu0 0
        %2280 = vmatprep.subr.bf16.mxu0 0
        %2281 = vmatpush2.bf16.msra.mxu0 0
        %2282 = vmatprep.subr.bf16.mxu0 0
        %2283 = vmatpush2.bf16.msra.mxu0 0
        %2284 = vmatprep.subr.bf16.mxu0 0
        %2285 = vmatpush2.bf16.msra.mxu0 0
        %2286 = vmatprep.subr.bf16.mxu0 0
        %2287 = vmatpush2.bf16.msra.mxu0 0
        %2288 = vmatprep.subr.bf16.mxu0 0
        %2289 = vmatpush2.bf16.msra.mxu0 0
        %2290 = vmatprep.subr.bf16.mxu0 0
        %2291 = vmatpush2.bf16.msra.mxu0 0
        %2292 = vmatprep.subr.bf16.mxu0 0
        %2293 = vmatpush2.bf16.msra.mxu0 0
        %2294 = vmatprep.mubr.bf16.mxu0 0
        %2295 = vmatmul.mubr.bf16.gmra.mxu0 %v2260
        %v2296 = vpop.f32.mrf.mxu0
        %v2297 = vadd.f32 %v2233, %v2296
        %v2298 = vpop.f32.mrf.mxu0
        %v2299 = vpop.f32.mrf.mxu0
        %v2300 = vpop.f32.mrf.mxu0
        %2301 = vdwg.mxu0
        %v2302 = vadd.f32 %v2297, %v2138
        %s2303 = scalar_lea.vmem %s14, 2
        %v2304 = vld [vmem:[%s2303] sm:$0x1]
        %s2305 = scalar_lea.vmem %s15, 2
        %v2306 = vld [vmem:[%s2305] sm:$0x1]
        %v2307 = vsel %vm525, %v2302, 0.0
        %2308 = vadd.xlane.f32.xlu0 %v2307
        %v2309 = vpop.xlane.xlu0 %2308
        %v2310 = vmul.f32 %v2309, %v529
        %v2311 = vmul.f32 %v2302, %v2302
        %v2312 = vsel %vm525, %v2311, 0.0
        %2313 = vadd.xlane.f32.xlu0 %v2312
        %v2314 = vpop.xlane.xlu0 %2313
        %v2315 = vmul.f32 %v2314, %v529
        %v2316 = vmul.f32 %v2310, %v2310
        %v2317 = vsub.f32 %v2315, %v2316
        %v2318 = vsub.f32 %v2302, %v2310
        %v2319 = vadd.f32 %v2317, 1e-05
        %v2320 = vrsqrt.pop %v2319
        %v2321 = vmul.f32 %v2318, %v2320
        %v2323 = vlaneseq
        %v2324 = vshrl.u32 %v2323, 7
        %v2325 = vsub.s32 0, %v2324
        %v2326 = vrot.slane %v2304, %v2325
        %v2328 = vmul.f32 %v2321, %v2326
        %v2330 = vlaneseq
        %v2331 = vshrl.u32 %v2330, 7
        %v2332 = vsub.s32 0, %v2331
        %v2333 = vrot.slane %v2306, %v2332
        %v2335 = vadd.f32 %v2328, %v2333
        %v2336 = vadd.f32 %v1741, %v2335
        %v2337 = vpack.c.bf16 %v2335, %v2335
        %s2338 = scalar_lea.vmem %s4, 48
        %v2339 = vld [vmem:[%s2338] sm:$0xf]
        %v2340 = vld [vmem:[%s2338 + $0x4] sm:$0xf]
        %v2341 = vld [vmem:[%s2338 + $0x8] sm:$0xf]
        %v2342 = vld [vmem:[%s2338 + $0xc] sm:$0xf]
        %s2343 = scalar_lea.vmem %s5, 3
        %v2344 = vld [vmem:[%s2343] sm:$0x1]
        %v2346 = vlaneseq
        %v2347 = vshrl.u32 %v2346, 7
        %v2348 = vsub.s32 0, %v2347
        %v2349 = vrot.slane %v2344, %v2348
        %v2355 = vunpack.c.l.b16 %v2339
        %v2356 = vunpack.c.l.b16 %v2340
        %v2357 = vunpack.c.l.b16 %v2341
        %v2358 = vunpack.c.l.b16 %v2342
        %v2359 = vpack.c.b16 %v2356, %v2355
        %v2360 = vpack.c.b16 %v2358, %v2357
        %v2364 = vsel %vm525, %v2337, 0
        %2366 = vmatprep.subr.bf16.mxu0 0
        %2367 = vmatpush1.bf16.msra.mxu0 0
        %2368 = vmatprep.subr.bf16.mxu0 0
        %2369 = vmatpush1.bf16.msra.mxu0 0
        %2370 = vmatprep.subr.bf16.mxu0 0
        %2371 = vmatpush1.bf16.msra.mxu0 0
        %2372 = vmatprep.subr.bf16.mxu0 0
        %2373 = vmatpush1.bf16.msra.mxu0 0
        %2374 = vmatprep.subr.bf16.mxu0 0
        %2375 = vmatpush1.bf16.msra.mxu0 0
        %2376 = vmatprep.subr.bf16.mxu0 0
        %2377 = vmatpush1.bf16.msra.mxu0 0
        %2378 = vmatprep.subr.bf16.mxu0 0
        %2379 = vmatpush1.bf16.msra.mxu0 %v2360
        %2380 = vmatprep.subr.bf16.mxu0 0
        %2381 = vmatpush1.bf16.msra.mxu0 %v2359
        %2382 = vmatprep.subr.bf16.mxu0 0
        %2383 = vmatpush2.bf16.msra.mxu0 0
        %2384 = vmatprep.subr.bf16.mxu0 0
        %2385 = vmatpush2.bf16.msra.mxu0 0
        %2386 = vmatprep.subr.bf16.mxu0 0
        %2387 = vmatpush2.bf16.msra.mxu0 0
        %2388 = vmatprep.subr.bf16.mxu0 0
        %2389 = vmatpush2.bf16.msra.mxu0 0
        %2390 = vmatprep.subr.bf16.mxu0 0
        %2391 = vmatpush2.bf16.msra.mxu0 0
        %2392 = vmatprep.subr.bf16.mxu0 0
        %2393 = vmatpush2.bf16.msra.mxu0 0
        %2394 = vmatprep.subr.bf16.mxu0 0
        %2395 = vmatpush2.bf16.msra.mxu0 0
        %2396 = vmatprep.subr.bf16.mxu0 0
        %2397 = vmatpush2.bf16.msra.mxu0 0
        %2398 = vmatprep.mubr.bf16.mxu0 0
        %2399 = vmatmul.mubr.bf16.gmra.mxu0 %v2364
        %v2400 = vpop.f32.mrf.mxu0
        %v2401 = vadd.f32 %v2349, %v2400
        %v2402 = vpop.f32.mrf.mxu0
        %v2403 = vpop.f32.mrf.mxu0
        %v2404 = vpop.f32.mrf.mxu0
        %2405 = vdwg.mxu0
        %v2406 = vpack.c.bf16 %v2401, %v2401
        %2408 = vrot.lane.b32.xlu0 %v2406, 96
        %v2409 = vpop.permute.xlu0 %2408
        %v2411 = vsel %vm631, %v2406, 0
        %v2414 = vsel %vm631, %v2409, 0
        %2416 = vmatprep.subr.bf16.mxu0 0
        %2417 = vmatpush1.bf16.xpose.msra.mxu0 0
        %2418 = vmatprep.subr.bf16.mxu0 0
        %2419 = vmatpush1.bf16.xpose.msra.mxu0 0
        %2420 = vmatprep.subr.bf16.mxu0 0
        %2421 = vmatpush1.bf16.xpose.msra.mxu0 0
        %2422 = vmatprep.subr.bf16.mxu0 0
        %2423 = vmatpush1.bf16.xpose.msra.mxu0 0
        %2424 = vmatprep.subr.bf16.mxu0 0
        %2425 = vmatpush1.bf16.xpose.msra.mxu0 0
        %2426 = vmatprep.subr.bf16.mxu0 0
        %2427 = vmatpush1.bf16.xpose.msra.mxu0 0
        %2428 = vmatprep.subr.bf16.mxu0 0
        %2429 = vmatpush1.bf16.xpose.msra.mxu0 0
        %2430 = vmatprep.subr.bf16.mxu0 0
        %2431 = vmatpush1.bf16.xpose.msra.mxu0 %v2414
        %2432 = vmatprep.subr.bf16.mxu0 0
        %2433 = vmatpush2.bf16.xpose.msra.mxu0 0
        %2434 = vmatprep.subr.bf16.mxu0 0
        %2435 = vmatpush2.bf16.xpose.msra.mxu0 0
        %2436 = vmatprep.subr.bf16.mxu0 0
        %2437 = vmatpush2.bf16.xpose.msra.mxu0 0
        %2438 = vmatprep.subr.bf16.mxu0 0
        %2439 = vmatpush2.bf16.xpose.msra.mxu0 0
        %2440 = vmatprep.subr.bf16.mxu0 0
        %2441 = vmatpush2.bf16.xpose.msra.mxu0 0
        %2442 = vmatprep.subr.bf16.mxu0 0
        %2443 = vmatpush2.bf16.xpose.msra.mxu0 0
        %2444 = vmatprep.subr.bf16.mxu0 0
        %2445 = vmatpush2.bf16.xpose.msra.mxu0 0
        %2446 = vmatprep.subr.bf16.mxu0 0
        %2447 = vmatpush2.bf16.xpose.msra.mxu0 0
        %2448 = vmatprep.mubr.bf16.mxu0 0
        %2449 = vmatmul.mubr.bf16.gmra.mxu0 %v2411
        %v2450 = vpop.f32.mrf.mxu0
        %v2451 = vadd.f32 %v627, %v2450
        %v2452 = vpop.f32.mrf.mxu0
        %v2453 = vpop.f32.mrf.mxu0
        %v2454 = vpop.f32.mrf.mxu0
        %2455 = vdwg.mxu0
        %v2456 = vsel %vm678, %v2451, -inf
        %2457 = vmax.xlane.f32.xlu0 %v2456
        %v2458 = vpop.xlane.xlu0 %2457
        %v2459 = vsub.f32 %v2451, %v2458
        %v2460 = vmul.f32 %v2459, 1.442695
        %v2461 = vpow.pop %v2460
        %v2462 = vsel %vm678, %v2461, 0.0
        %2463 = vadd.xlane.f32.xlu0 %v2462
        %v2464 = vpop.xlane.xlu0 %2463
        %v2465 = vrcp.pop %v2464
        %v2466 = vmul.f32 %v2461, %v2465
        %v2467 = vpack.c.bf16 %v2466, %v2466
        %2468 = vrot.lane.b32.xlu0 %v2406, 64
        %v2469 = vpop.permute.xlu0 %2468
        %v2471 = vsel %vm678, %v2467, 0
        %v2474 = vsel %vm696, %v2469, 0
        %2476 = vmatprep.subr.bf16.mxu0 0
        %2477 = vmatpush1.bf16.msra.mxu0 0
        %2478 = vmatprep.subr.bf16.mxu0 0
        %2479 = vmatpush1.bf16.msra.mxu0 0
        %2480 = vmatprep.subr.bf16.mxu0 0
        %2481 = vmatpush1.bf16.msra.mxu0 0
        %2482 = vmatprep.subr.bf16.mxu0 0
        %2483 = vmatpush1.bf16.msra.mxu0 0
        %2484 = vmatprep.subr.bf16.mxu0 0
        %2485 = vmatpush1.bf16.msra.mxu0 0
        %2486 = vmatprep.subr.bf16.mxu0 0
        %2487 = vmatpush1.bf16.msra.mxu0 0
        %2488 = vmatprep.subr.bf16.mxu0 0
        %2489 = vmatpush1.bf16.msra.mxu0 0
        %2490 = vmatprep.subr.bf16.mxu0 0
        %2491 = vmatpush1.bf16.msra.mxu0 %v2474
        %2492 = vmatprep.subr.bf16.mxu0 0
        %2493 = vmatpush2.bf16.msra.mxu0 0
        %2494 = vmatprep.subr.bf16.mxu0 0
        %2495 = vmatpush2.bf16.msra.mxu0 0
        %2496 = vmatprep.subr.bf16.mxu0 0
        %2497 = vmatpush2.bf16.msra.mxu0 0
        %2498 = vmatprep.subr.bf16.mxu0 0
        %2499 = vmatpush2.bf16.msra.mxu0 0
        %2500 = vmatprep.subr.bf16.mxu0 0
        %2501 = vmatpush2.bf16.msra.mxu0 0
        %2502 = vmatprep.subr.bf16.mxu0 0
        %2503 = vmatpush2.bf16.msra.mxu0 0
        %2504 = vmatprep.subr.bf16.mxu0 0
        %2505 = vmatpush2.bf16.msra.mxu0 0
        %2506 = vmatprep.subr.bf16.mxu0 0
        %2507 = vmatpush2.bf16.msra.mxu0 0
        %2508 = vmatprep.mubr.bf16.mxu0 0
        %2509 = vmatmul.mubr.bf16.gmra.mxu0 %v2471
        %v2510 = vpop.f32.mrf.mxu0
        %v2511 = vadd.f32 0.0, %v2510
        %v2512 = vpop.f32.mrf.mxu0
        %v2513 = vpop.f32.mrf.mxu0
        %v2514 = vpop.f32.mrf.mxu0
        %2515 = vdwg.mxu0
        %2516 = vrot.lane.b32.xlu0 %v2406, 112
        %v2517 = vpop.permute.xlu0 %2516
        %2518 = vrot.lane.b32.xlu0 %v2406, 80
        %v2519 = vpop.permute.xlu0 %2518
        %v2521 = vsel %vm631, %v2517, 0
        %v2524 = vsel %vm631, %v2519, 0
        %2526 = vmatprep.subr.bf16.mxu0 0
        %2527 = vmatpush1.bf16.xpose.msra.mxu0 0
        %2528 = vmatprep.subr.bf16.mxu0 0
        %2529 = vmatpush1.bf16.xpose.msra.mxu0 0
        %2530 = vmatprep.subr.bf16.mxu0 0
        %2531 = vmatpush1.bf16.xpose.msra.mxu0 0
        %2532 = vmatprep.subr.bf16.mxu0 0
        %2533 = vmatpush1.bf16.xpose.msra.mxu0 0
        %2534 = vmatprep.subr.bf16.mxu0 0
        %2535 = vmatpush1.bf16.xpose.msra.mxu0 0
        %2536 = vmatprep.subr.bf16.mxu0 0
        %2537 = vmatpush1.bf16.xpose.msra.mxu0 0
        %2538 = vmatprep.subr.bf16.mxu0 0
        %2539 = vmatpush1.bf16.xpose.msra.mxu0 0
        %2540 = vmatprep.subr.bf16.mxu0 0
        %2541 = vmatpush1.bf16.xpose.msra.mxu0 %v2524
        %2542 = vmatprep.subr.bf16.mxu0 0
        %2543 = vmatpush2.bf16.xpose.msra.mxu0 0
        %2544 = vmatprep.subr.bf16.mxu0 0
        %2545 = vmatpush2.bf16.xpose.msra.mxu0 0
        %2546 = vmatprep.subr.bf16.mxu0 0
        %2547 = vmatpush2.bf16.xpose.msra.mxu0 0
        %2548 = vmatprep.subr.bf16.mxu0 0
        %2549 = vmatpush2.bf16.xpose.msra.mxu0 0
        %2550 = vmatprep.subr.bf16.mxu0 0
        %2551 = vmatpush2.bf16.xpose.msra.mxu0 0
        %2552 = vmatprep.subr.bf16.mxu0 0
        %2553 = vmatpush2.bf16.xpose.msra.mxu0 0
        %2554 = vmatprep.subr.bf16.mxu0 0
        %2555 = vmatpush2.bf16.xpose.msra.mxu0 0
        %2556 = vmatprep.subr.bf16.mxu0 0
        %2557 = vmatpush2.bf16.xpose.msra.mxu0 0
        %2558 = vmatprep.mubr.bf16.mxu0 0
        %2559 = vmatmul.mubr.bf16.gmra.mxu0 %v2521
        %v2560 = vpop.f32.mrf.mxu0
        %v2561 = vadd.f32 %v627, %v2560
        %v2562 = vpop.f32.mrf.mxu0
        %v2563 = vpop.f32.mrf.mxu0
        %v2564 = vpop.f32.mrf.mxu0
        %2565 = vdwg.mxu0
        %v2566 = vsel %vm678, %v2561, -inf
        %2567 = vmax.xlane.f32.xlu0 %v2566
        %v2568 = vpop.xlane.xlu0 %2567
        %v2569 = vsub.f32 %v2561, %v2568
        %v2570 = vmul.f32 %v2569, 1.442695
        %v2571 = vpow.pop %v2570
        %v2572 = vsel %vm678, %v2571, 0.0
        %2573 = vadd.xlane.f32.xlu0 %v2572
        %v2574 = vpop.xlane.xlu0 %2573
        %v2575 = vrcp.pop %v2574
        %v2576 = vmul.f32 %v2571, %v2575
        %v2577 = vpack.c.bf16 %v2576, %v2576
        %2578 = vrot.lane.b32.xlu0 %v2406, 48
        %v2579 = vpop.permute.xlu0 %2578
        %v2581 = vsel %vm678, %v2577, 0
        %v2584 = vsel %vm696, %v2579, 0
        %2586 = vmatprep.subr.bf16.mxu0 0
        %2587 = vmatpush1.bf16.msra.mxu0 0
        %2588 = vmatprep.subr.bf16.mxu0 0
        %2589 = vmatpush1.bf16.msra.mxu0 0
        %2590 = vmatprep.subr.bf16.mxu0 0
        %2591 = vmatpush1.bf16.msra.mxu0 0
        %2592 = vmatprep.subr.bf16.mxu0 0
        %2593 = vmatpush1.bf16.msra.mxu0 0
        %2594 = vmatprep.subr.bf16.mxu0 0
        %2595 = vmatpush1.bf16.msra.mxu0 0
        %2596 = vmatprep.subr.bf16.mxu0 0
        %2597 = vmatpush1.bf16.msra.mxu0 0
        %2598 = vmatprep.subr.bf16.mxu0 0
        %2599 = vmatpush1.bf16.msra.mxu0 0
        %2600 = vmatprep.subr.bf16.mxu0 0
        %2601 = vmatpush1.bf16.msra.mxu0 %v2584
        %2602 = vmatprep.subr.bf16.mxu0 0
        %2603 = vmatpush2.bf16.msra.mxu0 0
        %2604 = vmatprep.subr.bf16.mxu0 0
        %2605 = vmatpush2.bf16.msra.mxu0 0
        %2606 = vmatprep.subr.bf16.mxu0 0
        %2607 = vmatpush2.bf16.msra.mxu0 0
        %2608 = vmatprep.subr.bf16.mxu0 0
        %2609 = vmatpush2.bf16.msra.mxu0 0
        %2610 = vmatprep.subr.bf16.mxu0 0
        %2611 = vmatpush2.bf16.msra.mxu0 0
        %2612 = vmatprep.subr.bf16.mxu0 0
        %2613 = vmatpush2.bf16.msra.mxu0 0
        %2614 = vmatprep.subr.bf16.mxu0 0
        %2615 = vmatpush2.bf16.msra.mxu0 0
        %2616 = vmatprep.subr.bf16.mxu0 0
        %2617 = vmatpush2.bf16.msra.mxu0 0
        %2618 = vmatprep.mubr.bf16.mxu0 0
        %2619 = vmatmul.mubr.bf16.gmra.mxu0 %v2581
        %v2620 = vpop.f32.mrf.mxu0
        %v2621 = vadd.f32 0.0, %v2620
        %v2622 = vpop.f32.mrf.mxu0
        %v2623 = vpop.f32.mrf.mxu0
        %v2624 = vpop.f32.mrf.mxu0
        %2625 = vdwg.mxu0
        %2627 = vrot.lane.b32.xlu0 %v2621, 16
        %v2628 = vpop.permute.xlu0 %2627
        %v2630 = vsel %vm631, %v2511, %v2628
        %v2631 = vpack.c.bf16 %v2630, %v2630
        %s2632 = scalar_lea.vmem %s6, 48
        %v2633 = vld [vmem:[%s2632] sm:$0xf]
        %v2634 = vld [vmem:[%s2632 + $0x4] sm:$0xf]
        %v2635 = vld [vmem:[%s2632 + $0x8] sm:$0xf]
        %v2636 = vld [vmem:[%s2632 + $0xc] sm:$0xf]
        %s2637 = scalar_lea.vmem %s7, 3
        %v2638 = vld [vmem:[%s2637] sm:$0x1]
        %v2640 = vlaneseq
        %v2641 = vshrl.u32 %v2640, 7
        %v2642 = vsub.s32 0, %v2641
        %v2643 = vrot.slane %v2638, %v2642
        %v2649 = vunpack.c.l.b16 %v2633
        %v2650 = vunpack.c.l.b16 %v2634
        %v2651 = vunpack.c.l.b16 %v2635
        %v2652 = vunpack.c.l.b16 %v2636
        %v2653 = vpack.c.b16 %v2650, %v2649
        %v2654 = vpack.c.b16 %v2652, %v2651
        %v2658 = vsel %vm525, %v2631, 0
        %2660 = vmatprep.subr.bf16.mxu0 0
        %2661 = vmatpush1.bf16.msra.mxu0 0
        %2662 = vmatprep.subr.bf16.mxu0 0
        %2663 = vmatpush1.bf16.msra.mxu0 0
        %2664 = vmatprep.subr.bf16.mxu0 0
        %2665 = vmatpush1.bf16.msra.mxu0 0
        %2666 = vmatprep.subr.bf16.mxu0 0
        %2667 = vmatpush1.bf16.msra.mxu0 0
        %2668 = vmatprep.subr.bf16.mxu0 0
        %2669 = vmatpush1.bf16.msra.mxu0 0
        %2670 = vmatprep.subr.bf16.mxu0 0
        %2671 = vmatpush1.bf16.msra.mxu0 0
        %2672 = vmatprep.subr.bf16.mxu0 0
        %2673 = vmatpush1.bf16.msra.mxu0 %v2654
        %2674 = vmatprep.subr.bf16.mxu0 0
        %2675 = vmatpush1.bf16.msra.mxu0 %v2653
        %2676 = vmatprep.subr.bf16.mxu0 0
        %2677 = vmatpush2.bf16.msra.mxu0 0
        %2678 = vmatprep.subr.bf16.mxu0 0
        %2679 = vmatpush2.bf16.msra.mxu0 0
        %2680 = vmatprep.subr.bf16.mxu0 0
        %2681 = vmatpush2.bf16.msra.mxu0 0
        %2682 = vmatprep.subr.bf16.mxu0 0
        %2683 = vmatpush2.bf16.msra.mxu0 0
        %2684 = vmatprep.subr.bf16.mxu0 0
        %2685 = vmatpush2.bf16.msra.mxu0 0
        %2686 = vmatprep.subr.bf16.mxu0 0
        %2687 = vmatpush2.bf16.msra.mxu0 0
        %2688 = vmatprep.subr.bf16.mxu0 0
        %2689 = vmatpush2.bf16.msra.mxu0 0
        %2690 = vmatprep.subr.bf16.mxu0 0
        %2691 = vmatpush2.bf16.msra.mxu0 0
        %2692 = vmatprep.mubr.bf16.mxu0 0
        %2693 = vmatmul.mubr.bf16.gmra.mxu0 %v2658
        %v2694 = vpop.f32.mrf.mxu0
        %v2695 = vadd.f32 %v2643, %v2694
        %v2696 = vpop.f32.mrf.mxu0
        %v2697 = vpop.f32.mrf.mxu0
        %v2698 = vpop.f32.mrf.mxu0
        %2699 = vdwg.mxu0
        %v2700 = vadd.f32 %v2695, %v2335
        %s2701 = scalar_lea.vmem %s8, 3
        %v2702 = vld [vmem:[%s2701] sm:$0x1]
        %s2703 = scalar_lea.vmem %s9, 3
        %v2704 = vld [vmem:[%s2703] sm:$0x1]
        %v2705 = vsel %vm525, %v2700, 0.0
        %2706 = vadd.xlane.f32.xlu0 %v2705
        %v2707 = vpop.xlane.xlu0 %2706
        %v2708 = vmul.f32 %v2707, %v529
        %v2709 = vmul.f32 %v2700, %v2700
        %v2710 = vsel %vm525, %v2709, 0.0
        %2711 = vadd.xlane.f32.xlu0 %v2710
        %v2712 = vpop.xlane.xlu0 %2711
        %v2713 = vmul.f32 %v2712, %v529
        %v2714 = vmul.f32 %v2708, %v2708
        %v2715 = vsub.f32 %v2713, %v2714
        %v2716 = vsub.f32 %v2700, %v2708
        %v2717 = vadd.f32 %v2715, 1e-05
        %v2718 = vrsqrt.pop %v2717
        %v2719 = vmul.f32 %v2716, %v2718
        %v2721 = vlaneseq
        %v2722 = vshrl.u32 %v2721, 7
        %v2723 = vsub.s32 0, %v2722
        %v2724 = vrot.slane %v2702, %v2723
        %v2726 = vmul.f32 %v2719, %v2724
        %v2728 = vlaneseq
        %v2729 = vshrl.u32 %v2728, 7
        %v2730 = vsub.s32 0, %v2729
        %v2731 = vrot.slane %v2704, %v2730
        %v2733 = vadd.f32 %v2726, %v2731
        %v2734 = vpack.c.bf16 %v2733, %v2733
        %s2735 = scalar_lea.vmem %s10, 48
        %v2736 = vld [vmem:[%s2735] sm:$0xf]
        %v2737 = vld [vmem:[%s2735 + $0x4] sm:$0xf]
        %v2738 = vld [vmem:[%s2735 + $0x8] sm:$0xf]
        %v2739 = vld [vmem:[%s2735 + $0xc] sm:$0xf]
        %s2740 = scalar_lea.vmem %s11, 3
        %v2741 = vld [vmem:[%s2740] sm:$0x1]
        %v2743 = vlaneseq
        %v2744 = vshrl.u32 %v2743, 7
        %v2745 = vsub.s32 0, %v2744
        %v2746 = vrot.slane %v2741, %v2745
        %v2752 = vunpack.c.l.b16 %v2736
        %v2753 = vunpack.c.l.b16 %v2737
        %v2754 = vunpack.c.l.b16 %v2738
        %v2755 = vunpack.c.l.b16 %v2739
        %v2756 = vpack.c.b16 %v2753, %v2752
        %v2757 = vpack.c.b16 %v2755, %v2754
        %v2761 = vsel %vm525, %v2734, 0
        %2763 = vmatprep.subr.bf16.mxu0 0
        %2764 = vmatpush1.bf16.msra.mxu0 0
        %2765 = vmatprep.subr.bf16.mxu0 0
        %2766 = vmatpush1.bf16.msra.mxu0 0
        %2767 = vmatprep.subr.bf16.mxu0 0
        %2768 = vmatpush1.bf16.msra.mxu0 0
        %2769 = vmatprep.subr.bf16.mxu0 0
        %2770 = vmatpush1.bf16.msra.mxu0 0
        %2771 = vmatprep.subr.bf16.mxu0 0
        %2772 = vmatpush1.bf16.msra.mxu0 0
        %2773 = vmatprep.subr.bf16.mxu0 0
        %2774 = vmatpush1.bf16.msra.mxu0 0
        %2775 = vmatprep.subr.bf16.mxu0 0
        %2776 = vmatpush1.bf16.msra.mxu0 %v2757
        %2777 = vmatprep.subr.bf16.mxu0 0
        %2778 = vmatpush1.bf16.msra.mxu0 %v2756
        %2779 = vmatprep.subr.bf16.mxu0 0
        %2780 = vmatpush2.bf16.msra.mxu0 0
        %2781 = vmatprep.subr.bf16.mxu0 0
        %2782 = vmatpush2.bf16.msra.mxu0 0
        %2783 = vmatprep.subr.bf16.mxu0 0
        %2784 = vmatpush2.bf16.msra.mxu0 0
        %2785 = vmatprep.subr.bf16.mxu0 0
        %2786 = vmatpush2.bf16.msra.mxu0 0
        %2787 = vmatprep.subr.bf16.mxu0 0
        %2788 = vmatpush2.bf16.msra.mxu0 0
        %2789 = vmatprep.subr.bf16.mxu0 0
        %2790 = vmatpush2.bf16.msra.mxu0 0
        %2791 = vmatprep.subr.bf16.mxu0 0
        %2792 = vmatpush2.bf16.msra.mxu0 0
        %2793 = vmatprep.subr.bf16.mxu0 0
        %2794 = vmatpush2.bf16.msra.mxu0 0
        %2795 = vmatprep.mubr.bf16.mxu0 0
        %2796 = vmatmul.mubr.bf16.gmra.mxu0 %v2761
        %v2797 = vpop.f32.mrf.mxu0
        %v2798 = vadd.f32 %v2746, %v2797
        %v2799 = vpop.f32.mrf.mxu0
        %v2800 = vpop.f32.mrf.mxu0
        %v2801 = vpop.f32.mrf.mxu0
        %2802 = vdwg.mxu0
        %v2803 = vmul.f32 %v2798, 0.5
        %v2804 = vmul.f32 %v2798, 0.044715
        %v2805 = vmul.f32 %v2804, %v2798
        %v2806 = vmul.f32 %v2805, %v2798
        %v2807 = vadd.f32 %v2798, %v2806
        %v2808 = vmul.f32 %v2807, 0.7978846
        %v2809 = vtanh.pop %v2808
        %v2810 = vadd.f32 %v2809, 1.0
        %v2811 = vmul.f32 %v2803, %v2810
        %v2812 = vpack.c.bf16 %v2811, %v2811
        %s2813 = scalar_lea.vmem %s12, 96
        %v2814 = vld [vmem:[%s2813] sm:$0xf]
        %v2815 = vld [vmem:[%s2813 + $0x4] sm:$0xf]
        %v2816 = vld [vmem:[%s2813 + $0x8] sm:$0xf]
        %v2817 = vld [vmem:[%s2813 + $0xc] sm:$0xf]
        %v2818 = vld [vmem:[%s2813 + $0x10] sm:$0xf]
        %v2819 = vld [vmem:[%s2813 + $0x14] sm:$0xf]
        %v2820 = vld [vmem:[%s2813 + $0x18] sm:$0xf]
        %v2821 = vld [vmem:[%s2813 + $0x1c] sm:$0xf]
        %s2822 = scalar_lea.vmem %s13, 3
        %v2823 = vld [vmem:[%s2822] sm:$0x1]
        %v2825 = vlaneseq
        %v2826 = vshrl.u32 %v2825, 7
        %v2827 = vsub.s32 0, %v2826
        %v2828 = vrot.slane %v2823, %v2827
        %v2838 = vunpack.c.l.b16 %v2814
        %v2839 = vunpack.c.l.b16 %v2815
        %v2840 = vunpack.c.l.b16 %v2816
        %v2841 = vunpack.c.l.b16 %v2817
        %v2842 = vunpack.c.l.b16 %v2818
        %v2843 = vunpack.c.l.b16 %v2819
        %v2844 = vunpack.c.l.b16 %v2820
        %v2845 = vunpack.c.l.b16 %v2821
        %v2846 = vpack.c.b16 %v2839, %v2838
        %v2847 = vpack.c.b16 %v2841, %v2840
        %v2848 = vpack.c.b16 %v2843, %v2842
        %v2849 = vpack.c.b16 %v2845, %v2844
        %v2855 = vsel %vm1070, %v2812, 0
        %2857 = vmatprep.subr.bf16.mxu0 0
        %2858 = vmatpush1.bf16.msra.mxu0 0
        %2859 = vmatprep.subr.bf16.mxu0 0
        %2860 = vmatpush1.bf16.msra.mxu0 0
        %2861 = vmatprep.subr.bf16.mxu0 0
        %2862 = vmatpush1.bf16.msra.mxu0 0
        %2863 = vmatprep.subr.bf16.mxu0 0
        %2864 = vmatpush1.bf16.msra.mxu0 0
        %2865 = vmatprep.subr.bf16.mxu0 0
        %2866 = vmatpush1.bf16.msra.mxu0 %v2849
        %2867 = vmatprep.subr.bf16.mxu0 0
        %2868 = vmatpush1.bf16.msra.mxu0 %v2848
        %2869 = vmatprep.subr.bf16.mxu0 0
        %2870 = vmatpush1.bf16.msra.mxu0 %v2847
        %2871 = vmatprep.subr.bf16.mxu0 0
        %2872 = vmatpush1.bf16.msra.mxu0 %v2846
        %2873 = vmatprep.subr.bf16.mxu0 0
        %2874 = vmatpush2.bf16.msra.mxu0 0
        %2875 = vmatprep.subr.bf16.mxu0 0
        %2876 = vmatpush2.bf16.msra.mxu0 0
        %2877 = vmatprep.subr.bf16.mxu0 0
        %2878 = vmatpush2.bf16.msra.mxu0 0
        %2879 = vmatprep.subr.bf16.mxu0 0
        %2880 = vmatpush2.bf16.msra.mxu0 0
        %2881 = vmatprep.subr.bf16.mxu0 0
        %2882 = vmatpush2.bf16.msra.mxu0 0
        %2883 = vmatprep.subr.bf16.mxu0 0
        %2884 = vmatpush2.bf16.msra.mxu0 0
        %2885 = vmatprep.subr.bf16.mxu0 0
        %2886 = vmatpush2.bf16.msra.mxu0 0
        %2887 = vmatprep.subr.bf16.mxu0 0
        %2888 = vmatpush2.bf16.msra.mxu0 0
        %2889 = vmatprep.mubr.bf16.mxu0 0
        %2890 = vmatmul.mubr.bf16.gmra.mxu0 %v2855
        %v2891 = vpop.f32.mrf.mxu0
        %v2892 = vadd.f32 %v2828, %v2891
        %v2893 = vpop.f32.mrf.mxu0
        %v2894 = vpop.f32.mrf.mxu0
        %v2895 = vpop.f32.mrf.mxu0
        %2896 = vdwg.mxu0
        %v2897 = vadd.f32 %v2892, %v2733
        %s2898 = scalar_lea.vmem %s14, 3
        %v2899 = vld [vmem:[%s2898] sm:$0x1]
        %s2900 = scalar_lea.vmem %s15, 3
        %v2901 = vld [vmem:[%s2900] sm:$0x1]
        %v2902 = vsel %vm525, %v2897, 0.0
        %2903 = vadd.xlane.f32.xlu0 %v2902
        %v2904 = vpop.xlane.xlu0 %2903
        %v2905 = vmul.f32 %v2904, %v529
        %v2906 = vmul.f32 %v2897, %v2897
        %v2907 = vsel %vm525, %v2906, 0.0
        %2908 = vadd.xlane.f32.xlu0 %v2907
        %v2909 = vpop.xlane.xlu0 %2908
        %v2910 = vmul.f32 %v2909, %v529
        %v2911 = vmul.f32 %v2905, %v2905
        %v2912 = vsub.f32 %v2910, %v2911
        %v2913 = vsub.f32 %v2897, %v2905
        %v2914 = vadd.f32 %v2912, 1e-05
        %v2915 = vrsqrt.pop %v2914
        %v2916 = vmul.f32 %v2913, %v2915
        %v2918 = vlaneseq
        %v2919 = vshrl.u32 %v2918, 7
        %v2920 = vsub.s32 0, %v2919
        %v2921 = vrot.slane %v2899, %v2920
        %v2923 = vmul.f32 %v2916, %v2921
        %v2925 = vlaneseq
        %v2926 = vshrl.u32 %v2925, 7
        %v2927 = vsub.s32 0, %v2926
        %v2928 = vrot.slane %v2901, %v2927
        %v2930 = vadd.f32 %v2923, %v2928
        %v2931 = vadd.f32 %v2336, %v2930
        %2932 = vst.msk [vmem:[%s512] sm:$0xff] %vm525, %v2931
        %s2933 = sand.u32 %s379, 1
        %s2934 = scalar_lea.sflag [#allocation3], %s2933
        %s2935 = sand.u32 %s379, 1
        %s2936 = smul.addr %s2935, 8
        %s2937 = scalar_lea.vmem [#allocation2], %s2936
        // Predicated region
        $region85: #{bert_word_encoder.1} parent=83 // pred_check
          %p2938 = pneg %p389
        $region86: #{bert_word_encoder.1} parent=83 // pred_check_branch
          %2940 = sbr.rel (%p2938) target = $region88
        $region87: #{bert_word_encoder.1} parent=83 // pred_region
          %s2942 = ssub.s32 128, 128
          %2943 = vsyncadd %s2934, %s2942
          %s2944 = smul.addr %s30, 128
          %s2945 = scalar_lea.hbm %s16, %s2944
          %s2947 = sshll.u32 %s2937, 4
          %s2948 = int_to_ptr.vmem [resolvable:$true] %s2947
          %2950 = dma.vmem_to_hbm [thread:$0]  %s2948, 128, %s2945, %s2934
        $region88: #{bert_word_encoder.1} parent=83 // pred_fallthru
          _
      $region84: #{bert_word_encoder.1} parent=5 // pred_fallthru
        _
      %p2951 = scmp.le.s32.totalorder 2, %s25
      // Predicated region
      $region89: #{bert_word_encoder.1} parent=5 // pred_check
        %p2952 = pneg %p2951
      $region90: #{bert_word_encoder.1} parent=5 // pred_check_branch
        %2954 = sbr.rel (%p2952) target = $region92
      $region91: #{bert_word_encoder.1} parent=5 // pred_region
        %s2955 = ssub.s32 %s25, 2
        // Predicated region
        $region93: #{bert_word_encoder.1} parent=91 // pred_check
          %p2956 = pneg %p395
        $region94: #{bert_word_encoder.1} parent=91 // pred_check_branch
          %2958 = sbr.rel (%p2956) target = $region96
        $region95: #{bert_word_encoder.1} parent=91 // pred_region
          %s2959 = sand.u32 %s380, 1
          %s2960 = scalar_lea.sflag [#allocation3], %s2959
          %s2961 = sand.u32 %s380, 1
          %s2962 = smul.addr %s2961, 8
          %s2963 = scalar_lea.vmem [#allocation2], %s2962
          %2964 = dma.done %s2960, 128
        $region96: #{bert_word_encoder.1} parent=91 // pred_fallthru
          _
      $region92: #{bert_word_encoder.1} parent=5 // pred_fallthru
        _
    $region6: #{bert_word_encoder.1} parent=1 // loop_footer
      %s29 = sadd.s32 1, %s25
    $region7: #{bert_word_encoder.1} parent=1 // loop_footer_branch
      %24 = sbr.rel target = $region3
    $region8: #{bert_word_encoder.1} parent=1 // loop_exit
      _
    %2965 = vsyncpa [#allocation3], 1
    %s2966 = scalar_lea.sflag [#allocation3], 1
    %2967 = vsyncpa %s2966, 1

</llo_original>
